<compile_context>
chip_gen: v7x
topology: tpu7x:2x2x1
jax: 0.10.0
libtpu: 0.0.40
codegen_flags: <defaults>
</compile_context>

<pallas_src>
import jax
import jax.numpy as jnp
from jax import lax
from jax.experimental import pallas as pl
from jax.experimental.pallas import tpu as pltpu


def _spatial_mean_kernel(x_ref, o_ref):
    # x_ref block: (tile_rows, HW). Row-sum on the MXU (dot with a ones
    # column), accumulate in f32, scale by 1/HW, cast back to output dtype.
    x = x_ref[...]
    hw = x.shape[-1]
    ones = jnp.ones((hw, 1), dtype=x.dtype)          # splat constant, cheap
    s = lax.dot_general(
        x, ones,
        dimension_numbers=(((1,), (0,)), ((), ())),
        preferred_element_type=jnp.float32,
        precision=lax.Precision.HIGHEST,
    )                                                 # (tile_rows, 1) f32
    o_ref[...] = (s * jnp.float32(1.0 / hw)).astype(o_ref.dtype)


def _round_up(v, m):
    return ((v + m - 1) // m) * m


def _pick_tile_rows(R, HW, itemsize):
    # Sublane multiple so packed dtypes don't waste half-empty vregs.
    sub = max(8, 32 // max(1, itemsize))              # f32 -> 8, bf16 -> 16, int8 -> 32
    row_in_bytes = _round_up(HW, 128) * itemsize      # lane-padded input row
    row_out_bytes = 128 * itemsize                    # (tile_rows, 1) block lane-pads to 128
    per_row = row_in_bytes + row_out_bytes
    # ~12 MiB of blocks per pipeline slot; double-buffered ~24 MiB, inside the
    # 32 MiB scoped VMEM we request and v7x's 64 MiB physical VMEM.
    budget = 12 * 1024 * 1024
    max_rows = (budget // per_row) // sub * sub
    if max_rows < sub:
        # TODO(synk): for very wide spatial dims, split HW across a second
        # ("arbitrary") grid axis with a VMEM accumulator instead of shrinking
        # below one sublane group.
        return sub
    # Aim for >= 2 grid steps so the "parallel" grid axis can be sharded
    # across v7x's two TensorCores; on 1-TC chips the extra step is ~0.35 us.
    target = _round_up(pl.cdiv(R, 2), sub) if R > sub else sub
    return max(sub, min(max_rows, target))


def spatial_mean(x, tile_rows=None):
    """Pallas TPU equivalent of torch `x.mean((2, 3), keepdim=True)` (NCHW)."""
    N, C, H, W = x.shape
    R, HW = N * C, H * W
    xr = x.reshape(R, HW)                             # contiguous, no data movement

    itemsize = jnp.dtype(x.dtype).itemsize
    if tile_rows is None:
        tile_rows = _pick_tile_rows(R, HW, itemsize)
    num_tiles = pl.cdiv(R, tile_rows)                 # ragged last tile is fine

    # Explicit scoped-VMEM request: double-buffered in+out blocks plus slack,
    # floored at 16 MiB and capped at 32 MiB (safe on v5e/v6e/v7x).
    per_row = _round_up(HW, 128) * itemsize + 128 * itemsize
    vmem_limit = int(min(max(2 * tile_rows * per_row + (2 << 20), 16 << 20), 32 << 20))

    out = pl.pallas_call(
        _spatial_mean_kernel,
        out_shape=jax.ShapeDtypeStruct((R, 1), x.dtype),
        grid=(num_tiles,),
        in_specs=[pl.BlockSpec((tile_rows, HW), lambda i: (i, 0))],
        out_specs=pl.BlockSpec((tile_rows, 1), lambda i: (i, 0)),
        compiler_params=pltpu.CompilerParams(
            dimension_semantics=("parallel",),        # shards steps across v7x's 2 TCs
            vmem_limit_bytes=vmem_limit,
        ),
    )(xr)
    return out.reshape(N, C, 1, 1)


if __name__ == "__main__":
    key = jax.random.PRNGKey(0)

    # Shape from the original module: NCHW = (1, 1056, 14, 14) (~828 KiB).
    x = jax.random.normal(key, (1, 1056, 14, 14), dtype=jnp.float32)
    y = jax.block_until_ready(spatial_mean(x))        # default: 2 tiles of 528 rows
    y_ref = jnp.mean(x, axis=(2, 3), keepdims=True)
    assert y.shape == (1, 1056, 1, 1), y.shape
    assert jnp.allclose(y, y_ref, atol=1e-5, rtol=1e-4), float(jnp.max(jnp.abs(y - y_ref)))

    # Multi-step + ragged-last-tile path (1056 rows / 256-row tiles -> 5 steps,
    # last step has 32 valid rows; no wrapper-side padding pass).
    y2 = jax.block_until_ready(spatial_mean(x, tile_rows=256))
    assert jnp.allclose(y2, y_ref, atol=1e-5, rtol=1e-4)

    # Small-shape sanity check (single grid step, HW multiple of 128).
    xs = jax.random.normal(jax.random.PRNGKey(0), (2, 4, 16, 16), dtype=jnp.float32)
    ys = jax.block_until_ready(spatial_mean(xs))
    ys_ref = jnp.mean(xs, axis=(2, 3), keepdims=True)
    assert ys.shape == (2, 4, 1, 1), ys.shape
    assert jnp.allclose(ys, ys_ref, atol=1e-5, rtol=1e-4)

    print("KERNEL_OK")
</pallas_src>

<mosaic_0001>
module attributes {stable_mosaic.version = 11 : i64} {
  func.func @_spatial_mean_kernel(%arg0: i32, %arg1: memref<528x196xf32, #tpu.memory_space<vmem>>, %arg2: memref<528x1xf32, #tpu.memory_space<vmem>>) attributes {dimension_semantics = [#tpu.dimension_semantics<parallel>], iteration_bounds = array<i64: 2>, scalar_prefetch = 0 : i64, scratch_operands = 0 : i64, tpu.core_type = #tpu.core_type<tc>, window_params = [{transform_indices = @transform_0, window_bounds = array<i64: 528, 196>}, {transform_indices = @transform_1, window_bounds = array<i64: 528, 1>}]} {
    %c0 = arith.constant 0 : index
    %c0_0 = arith.constant 0 : index
    %0 = vector.load %arg1[%c0, %c0_0] : memref<528x196xf32, #tpu.memory_space<vmem>>, vector<528x196xf32>
    %cst = arith.constant 1.000000e+00 : f32
    %1 = vector.broadcast %cst : f32 to vector<196x1xf32>
    %cst_1 = arith.constant dense<0.000000e+00> : vector<528x1xf32>
    %2 = tpu.matmul %0, %1, %cst_1 {dimension_numbers = #tpu.dot_dimension_numbers<[1], [0], [0], [1], [0, 0, 1, 1], [], []>, precision = #tpu.contract_precision<fp32>} : vector<528x196xf32>, vector<196x1xf32>, vector<528x1xf32> -> vector<528x1xf32>
    %cst_2 = arith.constant 0.00510204071 : f32
    %3 = vector.broadcast %cst_2 : f32 to vector<528x1xf32>
    %4 = arith.mulf %2, %3 : vector<528x1xf32>
    %c0_3 = arith.constant 0 : index
    %c0_4 = arith.constant 0 : index
    %5 = vector.load %arg2[%c0_3, %c0_4] : memref<528x1xf32, #tpu.memory_space<vmem>>, vector<528x1xf32>
    tpu.vector_store %arg2[%c0_3, %c0_4], %4 {strides = array<i32>} : memref<528x1xf32, #tpu.memory_space<vmem>>, vector<528x1xf32>,
    return
  }
  func.func @transform_0(%arg0: i32) -> (i32, i32) {
    %c0_i32 = arith.constant 0 : i32
    %c0_i32_0 = arith.constant 0 : i32
    return %arg0, %c0_i32 : i32, i32
  }
  func.func @transform_1(%arg0: i32) -> (i32, i32) {
    %c0_i32 = arith.constant 0 : i32
    %c0_i32_0 = arith.constant 0 : i32
    return %arg0, %c0_i32 : i32, i32
  }
}

</mosaic_0001>

<llo_original>
// kernel: tpu_custom_call.1
$region0: #{tpu_custom_call.1}
  #allocation0 [shape = 'u32[]', space=smem, size = 0x4, offset = 0x4, fixed_abs, tag = 'smem constant byte address 0x4 - core index']
  #allocation1 [shape = 'u32[144,128]{1,0:T(1,128)}', space=vmem, size = 0x12000, scoped, tag = 'internal scratch']
  %s0 = inlined_call_operand.vmem [shape: f32[1056,196], index: 0, kind: input, shape index: {}]
  %s1 = inlined_call_operand.vmem [shape: f32[1056,1], index: 1, kind: output, shape index: {}]
  %s2 = sld [smem:[#allocation0]]
  $region37: #{tpu_custom_call.1} parent=0
    _
  %s4 = ssub.s32 1, %s2
  %s5 = scalar_select 0, %s4, %s2
  loop: start=0, step=1, limit=4
  $region2: #{tpu_custom_call.1} parent=0 // loop_pre_header
    _
  $region3: #{tpu_custom_call.1} parent=0 // loop_header
    %s7 = sphi 0, %s11
    %p8 = scmp.ge.s32.totalorder %s7, 4
    %s17 = sphi 0, %s19
    %s20 = sphi 0, %s17
    %s21 = sphi 0, %s20
    %s37 = sphi 0, %s21
    %s43 = sphi 0, %s45
    %s46 = sphi 0, %s43
    %s47 = sphi 0, %s46
    %s63 = sphi 0, %s47
  $region4: #{tpu_custom_call.1} parent=0 // loop_header_branch
    %10 = sbr.rel (%p8) target = $region8
  $region5: #{tpu_custom_call.1} parent=0 // loop_body
    %s12 = ssub.s32 %s7, 1
    %s13 = ssub.s32 %s7, 2
    %s14 = sadd.s32 %s7, 1
    %s15 = ssub.s32 %s7, %s14
    %p16 = scmp.eq.s32.totalorder %s15, 0
    %s18 = sadd.s32 %s17, 1
    %s19 = scalar_select %p16, %s17, %s18
    %p22 = pneg %p16
    %p23 = scmp.eq.s32.totalorder %s7, 1
    %p24 = por %p22, %p23
    %p25 = scmp.ne.s32.totalorder %s17, %s20
    %p26 = scmp.eq.s32.totalorder %s7, 0
    %p27 = por %p25, %p26
    %p28 = scmp.ne.s32.totalorder %s17, %s20
    %p29 = scmp.eq.s32.totalorder %s12, 1
    %p30 = por %p28, %p29
    %p31 = scmp.ne.s32.totalorder %s20, %s21
    %p32 = scmp.eq.s32.totalorder %s12, 0
    %p33 = por %p31, %p32
    %p34 = scmp.ne.s32.totalorder %s20, %s21
    %p35 = scmp.eq.s32.totalorder %s13, 1
    %p36 = por %p34, %p35
    %p38 = scmp.ne.s32.totalorder %s21, %s37
    %p39 = scmp.eq.s32.totalorder %s13, 0
    %p40 = por %p38, %p39
    %s41 = ssub.s32 %s7, %s14
    %p42 = scmp.eq.s32.totalorder %s41, 0
    %s44 = sadd.s32 %s43, 1
    %s45 = scalar_select %p42, %s43, %s44
    %p48 = pneg %p42
    %p49 = scmp.eq.s32.totalorder %s7, 1
    %p50 = por %p48, %p49
    %p51 = scmp.ne.s32.totalorder %s43, %s46
    %p52 = scmp.eq.s32.totalorder %s7, 0
    %p53 = por %p51, %p52
    %p54 = scmp.ne.s32.totalorder %s43, %s46
    %p55 = scmp.eq.s32.totalorder %s12, 1
    %p56 = por %p54, %p55
    %p57 = scmp.ne.s32.totalorder %s46, %s47
    %p58 = scmp.eq.s32.totalorder %s12, 0
    %p59 = por %p57, %p58
    %p60 = scmp.ne.s32.totalorder %s46, %s47
    %p61 = scmp.eq.s32.totalorder %s13, 1
    %p62 = por %p60, %p61
    %p64 = scmp.ne.s32.totalorder %s47, %s63
    %p65 = scmp.eq.s32.totalorder %s13, 0
    %p66 = por %p64, %p65
    %p67 = scmp.le.s32.totalorder 1, %s7
    %p68 = scmp.lt.s32.totalorder %s7, 3
    %p69 = pnand %p67, %p68
    %p70 = pneg %p69
    // Predicated region
    $region9: #{tpu_custom_call.1} parent=5 // pred_check
      _
    $region10: #{tpu_custom_call.1} parent=5 // pred_check_branch
      %72 = sbr.rel (%p69) target = $region12
    $region11: #{tpu_custom_call.1} parent=5 // pred_region
      %s73 = ssub.s32 %s7, 1
    $region12: #{tpu_custom_call.1} parent=5 // pred_fallthru
      _
    %p74 = scmp.lt.s32.totalorder %s7, 2
    // Predicated region
    $region13: #{tpu_custom_call.1} parent=5 // pred_check
      %p75 = pneg %p74
    $region14: #{tpu_custom_call.1} parent=5 // pred_check_branch
      %77 = sbr.rel (%p75) target = $region16
    $region15: #{tpu_custom_call.1} parent=5 // pred_region
      // Predicated region
      $region17: #{tpu_custom_call.1} parent=15 // pred_check
        %p78 = pneg %p27
      $region18: #{tpu_custom_call.1} parent=15 // pred_check_branch
        %80 = sbr.rel (%p78) target = $region20
      $region19: #{tpu_custom_call.1} parent=15 // pred_region
        %s81 = smul.u32 66, %s7
        %p82 = scmp.lt.s32.totalorder %s81, 131
        %s83 = scalar_select %p82, %s81, 131
        %s84 = smul.addr %s83, 2
        %s85 = smul.addr %s84, 8
        %s86 = scalar_lea.vmem %s0, %s85
        %s87 = smul.u32 66, %s7
      $region20: #{tpu_custom_call.1} parent=15 // pred_fallthru
        _
    $region16: #{tpu_custom_call.1} parent=5 // pred_fallthru
      _
    %p88 = scmp.le.s32.totalorder 1, %s7
    %p89 = scmp.lt.s32.totalorder %s7, 3
    %p90 = pnand %p88, %p89
    %p91 = pneg %p90
    // Predicated region
    $region21: #{tpu_custom_call.1} parent=5 // pred_check
      _
    $region22: #{tpu_custom_call.1} parent=5 // pred_check_branch
      %93 = sbr.rel (%p90) target = $region24
    $region23: #{tpu_custom_call.1} parent=5 // pred_region
      %s94 = ssub.s32 %s7, 1
      %s95 = smul.u32 66, %s12
      %p96 = scmp.lt.s32.totalorder %s95, 131
      %s97 = scalar_select %p96, %s95, 131
      %s98 = smul.addr %s97, 2
      %s99 = smul.addr %s98, 8
      %s100 = scalar_lea.vmem %s0, %s99
      %p101 = pneg %p33
      %p102 = pneg %p30
      %p103 = pneg %p59
      %p104 = pneg %p56
      %s105 = smul.u32 66, %s12
      %p106 = scmp.lt.s32.totalorder %s105, 131
      %s107 = scalar_select %p106, %s105, 131
      %s108 = smul.addr %s107, 8
      %s109 = scalar_lea.vmem %s1, %s108
      %s110 = smul.u32 66, %s12
      %p111 = scmp.lt.s32.totalorder %s110, 131
      %s112 = scalar_select %p111, %s110, 131
      %s113 = smul.addr %s112, 2
      %s114 = smul.addr %s113, 8
      %s115 = scalar_lea.vmem %s0, %s114
      %s116 = smul.u32 66, %s12
      %s117 = smul.u32 66, %s12
      %p118 = scmp.lt.s32.totalorder %s117, 131
      %s119 = scalar_select %p118, %s117, 131
      %s120 = smul.addr %s119, 8
      %s121 = scalar_lea.vmem %s1, %s120
      %s122 = smul.u32 66, %s12
      %v123 = vld [vmem:[%s115] sm:$0xff]
      %v124 = vld [vmem:[%s115 + $0x8] sm:$0xff]
      %v125 = vld [vmem:[%s115 + $0x10] sm:$0xff]
      %v126 = vld [vmem:[%s115 + $0x18] sm:$0xff]
      %v127 = vld [vmem:[%s115 + $0x20] sm:$0xff]
      %v128 = vld [vmem:[%s115 + $0x28] sm:$0xff]
      %v129 = vld [vmem:[%s115 + $0x30] sm:$0xff]
      %v130 = vld [vmem:[%s115 + $0x38] sm:$0xff]
      %v131 = vld [vmem:[%s115 + $0x40] sm:$0xff]
      %v132 = vld [vmem:[%s115 + $0x48] sm:$0xff]
      %v133 = vld [vmem:[%s115 + $0x50] sm:$0xff]
      %v134 = vld [vmem:[%s115 + $0x58] sm:$0xff]
      %v135 = vld [vmem:[%s115 + $0x60] sm:$0xff]
      %v136 = vld [vmem:[%s115 + $0x68] sm:$0xff]
      %v137 = vld [vmem:[%s115 + $0x70] sm:$0xff]
      %v138 = vld [vmem:[%s115 + $0x78] sm:$0xff]
      %v139 = vld [vmem:[%s115 + $0x80] sm:$0xff]
      %v140 = vld [vmem:[%s115 + $0x88] sm:$0xff]
      %v141 = vld [vmem:[%s115 + $0x90] sm:$0xff]
      %v142 = vld [vmem:[%s115 + $0x98] sm:$0xff]
      %v143 = vld [vmem:[%s115 + $0xa0] sm:$0xff]
      %v144 = vld [vmem:[%s115 + $0xa8] sm:$0xff]
      %v145 = vld [vmem:[%s115 + $0xb0] sm:$0xff]
      %v146 = vld [vmem:[%s115 + $0xb8] sm:$0xff]
      %v147 = vld [vmem:[%s115 + $0xc0] sm:$0xff]
      %v148 = vld [vmem:[%s115 + $0xc8] sm:$0xff]
      %v149 = vld [vmem:[%s115 + $0xd0] sm:$0xff]
      %v150 = vld [vmem:[%s115 + $0xd8] sm:$0xff]
      %v151 = vld [vmem:[%s115 + $0xe0] sm:$0xff]
      %v152 = vld [vmem:[%s115 + $0xe8] sm:$0xff]
      %v153 = vld [vmem:[%s115 + $0xf0] sm:$0xff]
      %v154 = vld [vmem:[%s115 + $0xf8] sm:$0xff]
      %v155 = vld [vmem:[%s115 + $0x100] sm:$0xff]
      %v156 = vld [vmem:[%s115 + $0x108] sm:$0xff]
      %v157 = vld [vmem:[%s115 + $0x110] sm:$0xff]
      %v158 = vld [vmem:[%s115 + $0x118] sm:$0xff]
      %v159 = vld [vmem:[%s115 + $0x120] sm:$0xff]
      %v160 = vld [vmem:[%s115 + $0x128] sm:$0xff]
      %v161 = vld [vmem:[%s115 + $0x130] sm:$0xff]
      %v162 = vld [vmem:[%s115 + $0x138] sm:$0xff]
      %v163 = vld [vmem:[%s115 + $0x140] sm:$0xff]
      %v164 = vld [vmem:[%s115 + $0x148] sm:$0xff]
      %v165 = vld [vmem:[%s115 + $0x150] sm:$0xff]
      %v166 = vld [vmem:[%s115 + $0x158] sm:$0xff]
      %v167 = vld [vmem:[%s115 + $0x160] sm:$0xff]
      %v168 = vld [vmem:[%s115 + $0x168] sm:$0xff]
      %v169 = vld [vmem:[%s115 + $0x170] sm:$0xff]
      %v170 = vld [vmem:[%s115 + $0x178] sm:$0xff]
      %v171 = vld [vmem:[%s115 + $0x180] sm:$0xff]
      %v172 = vld [vmem:[%s115 + $0x188] sm:$0xff]
      %v173 = vld [vmem:[%s115 + $0x190] sm:$0xff]
      %v174 = vld [vmem:[%s115 + $0x198] sm:$0xff]
      %v175 = vld [vmem:[%s115 + $0x1a0] sm:$0xff]
      %v176 = vld [vmem:[%s115 + $0x1a8] sm:$0xff]
      %v177 = vld [vmem:[%s115 + $0x1b0] sm:$0xff]
      %v178 = vld [vmem:[%s115 + $0x1b8] sm:$0xff]
      %v179 = vld [vmem:[%s115 + $0x1c0] sm:$0xff]
      %v180 = vld [vmem:[%s115 + $0x1c8] sm:$0xff]
      %v181 = vld [vmem:[%s115 + $0x1d0] sm:$0xff]
      %v182 = vld [vmem:[%s115 + $0x1d8] sm:$0xff]
      %v183 = vld [vmem:[%s115 + $0x1e0] sm:$0xff]
      %v184 = vld [vmem:[%s115 + $0x1e8] sm:$0xff]
      %v185 = vld [vmem:[%s115 + $0x1f0] sm:$0xff]
      %v186 = vld [vmem:[%s115 + $0x1f8] sm:$0xff]
      %v187 = vld [vmem:[%s115 + $0x200] sm:$0xff]
      %v188 = vld [vmem:[%s115 + $0x208] sm:$0xff]
      %v189 = vld [vmem:[%s115 + $0x210] sm:$0xff]
      %v190 = vld [vmem:[%s115 + $0x218] sm:$0xff]
      %v191 = vld [vmem:[%s115 + $0x220] sm:$0xff]
      %v192 = vld [vmem:[%s115 + $0x228] sm:$0xff]
      %v193 = vld [vmem:[%s115 + $0x230] sm:$0xff]
      %v194 = vld [vmem:[%s115 + $0x238] sm:$0xff]
      %v195 = vld [vmem:[%s115 + $0x240] sm:$0xff]
      %v196 = vld [vmem:[%s115 + $0x248] sm:$0xff]
      %v197 = vld [vmem:[%s115 + $0x250] sm:$0xff]
      %v198 = vld [vmem:[%s115 + $0x258] sm:$0xff]
      %v199 = vld [vmem:[%s115 + $0x260] sm:$0xff]
      %v200 = vld [vmem:[%s115 + $0x268] sm:$0xff]
      %v201 = vld [vmem:[%s115 + $0x270] sm:$0xff]
      %v202 = vld [vmem:[%s115 + $0x278] sm:$0xff]
      %v203 = vld [vmem:[%s115 + $0x280] sm:$0xff]
      %v204 = vld [vmem:[%s115 + $0x288] sm:$0xff]
      %v205 = vld [vmem:[%s115 + $0x290] sm:$0xff]
      %v206 = vld [vmem:[%s115 + $0x298] sm:$0xff]
      %v207 = vld [vmem:[%s115 + $0x2a0] sm:$0xff]
      %v208 = vld [vmem:[%s115 + $0x2a8] sm:$0xff]
      %v209 = vld [vmem:[%s115 + $0x2b0] sm:$0xff]
      %v210 = vld [vmem:[%s115 + $0x2b8] sm:$0xff]
      %v211 = vld [vmem:[%s115 + $0x2c0] sm:$0xff]
      %v212 = vld [vmem:[%s115 + $0x2c8] sm:$0xff]
      %v213 = vld [vmem:[%s115 + $0x2d0] sm:$0xff]
      %v214 = vld [vmem:[%s115 + $0x2d8] sm:$0xff]
      %v215 = vld [vmem:[%s115 + $0x2e0] sm:$0xff]
      %v216 = vld [vmem:[%s115 + $0x2e8] sm:$0xff]
      %v217 = vld [vmem:[%s115 + $0x2f0] sm:$0xff]
      %v218 = vld [vmem:[%s115 + $0x2f8] sm:$0xff]
      %v219 = vld [vmem:[%s115 + $0x300] sm:$0xff]
      %v220 = vld [vmem:[%s115 + $0x308] sm:$0xff]
      %v221 = vld [vmem:[%s115 + $0x310] sm:$0xff]
      %v222 = vld [vmem:[%s115 + $0x318] sm:$0xff]
      %v223 = vld [vmem:[%s115 + $0x320] sm:$0xff]
      %v224 = vld [vmem:[%s115 + $0x328] sm:$0xff]
      %v225 = vld [vmem:[%s115 + $0x330] sm:$0xff]
      %v226 = vld [vmem:[%s115 + $0x338] sm:$0xff]
      %v227 = vld [vmem:[%s115 + $0x340] sm:$0xff]
      %v228 = vld [vmem:[%s115 + $0x348] sm:$0xff]
      %v229 = vld [vmem:[%s115 + $0x350] sm:$0xff]
      %v230 = vld [vmem:[%s115 + $0x358] sm:$0xff]
      %v231 = vld [vmem:[%s115 + $0x360] sm:$0xff]
      %v232 = vld [vmem:[%s115 + $0x368] sm:$0xff]
      %v233 = vld [vmem:[%s115 + $0x370] sm:$0xff]
      %v234 = vld [vmem:[%s115 + $0x378] sm:$0xff]
      %v235 = vld [vmem:[%s115 + $0x380] sm:$0xff]
      %v236 = vld [vmem:[%s115 + $0x388] sm:$0xff]
      %v237 = vld [vmem:[%s115 + $0x390] sm:$0xff]
      %v238 = vld [vmem:[%s115 + $0x398] sm:$0xff]
      %v239 = vld [vmem:[%s115 + $0x3a0] sm:$0xff]
      %v240 = vld [vmem:[%s115 + $0x3a8] sm:$0xff]
      %v241 = vld [vmem:[%s115 + $0x3b0] sm:$0xff]
      %v242 = vld [vmem:[%s115 + $0x3b8] sm:$0xff]
      %v243 = vld [vmem:[%s115 + $0x3c0] sm:$0xff]
      %v244 = vld [vmem:[%s115 + $0x3c8] sm:$0xff]
      %v245 = vld [vmem:[%s115 + $0x3d0] sm:$0xff]
      %v246 = vld [vmem:[%s115 + $0x3d8] sm:$0xff]
      %v247 = vld [vmem:[%s115 + $0x3e0] sm:$0xff]
      %v248 = vld [vmem:[%s115 + $0x3e8] sm:$0xff]
      %v249 = vld [vmem:[%s115 + $0x3f0] sm:$0xff]
      %v250 = vld [vmem:[%s115 + $0x3f8] sm:$0xff]
      %v251 = vld [vmem:[%s115 + $0x400] sm:$0xff]
      %v252 = vld [vmem:[%s115 + $0x408] sm:$0xff]
      %v253 = vld [vmem:[%s115 + $0x410] sm:$0xff]
      %v254 = vld [vmem:[%s115 + $0x418] sm:$0xff]
      %vm255 = vcmask 556032
      %v257 = vsel %vm255, %v124, 0
      %v260 = vsel %vm255, %v126, 0
      %v263 = vsel %vm255, %v128, 0
      %v266 = vsel %vm255, %v130, 0
      %v269 = vsel %vm255, %v132, 0
      %v272 = vsel %vm255, %v134, 0
      %v275 = vsel %vm255, %v136, 0
      %v278 = vsel %vm255, %v138, 0
      %v281 = vsel %vm255, %v140, 0
      %v284 = vsel %vm255, %v142, 0
      %v287 = vsel %vm255, %v144, 0
      %v290 = vsel %vm255, %v146, 0
      %v293 = vsel %vm255, %v148, 0
      %v296 = vsel %vm255, %v150, 0
      %v299 = vsel %vm255, %v152, 0
      %v302 = vsel %vm255, %v154, 0
      %v305 = vsel %vm255, %v156, 0
      %v308 = vsel %vm255, %v158, 0
      %v311 = vsel %vm255, %v160, 0
      %v314 = vsel %vm255, %v162, 0
      %v317 = vsel %vm255, %v164, 0
      %v320 = vsel %vm255, %v166, 0
      %v323 = vsel %vm255, %v168, 0
      %v326 = vsel %vm255, %v170, 0
      %v329 = vsel %vm255, %v172, 0
      %v332 = vsel %vm255, %v174, 0
      %v335 = vsel %vm255, %v176, 0
      %v338 = vsel %vm255, %v178, 0
      %v341 = vsel %vm255, %v180, 0
      %v344 = vsel %vm255, %v182, 0
      %v347 = vsel %vm255, %v184, 0
      %v350 = vsel %vm255, %v186, 0
      %v353 = vsel %vm255, %v188, 0
      %v356 = vsel %vm255, %v190, 0
      %v359 = vsel %vm255, %v192, 0
      %v362 = vsel %vm255, %v194, 0
      %v365 = vsel %vm255, %v196, 0
      %v368 = vsel %vm255, %v198, 0
      %v371 = vsel %vm255, %v200, 0
      %v374 = vsel %vm255, %v202, 0
      %v377 = vsel %vm255, %v204, 0
      %v380 = vsel %vm255, %v206, 0
      %v383 = vsel %vm255, %v208, 0
      %v386 = vsel %vm255, %v210, 0
      %v389 = vsel %vm255, %v212, 0
      %v392 = vsel %vm255, %v214, 0
      %v395 = vsel %vm255, %v216, 0
      %v398 = vsel %vm255, %v218, 0
      %v401 = vsel %vm255, %v220, 0
      %v404 = vsel %vm255, %v222, 0
      %v407 = vsel %vm255, %v224, 0
      %v410 = vsel %vm255, %v226, 0
      %v413 = vsel %vm255, %v228, 0
      %v416 = vsel %vm255, %v230, 0
      %v419 = vsel %vm255, %v232, 0
      %v422 = vsel %vm255, %v234, 0
      %v425 = vsel %vm255, %v236, 0
      %v428 = vsel %vm255, %v238, 0
      %v431 = vsel %vm255, %v240, 0
      %v434 = vsel %vm255, %v242, 0
      %v437 = vsel %vm255, %v244, 0
      %v440 = vsel %vm255, %v246, 0
      %v443 = vsel %vm255, %v248, 0
      %v446 = vsel %vm255, %v250, 0
      %v449 = vsel %vm255, %v252, 0
      %v452 = vsel %vm255, %v254, 0
      %vm454 = vcmask 1043456
      %v456 = vsel %vm454, 1.0, 0
      %458 = vmatprep.subr.mxu0 0.0
      %459 = vmatpush1.msra.mxu0 1.0
      %460 = vmatprep.subr.mxu0 0.0
      %461 = vmatpush1.msra.mxu0 1.0
      %462 = vmatprep.subr.mxu0 0.0
      %463 = vmatpush1.msra.mxu0 1.0
      %464 = vmatprep.subr.mxu0 0.0
      %465 = vmatpush1.msra.mxu0 1.0
      %466 = vmatprep.subr.mxu0 0.0
      %467 = vmatpush1.msra.mxu0 1.0
      %468 = vmatprep.subr.mxu0 0.0
      %469 = vmatpush1.msra.mxu0 1.0
      %470 = vmatprep.subr.mxu0 0.0
      %471 = vmatpush1.msra.mxu0 1.0
      %472 = vmatprep.subr.mxu0 0.0
      %473 = vmatpush1.msra.mxu0 1.0
      %474 = vmatprep.subr.mxu0 0.0
      %475 = vmatpush1.msra.mxu0 1.0
      %476 = vmatprep.subr.mxu0 0.0
      %477 = vmatpush1.msra.mxu0 1.0
      %478 = vmatprep.subr.mxu0 0.0
      %479 = vmatpush1.msra.mxu0 1.0
      %480 = vmatprep.subr.mxu0 0.0
      %481 = vmatpush1.msra.mxu0 1.0
      %482 = vmatprep.subr.mxu0 0.0
      %483 = vmatpush1.msra.mxu0 1.0
      %484 = vmatprep.subr.mxu0 0.0
      %485 = vmatpush1.msra.mxu0 1.0
      %486 = vmatprep.subr.mxu0 0.0
      %487 = vmatpush1.msra.mxu0 1.0
      %488 = vmatprep.subr.mxu0 0.0
      %489 = vmatpush1.msra.mxu0 1.0
      %490 = vmatprep.subr.mxu0 0.0
      %491 = vmatpush1.msra.mxu0 1.0
      %492 = vmatprep.subr.mxu0 0.0
      %493 = vmatpush1.msra.mxu0 1.0
      %494 = vmatprep.subr.mxu0 0.0
      %495 = vmatpush1.msra.mxu0 1.0
      %496 = vmatprep.subr.mxu0 0.0
      %497 = vmatpush1.msra.mxu0 1.0
      %498 = vmatprep.subr.mxu0 0.0
      %499 = vmatpush1.msra.mxu0 1.0
      %500 = vmatprep.subr.mxu0 0.0
      %501 = vmatpush1.msra.mxu0 1.0
      %502 = vmatprep.subr.mxu0 0.0
      %503 = vmatpush1.msra.mxu0 1.0
      %504 = vmatprep.subr.mxu0 0.0
      %505 = vmatpush1.msra.mxu0 1.0
      %506 = vmatprep.subr.mxu0 0.0
      %v507 = vand.u32 %v456, 4294901760
      %508 = vmatpush1.msra.mxu0 %v507
      %509 = vmatprep.subr.mxu0 0.0
      %510 = vmatpush1.msra.mxu0 0.0
      %511 = vmatprep.subr.mxu0 0.0
      %512 = vmatpush1.msra.mxu0 0.0
      %513 = vmatprep.subr.mxu0 0.0
      %514 = vmatpush1.msra.mxu0 0.0
      %515 = vmatprep.subr.mxu0 0.0
      %516 = vmatpush1.msra.mxu0 0.0
      %517 = vmatprep.subr.mxu0 0.0
      %518 = vmatpush1.msra.mxu0 0.0
      %519 = vmatprep.subr.mxu0 0.0
      %520 = vmatpush1.msra.mxu0 0.0
      %521 = vmatprep.subr.mxu0 0.0
      %522 = vmatpush1.msra.mxu0 0.0
      %v523 = vand.u32 %v257, 4294901760
      %v524 = vsub.f32 %v257, %v523
      %v525 = vand.u32 %v524, 4294901760
      %v526 = vsub.f32 %v524, %v525
      %v527 = vand.u32 %v526, 4294901760
      %528 = vmatprep.mubr.f32.mxu0 %v527
      %v529 = vand.u32 %v123, 4294901760
      %v530 = vsub.f32 %v123, %v529
      %v531 = vand.u32 %v530, 4294901760
      %v532 = vsub.f32 %v530, %v531
      %v533 = vand.u32 %v532, 4294901760
      %534 = vmatmul.mubr.f32.gmra.mrb[0].mxu0 %v533
      %v535 = vpop.f32.mrb[0].mxu0
      %v536 = vadd.f32 0.0, %v535
      %v537 = vpop.f32.mrb[0].mxu0
      %v538 = vand.u32 %v260, 4294901760
      %v539 = vsub.f32 %v260, %v538
      %v540 = vand.u32 %v539, 4294901760
      %v541 = vsub.f32 %v539, %v540
      %v542 = vand.u32 %v541, 4294901760
      %543 = vmatprep.mubr.f32.mxu0 %v542
      %v544 = vand.u32 %v125, 4294901760
      %v545 = vsub.f32 %v125, %v544
      %v546 = vand.u32 %v545, 4294901760
      %v547 = vsub.f32 %v545, %v546
      %v548 = vand.u32 %v547, 4294901760
      %549 = vmatmul.mubr.f32.gmra.mrb[0].mxu0 %v548
      %v550 = vpop.f32.mrb[0].mxu0
      %v551 = vadd.f32 0.0, %v550
      %v552 = vpop.f32.mrb[0].mxu0
      %v553 = vand.u32 %v263, 4294901760
      %v554 = vsub.f32 %v263, %v553
      %v555 = vand.u32 %v554, 4294901760
      %v556 = vsub.f32 %v554, %v555
      %v557 = vand.u32 %v556, 4294901760
      %558 = vmatprep.mubr.f32.mxu0 %v557
      %v559 = vand.u32 %v127, 4294901760
      %v560 = vsub.f32 %v127, %v559
      %v561 = vand.u32 %v560, 4294901760
      %v562 = vsub.f32 %v560, %v561
      %v563 = vand.u32 %v562, 4294901760
      %564 = vmatmul.mubr.f32.gmra.mrb[0].mxu0 %v563
      %v565 = vpop.f32.mrb[0].mxu0
      %v566 = vadd.f32 0.0, %v565
      %v567 = vpop.f32.mrb[0].mxu0
      %v568 = vand.u32 %v266, 4294901760
      %v569 = vsub.f32 %v266, %v568
      %v570 = vand.u32 %v569, 4294901760
      %v571 = vsub.f32 %v569, %v570
      %v572 = vand.u32 %v571, 4294901760
      %573 = vmatprep.mubr.f32.mxu0 %v572
      %v574 = vand.u32 %v129, 4294901760
      %v575 = vsub.f32 %v129, %v574
      %v576 = vand.u32 %v575, 4294901760
      %v577 = vsub.f32 %v575, %v576
      %v578 = vand.u32 %v577, 4294901760
      %579 = vmatmul.mubr.f32.gmra.mrb[0].mxu0 %v578
      %v580 = vpop.f32.mrb[0].mxu0
      %v581 = vadd.f32 0.0, %v580
      %v582 = vpop.f32.mrb[0].mxu0
      %v583 = vand.u32 %v269, 4294901760
      %v584 = vsub.f32 %v269, %v583
      %v585 = vand.u32 %v584, 4294901760
      %v586 = vsub.f32 %v584, %v585
      %v587 = vand.u32 %v586, 4294901760
      %588 = vmatprep.mubr.f32.mxu0 %v587
      %v589 = vand.u32 %v131, 4294901760
      %v590 = vsub.f32 %v131, %v589
      %v591 = vand.u32 %v590, 4294901760
      %v592 = vsub.f32 %v590, %v591
      %v593 = vand.u32 %v592, 4294901760
      %594 = vmatmul.mubr.f32.gmra.mrb[0].mxu0 %v593
      %v595 = vpop.f32.mrb[0].mxu0
      %v596 = vadd.f32 0.0, %v595
      %v597 = vpop.f32.mrb[0].mxu0
      %v598 = vand.u32 %v272, 4294901760
      %v599 = vsub.f32 %v272, %v598
      %v600 = vand.u32 %v599, 4294901760
      %v601 = vsub.f32 %v599, %v600
      %v602 = vand.u32 %v601, 4294901760
      %603 = vmatprep.mubr.f32.mxu0 %v602
      %v604 = vand.u32 %v133, 4294901760
      %v605 = vsub.f32 %v133, %v604
      %v606 = vand.u32 %v605, 4294901760
      %v607 = vsub.f32 %v605, %v606
      %v608 = vand.u32 %v607, 4294901760
      %609 = vmatmul.mubr.f32.gmra.mrb[0].mxu0 %v608
      %v610 = vpop.f32.mrb[0].mxu0
      %v611 = vadd.f32 0.0, %v610
      %v612 = vpop.f32.mrb[0].mxu0
      %v613 = vand.u32 %v275, 4294901760
      %v614 = vsub.f32 %v275, %v613
      %v615 = vand.u32 %v614, 4294901760
      %v616 = vsub.f32 %v614, %v615
      %v617 = vand.u32 %v616, 4294901760
      %618 = vmatprep.mubr.f32.mxu0 %v617
      %v619 = vand.u32 %v135, 4294901760
      %v620 = vsub.f32 %v135, %v619
      %v621 = vand.u32 %v620, 4294901760
      %v622 = vsub.f32 %v620, %v621
      %v623 = vand.u32 %v622, 4294901760
      %624 = vmatmul.mubr.f32.gmra.mrb[0].mxu0 %v623
      %v625 = vpop.f32.mrb[0].mxu0
      %v626 = vadd.f32 0.0, %v625
      %v627 = vpop.f32.mrb[0].mxu0
      %v628 = vand.u32 %v278, 4294901760
      %v629 = vsub.f32 %v278, %v628
      %v630 = vand.u32 %v629, 4294901760
      %v631 = vsub.f32 %v629, %v630
      %v632 = vand.u32 %v631, 4294901760
      %633 = vmatprep.mubr.f32.mxu0 %v632
      %v634 = vand.u32 %v137, 4294901760
      %v635 = vsub.f32 %v137, %v634
      %v636 = vand.u32 %v635, 4294901760
      %v637 = vsub.f32 %v635, %v636
      %v638 = vand.u32 %v637, 4294901760
      %639 = vmatmul.mubr.f32.gmra.mrb[0].mxu0 %v638
      %v640 = vpop.f32.mrb[0].mxu0
      %v641 = vadd.f32 0.0, %v640
      %v642 = vpop.f32.mrb[0].mxu0
      %v643 = vand.u32 %v281, 4294901760
      %v644 = vsub.f32 %v281, %v643
      %v645 = vand.u32 %v644, 4294901760
      %v646 = vsub.f32 %v644, %v645
      %v647 = vand.u32 %v646, 4294901760
      %648 = vmatprep.mubr.f32.mxu0 %v647
      %v649 = vand.u32 %v139, 4294901760
      %v650 = vsub.f32 %v139, %v649
      %v651 = vand.u32 %v650, 4294901760
      %v652 = vsub.f32 %v650, %v651
      %v653 = vand.u32 %v652, 4294901760
      %654 = vmatmul.mubr.f32.gmra.mrb[0].mxu0 %v653
      %v655 = vpop.f32.mrb[0].mxu0
      %v656 = vadd.f32 0.0, %v655
      %v657 = vpop.f32.mrb[0].mxu0
      %v658 = vand.u32 %v284, 4294901760
      %v659 = vsub.f32 %v284, %v658
      %v660 = vand.u32 %v659, 4294901760
      %v661 = vsub.f32 %v659, %v660
      %v662 = vand.u32 %v661, 4294901760
      %663 = vmatprep.mubr.f32.mxu0 %v662
      %v664 = vand.u32 %v141, 4294901760
      %v665 = vsub.f32 %v141, %v664
      %v666 = vand.u32 %v665, 4294901760
      %v667 = vsub.f32 %v665, %v666
      %v668 = vand.u32 %v667, 4294901760
      %669 = vmatmul.mubr.f32.gmra.mrb[0].mxu0 %v668
      %v670 = vpop.f32.mrb[0].mxu0
      %v671 = vadd.f32 0.0, %v670
      %v672 = vpop.f32.mrb[0].mxu0
      %v673 = vand.u32 %v287, 4294901760
      %v674 = vsub.f32 %v287, %v673
      %v675 = vand.u32 %v674, 4294901760
      %v676 = vsub.f32 %v674, %v675
      %v677 = vand.u32 %v676, 4294901760
      %678 = vmatprep.mubr.f32.mxu0 %v677
      %v679 = vand.u32 %v143, 4294901760
      %v680 = vsub.f32 %v143, %v679
      %v681 = vand.u32 %v680, 4294901760
      %v682 = vsub.f32 %v680, %v681
      %v683 = vand.u32 %v682, 4294901760
      %684 = vmatmul.mubr.f32.gmra.mrb[0].mxu0 %v683
      %v685 = vpop.f32.mrb[0].mxu0
      %v686 = vadd.f32 0.0, %v685
      %v687 = vpop.f32.mrb[0].mxu0
      %v688 = vand.u32 %v290, 4294901760
      %v689 = vsub.f32 %v290, %v688
      %v690 = vand.u32 %v689, 4294901760
      %v691 = vsub.f32 %v689, %v690
      %v692 = vand.u32 %v691, 4294901760
      %693 = vmatprep.mubr.f32.mxu0 %v692
      %v694 = vand.u32 %v145, 4294901760
      %v695 = vsub.f32 %v145, %v694
      %v696 = vand.u32 %v695, 4294901760
      %v697 = vsub.f32 %v695, %v696
      %v698 = vand.u32 %v697, 4294901760
      %699 = vmatmul.mubr.f32.gmra.mrb[0].mxu0 %v698
      %v700 = vpop.f32.mrb[0].mxu0
      %v701 = vadd.f32 0.0, %v700
      %v702 = vpop.f32.mrb[0].mxu0
      %v703 = vand.u32 %v293, 4294901760
      %v704 = vsub.f32 %v293, %v703
      %v705 = vand.u32 %v704, 4294901760
      %v706 = vsub.f32 %v704, %v705
      %v707 = vand.u32 %v706, 4294901760
      %708 = vmatprep.mubr.f32.mxu0 %v707
      %v709 = vand.u32 %v147, 4294901760
      %v710 = vsub.f32 %v147, %v709
      %v711 = vand.u32 %v710, 4294901760
      %v712 = vsub.f32 %v710, %v711
      %v713 = vand.u32 %v712, 4294901760
      %714 = vmatmul.mubr.f32.gmra.mrb[0].mxu0 %v713
      %v715 = vpop.f32.mrb[0].mxu0
      %v716 = vadd.f32 0.0, %v715
      %v717 = vpop.f32.mrb[0].mxu0
      %v718 = vand.u32 %v296, 4294901760
      %v719 = vsub.f32 %v296, %v718
      %v720 = vand.u32 %v719, 4294901760
      %v721 = vsub.f32 %v719, %v720
      %v722 = vand.u32 %v721, 4294901760
      %723 = vmatprep.mubr.f32.mxu0 %v722
      %v724 = vand.u32 %v149, 4294901760
      %v725 = vsub.f32 %v149, %v724
      %v726 = vand.u32 %v725, 4294901760
      %v727 = vsub.f32 %v725, %v726
      %v728 = vand.u32 %v727, 4294901760
      %729 = vmatmul.mubr.f32.gmra.mrb[0].mxu0 %v728
      %v730 = vpop.f32.mrb[0].mxu0
      %v731 = vadd.f32 0.0, %v730
      %v732 = vpop.f32.mrb[0].mxu0
      %v733 = vand.u32 %v299, 4294901760
      %v734 = vsub.f32 %v299, %v733
      %v735 = vand.u32 %v734, 4294901760
      %v736 = vsub.f32 %v734, %v735
      %v737 = vand.u32 %v736, 4294901760
      %738 = vmatprep.mubr.f32.mxu0 %v737
      %v739 = vand.u32 %v151, 4294901760
      %v740 = vsub.f32 %v151, %v739
      %v741 = vand.u32 %v740, 4294901760
      %v742 = vsub.f32 %v740, %v741
      %v743 = vand.u32 %v742, 4294901760
      %744 = vmatmul.mubr.f32.gmra.mrb[0].mxu0 %v743
      %v745 = vpop.f32.mrb[0].mxu0
      %v746 = vadd.f32 0.0, %v745
      %v747 = vpop.f32.mrb[0].mxu0
      %v748 = vand.u32 %v302, 4294901760
      %v749 = vsub.f32 %v302, %v748
      %v750 = vand.u32 %v749, 4294901760
      %v751 = vsub.f32 %v749, %v750
      %v752 = vand.u32 %v751, 4294901760
      %753 = vmatprep.mubr.f32.mxu0 %v752
      %v754 = vand.u32 %v153, 4294901760
      %v755 = vsub.f32 %v153, %v754
      %v756 = vand.u32 %v755, 4294901760
      %v757 = vsub.f32 %v755, %v756
      %v758 = vand.u32 %v757, 4294901760
      %759 = vmatmul.mubr.f32.gmra.mrb[0].mxu0 %v758
      %v760 = vpop.f32.mrb[0].mxu0
      %v761 = vadd.f32 0.0, %v760
      %v762 = vpop.f32.mrb[0].mxu0
      %v763 = vand.u32 %v305, 4294901760
      %v764 = vsub.f32 %v305, %v763
      %v765 = vand.u32 %v764, 4294901760
      %v766 = vsub.f32 %v764, %v765
      %v767 = vand.u32 %v766, 4294901760
      %768 = vmatprep.mubr.f32.mxu0 %v767
      %v769 = vand.u32 %v155, 4294901760
      %v770 = vsub.f32 %v155, %v769
      %v771 = vand.u32 %v770, 4294901760
      %v772 = vsub.f32 %v770, %v771
      %v773 = vand.u32 %v772, 4294901760
      %774 = vmatmul.mubr.f32.gmra.mrb[0].mxu0 %v773
      %v775 = vpop.f32.mrb[0].mxu0
      %v776 = vadd.f32 0.0, %v775
      %v777 = vpop.f32.mrb[0].mxu0
      %v778 = vand.u32 %v308, 4294901760
      %v779 = vsub.f32 %v308, %v778
      %v780 = vand.u32 %v779, 4294901760
      %v781 = vsub.f32 %v779, %v780
      %v782 = vand.u32 %v781, 4294901760
      %783 = vmatprep.mubr.f32.mxu0 %v782
      %v784 = vand.u32 %v157, 4294901760
      %v785 = vsub.f32 %v157, %v784
      %v786 = vand.u32 %v785, 4294901760
      %v787 = vsub.f32 %v785, %v786
      %v788 = vand.u32 %v787, 4294901760
      %789 = vmatmul.mubr.f32.gmra.mrb[0].mxu0 %v788
      %v790 = vpop.f32.mrb[0].mxu0
      %v791 = vadd.f32 0.0, %v790
      %v792 = vpop.f32.mrb[0].mxu0
      %v793 = vand.u32 %v311, 4294901760
      %v794 = vsub.f32 %v311, %v793
      %v795 = vand.u32 %v794, 4294901760
      %v796 = vsub.f32 %v794, %v795
      %v797 = vand.u32 %v796, 4294901760
      %798 = vmatprep.mubr.f32.mxu0 %v797
      %v799 = vand.u32 %v159, 4294901760
      %v800 = vsub.f32 %v159, %v799
      %v801 = vand.u32 %v800, 4294901760
      %v802 = vsub.f32 %v800, %v801
      %v803 = vand.u32 %v802, 4294901760
      %804 = vmatmul.mubr.f32.gmra.mrb[0].mxu0 %v803
      %v805 = vpop.f32.mrb[0].mxu0
      %v806 = vadd.f32 0.0, %v805
      %v807 = vpop.f32.mrb[0].mxu0
      %v808 = vand.u32 %v314, 4294901760
      %v809 = vsub.f32 %v314, %v808
      %v810 = vand.u32 %v809, 4294901760
      %v811 = vsub.f32 %v809, %v810
      %v812 = vand.u32 %v811, 4294901760
      %813 = vmatprep.mubr.f32.mxu0 %v812
      %v814 = vand.u32 %v161, 4294901760
      %v815 = vsub.f32 %v161, %v814
      %v816 = vand.u32 %v815, 4294901760
      %v817 = vsub.f32 %v815, %v816
      %v818 = vand.u32 %v817, 4294901760
      %819 = vmatmul.mubr.f32.gmra.mrb[0].mxu0 %v818
      %v820 = vpop.f32.mrb[0].mxu0
      %v821 = vadd.f32 0.0, %v820
      %v822 = vpop.f32.mrb[0].mxu0
      %v823 = vand.u32 %v317, 4294901760
      %v824 = vsub.f32 %v317, %v823
      %v825 = vand.u32 %v824, 4294901760
      %v826 = vsub.f32 %v824, %v825
      %v827 = vand.u32 %v826, 4294901760
      %828 = vmatprep.mubr.f32.mxu0 %v827
      %v829 = vand.u32 %v163, 4294901760
      %v830 = vsub.f32 %v163, %v829
      %v831 = vand.u32 %v830, 4294901760
      %v832 = vsub.f32 %v830, %v831
      %v833 = vand.u32 %v832, 4294901760
      %834 = vmatmul.mubr.f32.gmra.mrb[0].mxu0 %v833
      %v835 = vpop.f32.mrb[0].mxu0
      %v836 = vadd.f32 0.0, %v835
      %v837 = vpop.f32.mrb[0].mxu0
      %v838 = vand.u32 %v320, 4294901760
      %v839 = vsub.f32 %v320, %v838
      %v840 = vand.u32 %v839, 4294901760
      %v841 = vsub.f32 %v839, %v840
      %v842 = vand.u32 %v841, 4294901760
      %843 = vmatprep.mubr.f32.mxu0 %v842
      %v844 = vand.u32 %v165, 4294901760
      %v845 = vsub.f32 %v165, %v844
      %v846 = vand.u32 %v845, 4294901760
      %v847 = vsub.f32 %v845, %v846
      %v848 = vand.u32 %v847, 4294901760
      %849 = vmatmul.mubr.f32.gmra.mrb[0].mxu0 %v848
      %v850 = vpop.f32.mrb[0].mxu0
      %v851 = vadd.f32 0.0, %v850
      %v852 = vpop.f32.mrb[0].mxu0
      %v853 = vand.u32 %v323, 4294901760
      %v854 = vsub.f32 %v323, %v853
      %v855 = vand.u32 %v854, 4294901760
      %v856 = vsub.f32 %v854, %v855
      %v857 = vand.u32 %v856, 4294901760
      %858 = vmatprep.mubr.f32.mxu0 %v857
      %v859 = vand.u32 %v167, 4294901760
      %v860 = vsub.f32 %v167, %v859
      %v861 = vand.u32 %v860, 4294901760
      %v862 = vsub.f32 %v860, %v861
      %v863 = vand.u32 %v862, 4294901760
      %864 = vmatmul.mubr.f32.gmra.mrb[0].mxu0 %v863
      %v865 = vpop.f32.mrb[0].mxu0
      %v866 = vadd.f32 0.0, %v865
      %v867 = vpop.f32.mrb[0].mxu0
      %v868 = vand.u32 %v326, 4294901760
      %v869 = vsub.f32 %v326, %v868
      %v870 = vand.u32 %v869, 4294901760
      %v871 = vsub.f32 %v869, %v870
      %v872 = vand.u32 %v871, 4294901760
      %873 = vmatprep.mubr.f32.mxu0 %v872
      %v874 = vand.u32 %v169, 4294901760
      %v875 = vsub.f32 %v169, %v874
      %v876 = vand.u32 %v875, 4294901760
      %v877 = vsub.f32 %v875, %v876
      %v878 = vand.u32 %v877, 4294901760
      %879 = vmatmul.mubr.f32.gmra.mrb[0].mxu0 %v878
      %v880 = vpop.f32.mrb[0].mxu0
      %v881 = vadd.f32 0.0, %v880
      %v882 = vpop.f32.mrb[0].mxu0
      %v883 = vand.u32 %v329, 4294901760
      %v884 = vsub.f32 %v329, %v883
      %v885 = vand.u32 %v884, 4294901760
      %v886 = vsub.f32 %v884, %v885
      %v887 = vand.u32 %v886, 4294901760
      %888 = vmatprep.mubr.f32.mxu0 %v887
      %v889 = vand.u32 %v171, 4294901760
      %v890 = vsub.f32 %v171, %v889
      %v891 = vand.u32 %v890, 4294901760
      %v892 = vsub.f32 %v890, %v891
      %v893 = vand.u32 %v892, 4294901760
      %894 = vmatmul.mubr.f32.gmra.mrb[0].mxu0 %v893
      %v895 = vpop.f32.mrb[0].mxu0
      %v896 = vadd.f32 0.0, %v895
      %v897 = vpop.f32.mrb[0].mxu0
      %v898 = vand.u32 %v332, 4294901760
      %v899 = vsub.f32 %v332, %v898
      %v900 = vand.u32 %v899, 4294901760
      %v901 = vsub.f32 %v899, %v900
      %v902 = vand.u32 %v901, 4294901760
      %903 = vmatprep.mubr.f32.mxu0 %v902
      %v904 = vand.u32 %v173, 4294901760
      %v905 = vsub.f32 %v173, %v904
      %v906 = vand.u32 %v905, 4294901760
      %v907 = vsub.f32 %v905, %v906
      %v908 = vand.u32 %v907, 4294901760
      %909 = vmatmul.mubr.f32.gmra.mrb[0].mxu0 %v908
      %v910 = vpop.f32.mrb[0].mxu0
      %v911 = vadd.f32 0.0, %v910
      %v912 = vpop.f32.mrb[0].mxu0
      %v913 = vand.u32 %v335, 4294901760
      %v914 = vsub.f32 %v335, %v913
      %v915 = vand.u32 %v914, 4294901760
      %v916 = vsub.f32 %v914, %v915
      %v917 = vand.u32 %v916, 4294901760
      %918 = vmatprep.mubr.f32.mxu0 %v917
      %v919 = vand.u32 %v175, 4294901760
      %v920 = vsub.f32 %v175, %v919
      %v921 = vand.u32 %v920, 4294901760
      %v922 = vsub.f32 %v920, %v921
      %v923 = vand.u32 %v922, 4294901760
      %924 = vmatmul.mubr.f32.gmra.mrb[0].mxu0 %v923
      %v925 = vpop.f32.mrb[0].mxu0
      %v926 = vadd.f32 0.0, %v925
      %v927 = vpop.f32.mrb[0].mxu0
      %v928 = vand.u32 %v338, 4294901760
      %v929 = vsub.f32 %v338, %v928
      %v930 = vand.u32 %v929, 4294901760
      %v931 = vsub.f32 %v929, %v930
      %v932 = vand.u32 %v931, 4294901760
      %933 = vmatprep.mubr.f32.mxu0 %v932
      %v934 = vand.u32 %v177, 4294901760
      %v935 = vsub.f32 %v177, %v934
      %v936 = vand.u32 %v935, 4294901760
      %v937 = vsub.f32 %v935, %v936
      %v938 = vand.u32 %v937, 4294901760
      %939 = vmatmul.mubr.f32.gmra.mrb[0].mxu0 %v938
      %v940 = vpop.f32.mrb[0].mxu0
      %v941 = vadd.f32 0.0, %v940
      %v942 = vpop.f32.mrb[0].mxu0
      %v943 = vand.u32 %v341, 4294901760
      %v944 = vsub.f32 %v341, %v943
      %v945 = vand.u32 %v944, 4294901760
      %v946 = vsub.f32 %v944, %v945
      %v947 = vand.u32 %v946, 4294901760
      %948 = vmatprep.mubr.f32.mxu0 %v947
      %v949 = vand.u32 %v179, 4294901760
      %v950 = vsub.f32 %v179, %v949
      %v951 = vand.u32 %v950, 4294901760
      %v952 = vsub.f32 %v950, %v951
      %v953 = vand.u32 %v952, 4294901760
      %954 = vmatmul.mubr.f32.gmra.mrb[0].mxu0 %v953
      %v955 = vpop.f32.mrb[0].mxu0
      %v956 = vadd.f32 0.0, %v955
      %v957 = vpop.f32.mrb[0].mxu0
      %v958 = vand.u32 %v344, 4294901760
      %v959 = vsub.f32 %v344, %v958
      %v960 = vand.u32 %v959, 4294901760
      %v961 = vsub.f32 %v959, %v960
      %v962 = vand.u32 %v961, 4294901760
      %963 = vmatprep.mubr.f32.mxu0 %v962
      %v964 = vand.u32 %v181, 4294901760
      %v965 = vsub.f32 %v181, %v964
      %v966 = vand.u32 %v965, 4294901760
      %v967 = vsub.f32 %v965, %v966
      %v968 = vand.u32 %v967, 4294901760
      %969 = vmatmul.mubr.f32.gmra.mrb[0].mxu0 %v968
      %v970 = vpop.f32.mrb[0].mxu0
      %v971 = vadd.f32 0.0, %v970
      %v972 = vpop.f32.mrb[0].mxu0
      %v973 = vand.u32 %v347, 4294901760
      %v974 = vsub.f32 %v347, %v973
      %v975 = vand.u32 %v974, 4294901760
      %v976 = vsub.f32 %v974, %v975
      %v977 = vand.u32 %v976, 4294901760
      %978 = vmatprep.mubr.f32.mxu0 %v977
      %v979 = vand.u32 %v183, 4294901760
      %v980 = vsub.f32 %v183, %v979
      %v981 = vand.u32 %v980, 4294901760
      %v982 = vsub.f32 %v980, %v981
      %v983 = vand.u32 %v982, 4294901760
      %984 = vmatmul.mubr.f32.gmra.mrb[0].mxu0 %v983
      %v985 = vpop.f32.mrb[0].mxu0
      %v986 = vadd.f32 0.0, %v985
      %v987 = vpop.f32.mrb[0].mxu0
      %v988 = vand.u32 %v350, 4294901760
      %v989 = vsub.f32 %v350, %v988
      %v990 = vand.u32 %v989, 4294901760
      %v991 = vsub.f32 %v989, %v990
      %v992 = vand.u32 %v991, 4294901760
      %993 = vmatprep.mubr.f32.mxu0 %v992
      %v994 = vand.u32 %v185, 4294901760
      %v995 = vsub.f32 %v185, %v994
      %v996 = vand.u32 %v995, 4294901760
      %v997 = vsub.f32 %v995, %v996
      %v998 = vand.u32 %v997, 4294901760
      %999 = vmatmul.mubr.f32.gmra.mrb[0].mxu0 %v998
      %v1000 = vpop.f32.mrb[0].mxu0
      %v1001 = vadd.f32 0.0, %v1000
      %v1002 = vpop.f32.mrb[0].mxu0
      %v1003 = vand.u32 %v353, 4294901760
      %v1004 = vsub.f32 %v353, %v1003
      %v1005 = vand.u32 %v1004, 4294901760
      %v1006 = vsub.f32 %v1004, %v1005
      %v1007 = vand.u32 %v1006, 4294901760
      %1008 = vmatprep.mubr.f32.mxu0 %v1007
      %v1009 = vand.u32 %v187, 4294901760
      %v1010 = vsub.f32 %v187, %v1009
      %v1011 = vand.u32 %v1010, 4294901760
      %v1012 = vsub.f32 %v1010, %v1011
      %v1013 = vand.u32 %v1012, 4294901760
      %1014 = vmatmul.mubr.f32.gmra.mrb[0].mxu0 %v1013
      %v1015 = vpop.f32.mrb[0].mxu0
      %v1016 = vadd.f32 0.0, %v1015
      %v1017 = vpop.f32.mrb[0].mxu0
      %v1018 = vand.u32 %v356, 4294901760
      %v1019 = vsub.f32 %v356, %v1018
      %v1020 = vand.u32 %v1019, 4294901760
      %v1021 = vsub.f32 %v1019, %v1020
      %v1022 = vand.u32 %v1021, 4294901760
      %1023 = vmatprep.mubr.f32.mxu0 %v1022
      %v1024 = vand.u32 %v189, 4294901760
      %v1025 = vsub.f32 %v189, %v1024
      %v1026 = vand.u32 %v1025, 4294901760
      %v1027 = vsub.f32 %v1025, %v1026
      %v1028 = vand.u32 %v1027, 4294901760
      %1029 = vmatmul.mubr.f32.gmra.mrb[0].mxu0 %v1028
      %v1030 = vpop.f32.mrb[0].mxu0
      %v1031 = vadd.f32 0.0, %v1030
      %v1032 = vpop.f32.mrb[0].mxu0
      %v1033 = vand.u32 %v359, 4294901760
      %v1034 = vsub.f32 %v359, %v1033
      %v1035 = vand.u32 %v1034, 4294901760
      %v1036 = vsub.f32 %v1034, %v1035
      %v1037 = vand.u32 %v1036, 4294901760
      %1038 = vmatprep.mubr.f32.mxu0 %v1037
      %v1039 = vand.u32 %v191, 4294901760
      %v1040 = vsub.f32 %v191, %v1039
      %v1041 = vand.u32 %v1040, 4294901760
      %v1042 = vsub.f32 %v1040, %v1041
      %v1043 = vand.u32 %v1042, 4294901760
      %1044 = vmatmul.mubr.f32.gmra.mrb[0].mxu0 %v1043
      %v1045 = vpop.f32.mrb[0].mxu0
      %v1046 = vadd.f32 0.0, %v1045
      %v1047 = vpop.f32.mrb[0].mxu0
      %v1048 = vand.u32 %v362, 4294901760
      %v1049 = vsub.f32 %v362, %v1048
      %v1050 = vand.u32 %v1049, 4294901760
      %v1051 = vsub.f32 %v1049, %v1050
      %v1052 = vand.u32 %v1051, 4294901760
      %1053 = vmatprep.mubr.f32.mxu0 %v1052
      %v1054 = vand.u32 %v193, 4294901760
      %v1055 = vsub.f32 %v193, %v1054
      %v1056 = vand.u32 %v1055, 4294901760
      %v1057 = vsub.f32 %v1055, %v1056
      %v1058 = vand.u32 %v1057, 4294901760
      %1059 = vmatmul.mubr.f32.gmra.mrb[0].mxu0 %v1058
      %v1060 = vpop.f32.mrb[0].mxu0
      %v1061 = vadd.f32 0.0, %v1060
      %v1062 = vpop.f32.mrb[0].mxu0
      %v1063 = vand.u32 %v365, 4294901760
      %v1064 = vsub.f32 %v365, %v1063
      %v1065 = vand.u32 %v1064, 4294901760
      %v1066 = vsub.f32 %v1064, %v1065
      %v1067 = vand.u32 %v1066, 4294901760
      %1068 = vmatprep.mubr.f32.mxu0 %v1067
      %v1069 = vand.u32 %v195, 4294901760
      %v1070 = vsub.f32 %v195, %v1069
      %v1071 = vand.u32 %v1070, 4294901760
      %v1072 = vsub.f32 %v1070, %v1071
      %v1073 = vand.u32 %v1072, 4294901760
      %1074 = vmatmul.mubr.f32.gmra.mrb[0].mxu0 %v1073
      %v1075 = vpop.f32.mrb[0].mxu0
      %v1076 = vadd.f32 0.0, %v1075
      %v1077 = vpop.f32.mrb[0].mxu0
      %v1078 = vand.u32 %v368, 4294901760
      %v1079 = vsub.f32 %v368, %v1078
      %v1080 = vand.u32 %v1079, 4294901760
      %v1081 = vsub.f32 %v1079, %v1080
      %v1082 = vand.u32 %v1081, 4294901760
      %1083 = vmatprep.mubr.f32.mxu0 %v1082
      %v1084 = vand.u32 %v197, 4294901760
      %v1085 = vsub.f32 %v197, %v1084
      %v1086 = vand.u32 %v1085, 4294901760
      %v1087 = vsub.f32 %v1085, %v1086
      %v1088 = vand.u32 %v1087, 4294901760
      %1089 = vmatmul.mubr.f32.gmra.mrb[0].mxu0 %v1088
      %v1090 = vpop.f32.mrb[0].mxu0
      %v1091 = vadd.f32 0.0, %v1090
      %v1092 = vpop.f32.mrb[0].mxu0
      %v1093 = vand.u32 %v371, 4294901760
      %v1094 = vsub.f32 %v371, %v1093
      %v1095 = vand.u32 %v1094, 4294901760
      %v1096 = vsub.f32 %v1094, %v1095
      %v1097 = vand.u32 %v1096, 4294901760
      %1098 = vmatprep.mubr.f32.mxu0 %v1097
      %v1099 = vand.u32 %v199, 4294901760
      %v1100 = vsub.f32 %v199, %v1099
      %v1101 = vand.u32 %v1100, 4294901760
      %v1102 = vsub.f32 %v1100, %v1101
      %v1103 = vand.u32 %v1102, 4294901760
      %1104 = vmatmul.mubr.f32.gmra.mrb[0].mxu0 %v1103
      %v1105 = vpop.f32.mrb[0].mxu0
      %v1106 = vadd.f32 0.0, %v1105
      %v1107 = vpop.f32.mrb[0].mxu0
      %v1108 = vand.u32 %v374, 4294901760
      %v1109 = vsub.f32 %v374, %v1108
      %v1110 = vand.u32 %v1109, 4294901760
      %v1111 = vsub.f32 %v1109, %v1110
      %v1112 = vand.u32 %v1111, 4294901760
      %1113 = vmatprep.mubr.f32.mxu0 %v1112
      %v1114 = vand.u32 %v201, 4294901760
      %v1115 = vsub.f32 %v201, %v1114
      %v1116 = vand.u32 %v1115, 4294901760
      %v1117 = vsub.f32 %v1115, %v1116
      %v1118 = vand.u32 %v1117, 4294901760
      %1119 = vmatmul.mubr.f32.gmra.mrb[0].mxu0 %v1118
      %v1120 = vpop.f32.mrb[0].mxu0
      %v1121 = vadd.f32 0.0, %v1120
      %v1122 = vpop.f32.mrb[0].mxu0
      %v1123 = vand.u32 %v377, 4294901760
      %v1124 = vsub.f32 %v377, %v1123
      %v1125 = vand.u32 %v1124, 4294901760
      %v1126 = vsub.f32 %v1124, %v1125
      %v1127 = vand.u32 %v1126, 4294901760
      %1128 = vmatprep.mubr.f32.mxu0 %v1127
      %v1129 = vand.u32 %v203, 4294901760
      %v1130 = vsub.f32 %v203, %v1129
      %v1131 = vand.u32 %v1130, 4294901760
      %v1132 = vsub.f32 %v1130, %v1131
      %v1133 = vand.u32 %v1132, 4294901760
      %1134 = vmatmul.mubr.f32.gmra.mrb[0].mxu0 %v1133
      %v1135 = vpop.f32.mrb[0].mxu0
      %v1136 = vadd.f32 0.0, %v1135
      %v1137 = vpop.f32.mrb[0].mxu0
      %v1138 = vand.u32 %v380, 4294901760
      %v1139 = vsub.f32 %v380, %v1138
      %v1140 = vand.u32 %v1139, 4294901760
      %v1141 = vsub.f32 %v1139, %v1140
      %v1142 = vand.u32 %v1141, 4294901760
      %1143 = vmatprep.mubr.f32.mxu0 %v1142
      %v1144 = vand.u32 %v205, 4294901760
      %v1145 = vsub.f32 %v205, %v1144
      %v1146 = vand.u32 %v1145, 4294901760
      %v1147 = vsub.f32 %v1145, %v1146
      %v1148 = vand.u32 %v1147, 4294901760
      %1149 = vmatmul.mubr.f32.gmra.mrb[0].mxu0 %v1148
      %v1150 = vpop.f32.mrb[0].mxu0
      %v1151 = vadd.f32 0.0, %v1150
      %v1152 = vpop.f32.mrb[0].mxu0
      %v1153 = vand.u32 %v383, 4294901760
      %v1154 = vsub.f32 %v383, %v1153
      %v1155 = vand.u32 %v1154, 4294901760
      %v1156 = vsub.f32 %v1154, %v1155
      %v1157 = vand.u32 %v1156, 4294901760
      %1158 = vmatprep.mubr.f32.mxu0 %v1157
      %v1159 = vand.u32 %v207, 4294901760
      %v1160 = vsub.f32 %v207, %v1159
      %v1161 = vand.u32 %v1160, 4294901760
      %v1162 = vsub.f32 %v1160, %v1161
      %v1163 = vand.u32 %v1162, 4294901760
      %1164 = vmatmul.mubr.f32.gmra.mrb[0].mxu0 %v1163
      %v1165 = vpop.f32.mrb[0].mxu0
      %v1166 = vadd.f32 0.0, %v1165
      %v1167 = vpop.f32.mrb[0].mxu0
      %v1168 = vand.u32 %v386, 4294901760
      %v1169 = vsub.f32 %v386, %v1168
      %v1170 = vand.u32 %v1169, 4294901760
      %v1171 = vsub.f32 %v1169, %v1170
      %v1172 = vand.u32 %v1171, 4294901760
      %1173 = vmatprep.mubr.f32.mxu0 %v1172
      %v1174 = vand.u32 %v209, 4294901760
      %v1175 = vsub.f32 %v209, %v1174
      %v1176 = vand.u32 %v1175, 4294901760
      %v1177 = vsub.f32 %v1175, %v1176
      %v1178 = vand.u32 %v1177, 4294901760
      %1179 = vmatmul.mubr.f32.gmra.mrb[0].mxu0 %v1178
      %v1180 = vpop.f32.mrb[0].mxu0
      %v1181 = vadd.f32 0.0, %v1180
      %v1182 = vpop.f32.mrb[0].mxu0
      %v1183 = vand.u32 %v389, 4294901760
      %v1184 = vsub.f32 %v389, %v1183
      %v1185 = vand.u32 %v1184, 4294901760
      %v1186 = vsub.f32 %v1184, %v1185
      %v1187 = vand.u32 %v1186, 4294901760
      %1188 = vmatprep.mubr.f32.mxu0 %v1187
      %v1189 = vand.u32 %v211, 4294901760
      %v1190 = vsub.f32 %v211, %v1189
      %v1191 = vand.u32 %v1190, 4294901760
      %v1192 = vsub.f32 %v1190, %v1191
      %v1193 = vand.u32 %v1192, 4294901760
      %1194 = vmatmul.mubr.f32.gmra.mrb[0].mxu0 %v1193
      %v1195 = vpop.f32.mrb[0].mxu0
      %v1196 = vadd.f32 0.0, %v1195
      %v1197 = vpop.f32.mrb[0].mxu0
      %v1198 = vand.u32 %v392, 4294901760
      %v1199 = vsub.f32 %v392, %v1198
      %v1200 = vand.u32 %v1199, 4294901760
      %v1201 = vsub.f32 %v1199, %v1200
      %v1202 = vand.u32 %v1201, 4294901760
      %1203 = vmatprep.mubr.f32.mxu0 %v1202
      %v1204 = vand.u32 %v213, 4294901760
      %v1205 = vsub.f32 %v213, %v1204
      %v1206 = vand.u32 %v1205, 4294901760
      %v1207 = vsub.f32 %v1205, %v1206
      %v1208 = vand.u32 %v1207, 4294901760
      %1209 = vmatmul.mubr.f32.gmra.mrb[0].mxu0 %v1208
      %v1210 = vpop.f32.mrb[0].mxu0
      %v1211 = vadd.f32 0.0, %v1210
      %v1212 = vpop.f32.mrb[0].mxu0
      %v1213 = vand.u32 %v395, 4294901760
      %v1214 = vsub.f32 %v395, %v1213
      %v1215 = vand.u32 %v1214, 4294901760
      %v1216 = vsub.f32 %v1214, %v1215
      %v1217 = vand.u32 %v1216, 4294901760
      %1218 = vmatprep.mubr.f32.mxu0 %v1217
      %v1219 = vand.u32 %v215, 4294901760
      %v1220 = vsub.f32 %v215, %v1219
      %v1221 = vand.u32 %v1220, 4294901760
      %v1222 = vsub.f32 %v1220, %v1221
      %v1223 = vand.u32 %v1222, 4294901760
      %1224 = vmatmul.mubr.f32.gmra.mrb[0].mxu0 %v1223
      %v1225 = vpop.f32.mrb[0].mxu0
      %v1226 = vadd.f32 0.0, %v1225
      %v1227 = vpop.f32.mrb[0].mxu0
      %v1228 = vand.u32 %v398, 4294901760
      %v1229 = vsub.f32 %v398, %v1228
      %v1230 = vand.u32 %v1229, 4294901760
      %v1231 = vsub.f32 %v1229, %v1230
      %v1232 = vand.u32 %v1231, 4294901760
      %1233 = vmatprep.mubr.f32.mxu0 %v1232
      %v1234 = vand.u32 %v217, 4294901760
      %v1235 = vsub.f32 %v217, %v1234
      %v1236 = vand.u32 %v1235, 4294901760
      %v1237 = vsub.f32 %v1235, %v1236
      %v1238 = vand.u32 %v1237, 4294901760
      %1239 = vmatmul.mubr.f32.gmra.mrb[0].mxu0 %v1238
      %v1240 = vpop.f32.mrb[0].mxu0
      %v1241 = vadd.f32 0.0, %v1240
      %v1242 = vpop.f32.mrb[0].mxu0
      %v1243 = vand.u32 %v401, 4294901760
      %v1244 = vsub.f32 %v401, %v1243
      %v1245 = vand.u32 %v1244, 4294901760
      %v1246 = vsub.f32 %v1244, %v1245
      %v1247 = vand.u32 %v1246, 4294901760
      %1248 = vmatprep.mubr.f32.mxu0 %v1247
      %v1249 = vand.u32 %v219, 4294901760
      %v1250 = vsub.f32 %v219, %v1249
      %v1251 = vand.u32 %v1250, 4294901760
      %v1252 = vsub.f32 %v1250, %v1251
      %v1253 = vand.u32 %v1252, 4294901760
      %1254 = vmatmul.mubr.f32.gmra.mrb[0].mxu0 %v1253
      %v1255 = vpop.f32.mrb[0].mxu0
      %v1256 = vadd.f32 0.0, %v1255
      %v1257 = vpop.f32.mrb[0].mxu0
      %v1258 = vand.u32 %v404, 4294901760
      %v1259 = vsub.f32 %v404, %v1258
      %v1260 = vand.u32 %v1259, 4294901760
      %v1261 = vsub.f32 %v1259, %v1260
      %v1262 = vand.u32 %v1261, 4294901760
      %1263 = vmatprep.mubr.f32.mxu0 %v1262
      %v1264 = vand.u32 %v221, 4294901760
      %v1265 = vsub.f32 %v221, %v1264
      %v1266 = vand.u32 %v1265, 4294901760
      %v1267 = vsub.f32 %v1265, %v1266
      %v1268 = vand.u32 %v1267, 4294901760
      %1269 = vmatmul.mubr.f32.gmra.mrb[0].mxu0 %v1268
      %v1270 = vpop.f32.mrb[0].mxu0
      %v1271 = vadd.f32 0.0, %v1270
      %v1272 = vpop.f32.mrb[0].mxu0
      %v1273 = vand.u32 %v407, 4294901760
      %v1274 = vsub.f32 %v407, %v1273
      %v1275 = vand.u32 %v1274, 4294901760
      %v1276 = vsub.f32 %v1274, %v1275
      %v1277 = vand.u32 %v1276, 4294901760
      %1278 = vmatprep.mubr.f32.mxu0 %v1277
      %v1279 = vand.u32 %v223, 4294901760
      %v1280 = vsub.f32 %v223, %v1279
      %v1281 = vand.u32 %v1280, 4294901760
      %v1282 = vsub.f32 %v1280, %v1281
      %v1283 = vand.u32 %v1282, 4294901760
      %1284 = vmatmul.mubr.f32.gmra.mrb[0].mxu0 %v1283
      %v1285 = vpop.f32.mrb[0].mxu0
      %v1286 = vadd.f32 0.0, %v1285
      %v1287 = vpop.f32.mrb[0].mxu0
      %v1288 = vand.u32 %v410, 4294901760
      %v1289 = vsub.f32 %v410, %v1288
      %v1290 = vand.u32 %v1289, 4294901760
      %v1291 = vsub.f32 %v1289, %v1290
      %v1292 = vand.u32 %v1291, 4294901760
      %1293 = vmatprep.mubr.f32.mxu0 %v1292
      %v1294 = vand.u32 %v225, 4294901760
      %v1295 = vsub.f32 %v225, %v1294
      %v1296 = vand.u32 %v1295, 4294901760
      %v1297 = vsub.f32 %v1295, %v1296
      %v1298 = vand.u32 %v1297, 4294901760
      %1299 = vmatmul.mubr.f32.gmra.mrb[0].mxu0 %v1298
      %v1300 = vpop.f32.mrb[0].mxu0
      %v1301 = vadd.f32 0.0, %v1300
      %v1302 = vpop.f32.mrb[0].mxu0
      %v1303 = vand.u32 %v413, 4294901760
      %v1304 = vsub.f32 %v413, %v1303
      %v1305 = vand.u32 %v1304, 4294901760
      %v1306 = vsub.f32 %v1304, %v1305
      %v1307 = vand.u32 %v1306, 4294901760
      %1308 = vmatprep.mubr.f32.mxu0 %v1307
      %v1309 = vand.u32 %v227, 4294901760
      %v1310 = vsub.f32 %v227, %v1309
      %v1311 = vand.u32 %v1310, 4294901760
      %v1312 = vsub.f32 %v1310, %v1311
      %v1313 = vand.u32 %v1312, 4294901760
      %1314 = vmatmul.mubr.f32.gmra.mrb[0].mxu0 %v1313
      %v1315 = vpop.f32.mrb[0].mxu0
      %v1316 = vadd.f32 0.0, %v1315
      %v1317 = vpop.f32.mrb[0].mxu0
      %v1318 = vand.u32 %v416, 4294901760
      %v1319 = vsub.f32 %v416, %v1318
      %v1320 = vand.u32 %v1319, 4294901760
      %v1321 = vsub.f32 %v1319, %v1320
      %v1322 = vand.u32 %v1321, 4294901760
      %1323 = vmatprep.mubr.f32.mxu0 %v1322
      %v1324 = vand.u32 %v229, 4294901760
      %v1325 = vsub.f32 %v229, %v1324
      %v1326 = vand.u32 %v1325, 4294901760
      %v1327 = vsub.f32 %v1325, %v1326
      %v1328 = vand.u32 %v1327, 4294901760
      %1329 = vmatmul.mubr.f32.gmra.mrb[0].mxu0 %v1328
      %v1330 = vpop.f32.mrb[0].mxu0
      %v1331 = vadd.f32 0.0, %v1330
      %v1332 = vpop.f32.mrb[0].mxu0
      %v1333 = vand.u32 %v419, 4294901760
      %v1334 = vsub.f32 %v419, %v1333
      %v1335 = vand.u32 %v1334, 4294901760
      %v1336 = vsub.f32 %v1334, %v1335
      %v1337 = vand.u32 %v1336, 4294901760
      %1338 = vmatprep.mubr.f32.mxu0 %v1337
      %v1339 = vand.u32 %v231, 4294901760
      %v1340 = vsub.f32 %v231, %v1339
      %v1341 = vand.u32 %v1340, 4294901760
      %v1342 = vsub.f32 %v1340, %v1341
      %v1343 = vand.u32 %v1342, 4294901760
      %1344 = vmatmul.mubr.f32.gmra.mrb[0].mxu0 %v1343
      %v1345 = vpop.f32.mrb[0].mxu0
      %v1346 = vadd.f32 0.0, %v1345
      %v1347 = vpop.f32.mrb[0].mxu0
      %v1348 = vand.u32 %v422, 4294901760
      %v1349 = vsub.f32 %v422, %v1348
      %v1350 = vand.u32 %v1349, 4294901760
      %v1351 = vsub.f32 %v1349, %v1350
      %v1352 = vand.u32 %v1351, 4294901760
      %1353 = vmatprep.mubr.f32.mxu0 %v1352
      %v1354 = vand.u32 %v233, 4294901760
      %v1355 = vsub.f32 %v233, %v1354
      %v1356 = vand.u32 %v1355, 4294901760
      %v1357 = vsub.f32 %v1355, %v1356
      %v1358 = vand.u32 %v1357, 4294901760
      %1359 = vmatmul.mubr.f32.gmra.mrb[0].mxu0 %v1358
      %v1360 = vpop.f32.mrb[0].mxu0
      %v1361 = vadd.f32 0.0, %v1360
      %v1362 = vpop.f32.mrb[0].mxu0
      %v1363 = vand.u32 %v425, 4294901760
      %v1364 = vsub.f32 %v425, %v1363
      %v1365 = vand.u32 %v1364, 4294901760
      %v1366 = vsub.f32 %v1364, %v1365
      %v1367 = vand.u32 %v1366, 4294901760
      %1368 = vmatprep.mubr.f32.mxu0 %v1367
      %v1369 = vand.u32 %v235, 4294901760
      %v1370 = vsub.f32 %v235, %v1369
      %v1371 = vand.u32 %v1370, 4294901760
      %v1372 = vsub.f32 %v1370, %v1371
      %v1373 = vand.u32 %v1372, 4294901760
      %1374 = vmatmul.mubr.f32.gmra.mrb[0].mxu0 %v1373
      %v1375 = vpop.f32.mrb[0].mxu0
      %v1376 = vadd.f32 0.0, %v1375
      %v1377 = vpop.f32.mrb[0].mxu0
      %v1378 = vand.u32 %v428, 4294901760
      %v1379 = vsub.f32 %v428, %v1378
      %v1380 = vand.u32 %v1379, 4294901760
      %v1381 = vsub.f32 %v1379, %v1380
      %v1382 = vand.u32 %v1381, 4294901760
      %1383 = vmatprep.mubr.f32.mxu0 %v1382
      %v1384 = vand.u32 %v237, 4294901760
      %v1385 = vsub.f32 %v237, %v1384
      %v1386 = vand.u32 %v1385, 4294901760
      %v1387 = vsub.f32 %v1385, %v1386
      %v1388 = vand.u32 %v1387, 4294901760
      %1389 = vmatmul.mubr.f32.gmra.mrb[0].mxu0 %v1388
      %v1390 = vpop.f32.mrb[0].mxu0
      %v1391 = vadd.f32 0.0, %v1390
      %v1392 = vpop.f32.mrb[0].mxu0
      %v1393 = vand.u32 %v431, 4294901760
      %v1394 = vsub.f32 %v431, %v1393
      %v1395 = vand.u32 %v1394, 4294901760
      %v1396 = vsub.f32 %v1394, %v1395
      %v1397 = vand.u32 %v1396, 4294901760
      %1398 = vmatprep.mubr.f32.mxu0 %v1397
      %v1399 = vand.u32 %v239, 4294901760
      %v1400 = vsub.f32 %v239, %v1399
      %v1401 = vand.u32 %v1400, 4294901760
      %v1402 = vsub.f32 %v1400, %v1401
      %v1403 = vand.u32 %v1402, 4294901760
      %1404 = vmatmul.mubr.f32.gmra.mrb[0].mxu0 %v1403
      %v1405 = vpop.f32.mrb[0].mxu0
      %v1406 = vadd.f32 0.0, %v1405
      %v1407 = vpop.f32.mrb[0].mxu0
      %v1408 = vand.u32 %v434, 4294901760
      %v1409 = vsub.f32 %v434, %v1408
      %v1410 = vand.u32 %v1409, 4294901760
      %v1411 = vsub.f32 %v1409, %v1410
      %v1412 = vand.u32 %v1411, 4294901760
      %1413 = vmatprep.mubr.f32.mxu0 %v1412
      %v1414 = vand.u32 %v241, 4294901760
      %v1415 = vsub.f32 %v241, %v1414
      %v1416 = vand.u32 %v1415, 4294901760
      %v1417 = vsub.f32 %v1415, %v1416
      %v1418 = vand.u32 %v1417, 4294901760
      %1419 = vmatmul.mubr.f32.gmra.mrb[0].mxu0 %v1418
      %v1420 = vpop.f32.mrb[0].mxu0
      %v1421 = vadd.f32 0.0, %v1420
      %v1422 = vpop.f32.mrb[0].mxu0
      %v1423 = vand.u32 %v437, 4294901760
      %v1424 = vsub.f32 %v437, %v1423
      %v1425 = vand.u32 %v1424, 4294901760
      %v1426 = vsub.f32 %v1424, %v1425
      %v1427 = vand.u32 %v1426, 4294901760
      %1428 = vmatprep.mubr.f32.mxu0 %v1427
      %v1429 = vand.u32 %v243, 4294901760
      %v1430 = vsub.f32 %v243, %v1429
      %v1431 = vand.u32 %v1430, 4294901760
      %v1432 = vsub.f32 %v1430, %v1431
      %v1433 = vand.u32 %v1432, 4294901760
      %1434 = vmatmul.mubr.f32.gmra.mrb[0].mxu0 %v1433
      %v1435 = vpop.f32.mrb[0].mxu0
      %v1436 = vadd.f32 0.0, %v1435
      %v1437 = vpop.f32.mrb[0].mxu0
      %v1438 = vand.u32 %v440, 4294901760
      %v1439 = vsub.f32 %v440, %v1438
      %v1440 = vand.u32 %v1439, 4294901760
      %v1441 = vsub.f32 %v1439, %v1440
      %v1442 = vand.u32 %v1441, 4294901760
      %1443 = vmatprep.mubr.f32.mxu0 %v1442
      %v1444 = vand.u32 %v245, 4294901760
      %v1445 = vsub.f32 %v245, %v1444
      %v1446 = vand.u32 %v1445, 4294901760
      %v1447 = vsub.f32 %v1445, %v1446
      %v1448 = vand.u32 %v1447, 4294901760
      %1449 = vmatmul.mubr.f32.gmra.mrb[0].mxu0 %v1448
      %v1450 = vpop.f32.mrb[0].mxu0
      %v1451 = vadd.f32 0.0, %v1450
      %v1452 = vpop.f32.mrb[0].mxu0
      %v1453 = vand.u32 %v443, 4294901760
      %v1454 = vsub.f32 %v443, %v1453
      %v1455 = vand.u32 %v1454, 4294901760
      %v1456 = vsub.f32 %v1454, %v1455
      %v1457 = vand.u32 %v1456, 4294901760
      %1458 = vmatprep.mubr.f32.mxu0 %v1457
      %v1459 = vand.u32 %v247, 4294901760
      %v1460 = vsub.f32 %v247, %v1459
      %v1461 = vand.u32 %v1460, 4294901760
      %v1462 = vsub.f32 %v1460, %v1461
      %v1463 = vand.u32 %v1462, 4294901760
      %1464 = vmatmul.mubr.f32.gmra.mrb[0].mxu0 %v1463
      %v1465 = vpop.f32.mrb[0].mxu0
      %v1466 = vadd.f32 0.0, %v1465
      %v1467 = vpop.f32.mrb[0].mxu0
      %v1468 = vand.u32 %v446, 4294901760
      %v1469 = vsub.f32 %v446, %v1468
      %v1470 = vand.u32 %v1469, 4294901760
      %v1471 = vsub.f32 %v1469, %v1470
      %v1472 = vand.u32 %v1471, 4294901760
      %1473 = vmatprep.mubr.f32.mxu0 %v1472
      %v1474 = vand.u32 %v249, 4294901760
      %v1475 = vsub.f32 %v249, %v1474
      %v1476 = vand.u32 %v1475, 4294901760
      %v1477 = vsub.f32 %v1475, %v1476
      %v1478 = vand.u32 %v1477, 4294901760
      %1479 = vmatmul.mubr.f32.gmra.mrb[0].mxu0 %v1478
      %v1480 = vpop.f32.mrb[0].mxu0
      %v1481 = vadd.f32 0.0, %v1480
      %v1482 = vpop.f32.mrb[0].mxu0
      %v1483 = vand.u32 %v449, 4294901760
      %v1484 = vsub.f32 %v449, %v1483
      %v1485 = vand.u32 %v1484, 4294901760
      %v1486 = vsub.f32 %v1484, %v1485
      %v1487 = vand.u32 %v1486, 4294901760
      %1488 = vmatprep.mubr.f32.mxu0 %v1487
      %v1489 = vand.u32 %v251, 4294901760
      %v1490 = vsub.f32 %v251, %v1489
      %v1491 = vand.u32 %v1490, 4294901760
      %v1492 = vsub.f32 %v1490, %v1491
      %v1493 = vand.u32 %v1492, 4294901760
      %1494 = vmatmul.mubr.f32.gmra.mrb[0].mxu0 %v1493
      %v1495 = vpop.f32.mrb[0].mxu0
      %v1496 = vadd.f32 0.0, %v1495
      %v1497 = vpop.f32.mrb[0].mxu0
      %v1498 = vand.u32 %v452, 4294901760
      %v1499 = vsub.f32 %v452, %v1498
      %v1500 = vand.u32 %v1499, 4294901760
      %v1501 = vsub.f32 %v1499, %v1500
      %v1502 = vand.u32 %v1501, 4294901760
      %1503 = vmatprep.mubr.f32.mxu0 %v1502
      %v1504 = vand.u32 %v253, 4294901760
      %v1505 = vsub.f32 %v253, %v1504
      %v1506 = vand.u32 %v1505, 4294901760
      %v1507 = vsub.f32 %v1505, %v1506
      %v1508 = vand.u32 %v1507, 4294901760
      %1509 = vmatmul.mubr.f32.gmra.mrb[0].mxu0 %v1508
      %v1510 = vpop.f32.mrb[0].mxu0
      %v1511 = vadd.f32 0.0, %v1510
      %v1512 = vpop.f32.mrb[0].mxu0
      %1513 = vdwg.mxu0
      %1514 = vmatprep.subr.mxu0 0.0
      %1515 = vmatpush1.msra.mxu0 0.0
      %1516 = vmatprep.subr.mxu0 0.0
      %1517 = vmatpush1.msra.mxu0 0.0
      %1518 = vmatprep.subr.mxu0 0.0
      %1519 = vmatpush1.msra.mxu0 0.0
      %1520 = vmatprep.subr.mxu0 0.0
      %1521 = vmatpush1.msra.mxu0 0.0
      %1522 = vmatprep.subr.mxu0 0.0
      %1523 = vmatpush1.msra.mxu0 0.0
      %1524 = vmatprep.subr.mxu0 0.0
      %1525 = vmatpush1.msra.mxu0 0.0
      %1526 = vmatprep.subr.mxu0 0.0
      %1527 = vmatpush1.msra.mxu0 0.0
      %1528 = vmatprep.subr.mxu0 0.0
      %1529 = vmatpush1.msra.mxu0 0.0
      %1530 = vmatprep.subr.mxu0 0.0
      %1531 = vmatpush1.msra.mxu0 0.0
      %1532 = vmatprep.subr.mxu0 0.0
      %1533 = vmatpush1.msra.mxu0 0.0
      %1534 = vmatprep.subr.mxu0 0.0
      %1535 = vmatpush1.msra.mxu0 0.0
      %1536 = vmatprep.subr.mxu0 0.0
      %1537 = vmatpush1.msra.mxu0 0.0
      %1538 = vmatprep.subr.mxu0 0.0
      %1539 = vmatpush1.msra.mxu0 0.0
      %1540 = vmatprep.subr.mxu0 0.0
      %1541 = vmatpush1.msra.mxu0 0.0
      %1542 = vmatprep.subr.mxu0 0.0
      %1543 = vmatpush1.msra.mxu0 0.0
      %1544 = vmatprep.subr.mxu0 0.0
      %1545 = vmatpush1.msra.mxu0 0.0
      %1546 = vmatprep.subr.mxu0 0.0
      %1547 = vmatpush1.msra.mxu0 0.0
      %1548 = vmatprep.subr.mxu0 0.0
      %1549 = vmatpush1.msra.mxu0 0.0
      %1550 = vmatprep.subr.mxu0 0.0
      %1551 = vmatpush1.msra.mxu0 0.0
      %1552 = vmatprep.subr.mxu0 0.0
      %1553 = vmatpush1.msra.mxu0 0.0
      %1554 = vmatprep.subr.mxu0 0.0
      %1555 = vmatpush1.msra.mxu0 0.0
      %1556 = vmatprep.subr.mxu0 0.0
      %1557 = vmatpush1.msra.mxu0 0.0
      %1558 = vmatprep.subr.mxu0 0.0
      %1559 = vmatpush1.msra.mxu0 0.0
      %1560 = vmatprep.subr.mxu0 0.0
      %1561 = vmatpush1.msra.mxu0 0.0
      %1562 = vmatprep.subr.mxu0 0.0
      %v1563 = vand.u32 %v456, 4294901760
      %v1564 = vsub.f32 %v456, %v1563
      %v1565 = vand.u32 %v1564, 4294901760
      %v1566 = vsub.f32 %v1564, %v1565
      %v1567 = vand.u32 %v1566, 4294901760
      %1568 = vmatpush1.msra.mxu0 %v1567
      %1569 = vmatprep.subr.mxu0 0.0
      %1570 = vmatpush1.msra.mxu0 0.0
      %1571 = vmatprep.subr.mxu0 0.0
      %1572 = vmatpush1.msra.mxu0 0.0
      %1573 = vmatprep.subr.mxu0 0.0
      %1574 = vmatpush1.msra.mxu0 0.0
      %1575 = vmatprep.subr.mxu0 0.0
      %1576 = vmatpush1.msra.mxu0 0.0
      %1577 = vmatprep.subr.mxu0 0.0
      %1578 = vmatpush1.msra.mxu0 0.0
      %1579 = vmatprep.subr.mxu0 0.0
      %1580 = vmatpush1.msra.mxu0 0.0
      %1581 = vmatprep.subr.mxu0 0.0
      %1582 = vmatpush1.msra.mxu0 0.0
      %v1583 = vand.u32 %v257, 4294901760
      %1584 = vmatprep.mubr.f32.mxu0 %v1583
      %v1585 = vand.u32 %v123, 4294901760
      %1586 = vmatmul.mubr.f32.gmra.mrb[0].mxu0 %v1585
      %v1587 = vpop.f32.mrb[0].mxu0
      %v1588 = vadd.f32 %v536, %v1587
      %v1589 = vpop.f32.mrb[0].mxu0
      %v1590 = vand.u32 %v260, 4294901760
      %1591 = vmatprep.mubr.f32.mxu0 %v1590
      %v1592 = vand.u32 %v125, 4294901760
      %1593 = vmatmul.mubr.f32.gmra.mrb[0].mxu0 %v1592
      %v1594 = vpop.f32.mrb[0].mxu0
      %v1595 = vadd.f32 %v551, %v1594
      %v1596 = vpop.f32.mrb[0].mxu0
      %v1597 = vand.u32 %v263, 4294901760
      %1598 = vmatprep.mubr.f32.mxu0 %v1597
      %v1599 = vand.u32 %v127, 4294901760
      %1600 = vmatmul.mubr.f32.gmra.mrb[0].mxu0 %v1599
      %v1601 = vpop.f32.mrb[0].mxu0
      %v1602 = vadd.f32 %v566, %v1601
      %v1603 = vpop.f32.mrb[0].mxu0
      %v1604 = vand.u32 %v266, 4294901760
      %1605 = vmatprep.mubr.f32.mxu0 %v1604
      %v1606 = vand.u32 %v129, 4294901760
      %1607 = vmatmul.mubr.f32.gmra.mrb[0].mxu0 %v1606
      %v1608 = vpop.f32.mrb[0].mxu0
      %v1609 = vadd.f32 %v581, %v1608
      %v1610 = vpop.f32.mrb[0].mxu0
      %v1611 = vand.u32 %v269, 4294901760
      %1612 = vmatprep.mubr.f32.mxu0 %v1611
      %v1613 = vand.u32 %v131, 4294901760
      %1614 = vmatmul.mubr.f32.gmra.mrb[0].mxu0 %v1613
      %v1615 = vpop.f32.mrb[0].mxu0
      %v1616 = vadd.f32 %v596, %v1615
      %v1617 = vpop.f32.mrb[0].mxu0
      %v1618 = vand.u32 %v272, 4294901760
      %1619 = vmatprep.mubr.f32.mxu0 %v1618
      %v1620 = vand.u32 %v133, 4294901760
      %1621 = vmatmul.mubr.f32.gmra.mrb[0].mxu0 %v1620
      %v1622 = vpop.f32.mrb[0].mxu0
      %v1623 = vadd.f32 %v611, %v1622
      %v1624 = vpop.f32.mrb[0].mxu0
      %v1625 = vand.u32 %v275, 4294901760
      %1626 = vmatprep.mubr.f32.mxu0 %v1625
      %v1627 = vand.u32 %v135, 4294901760
      %1628 = vmatmul.mubr.f32.gmra.mrb[0].mxu0 %v1627
      %v1629 = vpop.f32.mrb[0].mxu0
      %v1630 = vadd.f32 %v626, %v1629
      %v1631 = vpop.f32.mrb[0].mxu0
      %v1632 = vand.u32 %v278, 4294901760
      %1633 = vmatprep.mubr.f32.mxu0 %v1632
      %v1634 = vand.u32 %v137, 4294901760
      %1635 = vmatmul.mubr.f32.gmra.mrb[0].mxu0 %v1634
      %v1636 = vpop.f32.mrb[0].mxu0
      %v1637 = vadd.f32 %v641, %v1636
      %v1638 = vpop.f32.mrb[0].mxu0
      %v1639 = vand.u32 %v281, 4294901760
      %1640 = vmatprep.mubr.f32.mxu0 %v1639
      %v1641 = vand.u32 %v139, 4294901760
      %1642 = vmatmul.mubr.f32.gmra.mrb[0].mxu0 %v1641
      %v1643 = vpop.f32.mrb[0].mxu0
      %v1644 = vadd.f32 %v656, %v1643
      %v1645 = vpop.f32.mrb[0].mxu0
      %v1646 = vand.u32 %v284, 4294901760
      %1647 = vmatprep.mubr.f32.mxu0 %v1646
      %v1648 = vand.u32 %v141, 4294901760
      %1649 = vmatmul.mubr.f32.gmra.mrb[0].mxu0 %v1648
      %v1650 = vpop.f32.mrb[0].mxu0
      %v1651 = vadd.f32 %v671, %v1650
      %v1652 = vpop.f32.mrb[0].mxu0
      %v1653 = vand.u32 %v287, 4294901760
      %1654 = vmatprep.mubr.f32.mxu0 %v1653
      %v1655 = vand.u32 %v143, 4294901760
      %1656 = vmatmul.mubr.f32.gmra.mrb[0].mxu0 %v1655
      %v1657 = vpop.f32.mrb[0].mxu0
      %v1658 = vadd.f32 %v686, %v1657
      %v1659 = vpop.f32.mrb[0].mxu0
      %v1660 = vand.u32 %v290, 4294901760
      %1661 = vmatprep.mubr.f32.mxu0 %v1660
      %v1662 = vand.u32 %v145, 4294901760
      %1663 = vmatmul.mubr.f32.gmra.mrb[0].mxu0 %v1662
      %v1664 = vpop.f32.mrb[0].mxu0
      %v1665 = vadd.f32 %v701, %v1664
      %v1666 = vpop.f32.mrb[0].mxu0
      %v1667 = vand.u32 %v293, 4294901760
      %1668 = vmatprep.mubr.f32.mxu0 %v1667
      %v1669 = vand.u32 %v147, 4294901760
      %1670 = vmatmul.mubr.f32.gmra.mrb[0].mxu0 %v1669
      %v1671 = vpop.f32.mrb[0].mxu0
      %v1672 = vadd.f32 %v716, %v1671
      %v1673 = vpop.f32.mrb[0].mxu0
      %v1674 = vand.u32 %v296, 4294901760
      %1675 = vmatprep.mubr.f32.mxu0 %v1674
      %v1676 = vand.u32 %v149, 4294901760
      %1677 = vmatmul.mubr.f32.gmra.mrb[0].mxu0 %v1676
      %v1678 = vpop.f32.mrb[0].mxu0
      %v1679 = vadd.f32 %v731, %v1678
      %v1680 = vpop.f32.mrb[0].mxu0
      %v1681 = vand.u32 %v299, 4294901760
      %1682 = vmatprep.mubr.f32.mxu0 %v1681
      %v1683 = vand.u32 %v151, 4294901760
      %1684 = vmatmul.mubr.f32.gmra.mrb[0].mxu0 %v1683
      %v1685 = vpop.f32.mrb[0].mxu0
      %v1686 = vadd.f32 %v746, %v1685
      %v1687 = vpop.f32.mrb[0].mxu0
      %v1688 = vand.u32 %v302, 4294901760
      %1689 = vmatprep.mubr.f32.mxu0 %v1688
      %v1690 = vand.u32 %v153, 4294901760
      %1691 = vmatmul.mubr.f32.gmra.mrb[0].mxu0 %v1690
      %v1692 = vpop.f32.mrb[0].mxu0
      %v1693 = vadd.f32 %v761, %v1692
      %v1694 = vpop.f32.mrb[0].mxu0
      %v1695 = vand.u32 %v305, 4294901760
      %1696 = vmatprep.mubr.f32.mxu0 %v1695
      %v1697 = vand.u32 %v155, 4294901760
      %1698 = vmatmul.mubr.f32.gmra.mrb[0].mxu0 %v1697
      %v1699 = vpop.f32.mrb[0].mxu0
      %v1700 = vadd.f32 %v776, %v1699
      %v1701 = vpop.f32.mrb[0].mxu0
      %v1702 = vand.u32 %v308, 4294901760
      %1703 = vmatprep.mubr.f32.mxu0 %v1702
      %v1704 = vand.u32 %v157, 4294901760
      %1705 = vmatmul.mubr.f32.gmra.mrb[0].mxu0 %v1704
      %v1706 = vpop.f32.mrb[0].mxu0
      %v1707 = vadd.f32 %v791, %v1706
      %v1708 = vpop.f32.mrb[0].mxu0
      %v1709 = vand.u32 %v311, 4294901760
      %1710 = vmatprep.mubr.f32.mxu0 %v1709
      %v1711 = vand.u32 %v159, 4294901760
      %1712 = vmatmul.mubr.f32.gmra.mrb[0].mxu0 %v1711
      %v1713 = vpop.f32.mrb[0].mxu0
      %v1714 = vadd.f32 %v806, %v1713
      %v1715 = vpop.f32.mrb[0].mxu0
      %v1716 = vand.u32 %v314, 4294901760
      %1717 = vmatprep.mubr.f32.mxu0 %v1716
      %v1718 = vand.u32 %v161, 4294901760
      %1719 = vmatmul.mubr.f32.gmra.mrb[0].mxu0 %v1718
      %v1720 = vpop.f32.mrb[0].mxu0
      %v1721 = vadd.f32 %v821, %v1720
      %v1722 = vpop.f32.mrb[0].mxu0
      %v1723 = vand.u32 %v317, 4294901760
      %1724 = vmatprep.mubr.f32.mxu0 %v1723
      %v1725 = vand.u32 %v163, 4294901760
      %1726 = vmatmul.mubr.f32.gmra.mrb[0].mxu0 %v1725
      %v1727 = vpop.f32.mrb[0].mxu0
      %v1728 = vadd.f32 %v836, %v1727
      %v1729 = vpop.f32.mrb[0].mxu0
      %v1730 = vand.u32 %v320, 4294901760
      %1731 = vmatprep.mubr.f32.mxu0 %v1730
      %v1732 = vand.u32 %v165, 4294901760
      %1733 = vmatmul.mubr.f32.gmra.mrb[0].mxu0 %v1732
      %v1734 = vpop.f32.mrb[0].mxu0
      %v1735 = vadd.f32 %v851, %v1734
      %v1736 = vpop.f32.mrb[0].mxu0
      %v1737 = vand.u32 %v323, 4294901760
      %1738 = vmatprep.mubr.f32.mxu0 %v1737
      %v1739 = vand.u32 %v167, 4294901760
      %1740 = vmatmul.mubr.f32.gmra.mrb[0].mxu0 %v1739
      %v1741 = vpop.f32.mrb[0].mxu0
      %v1742 = vadd.f32 %v866, %v1741
      %v1743 = vpop.f32.mrb[0].mxu0
      %v1744 = vand.u32 %v326, 4294901760
      %1745 = vmatprep.mubr.f32.mxu0 %v1744
      %v1746 = vand.u32 %v169, 4294901760
      %1747 = vmatmul.mubr.f32.gmra.mrb[0].mxu0 %v1746
      %v1748 = vpop.f32.mrb[0].mxu0
      %v1749 = vadd.f32 %v881, %v1748
      %v1750 = vpop.f32.mrb[0].mxu0
      %v1751 = vand.u32 %v329, 4294901760
      %1752 = vmatprep.mubr.f32.mxu0 %v1751
      %v1753 = vand.u32 %v171, 4294901760
      %1754 = vmatmul.mubr.f32.gmra.mrb[0].mxu0 %v1753
      %v1755 = vpop.f32.mrb[0].mxu0
      %v1756 = vadd.f32 %v896, %v1755
      %v1757 = vpop.f32.mrb[0].mxu0
      %v1758 = vand.u32 %v332, 4294901760
      %1759 = vmatprep.mubr.f32.mxu0 %v1758
      %v1760 = vand.u32 %v173, 4294901760
      %1761 = vmatmul.mubr.f32.gmra.mrb[0].mxu0 %v1760
      %v1762 = vpop.f32.mrb[0].mxu0
      %v1763 = vadd.f32 %v911, %v1762
      %v1764 = vpop.f32.mrb[0].mxu0
      %v1765 = vand.u32 %v335, 4294901760
      %1766 = vmatprep.mubr.f32.mxu0 %v1765
      %v1767 = vand.u32 %v175, 4294901760
      %1768 = vmatmul.mubr.f32.gmra.mrb[0].mxu0 %v1767
      %v1769 = vpop.f32.mrb[0].mxu0
      %v1770 = vadd.f32 %v926, %v1769
      %v1771 = vpop.f32.mrb[0].mxu0
      %v1772 = vand.u32 %v338, 4294901760
      %1773 = vmatprep.mubr.f32.mxu0 %v1772
      %v1774 = vand.u32 %v177, 4294901760
      %1775 = vmatmul.mubr.f32.gmra.mrb[0].mxu0 %v1774
      %v1776 = vpop.f32.mrb[0].mxu0
      %v1777 = vadd.f32 %v941, %v1776
      %v1778 = vpop.f32.mrb[0].mxu0
      %v1779 = vand.u32 %v341, 4294901760
      %1780 = vmatprep.mubr.f32.mxu0 %v1779
      %v1781 = vand.u32 %v179, 4294901760
      %1782 = vmatmul.mubr.f32.gmra.mrb[0].mxu0 %v1781
      %v1783 = vpop.f32.mrb[0].mxu0
      %v1784 = vadd.f32 %v956, %v1783
      %v1785 = vpop.f32.mrb[0].mxu0
      %v1786 = vand.u32 %v344, 4294901760
      %1787 = vmatprep.mubr.f32.mxu0 %v1786
      %v1788 = vand.u32 %v181, 4294901760
      %1789 = vmatmul.mubr.f32.gmra.mrb[0].mxu0 %v1788
      %v1790 = vpop.f32.mrb[0].mxu0
      %v1791 = vadd.f32 %v971, %v1790
      %v1792 = vpop.f32.mrb[0].mxu0
      %v1793 = vand.u32 %v347, 4294901760
      %1794 = vmatprep.mubr.f32.mxu0 %v1793
      %v1795 = vand.u32 %v183, 4294901760
      %1796 = vmatmul.mubr.f32.gmra.mrb[0].mxu0 %v1795
      %v1797 = vpop.f32.mrb[0].mxu0
      %v1798 = vadd.f32 %v986, %v1797
      %v1799 = vpop.f32.mrb[0].mxu0
      %v1800 = vand.u32 %v350, 4294901760
      %1801 = vmatprep.mubr.f32.mxu0 %v1800
      %v1802 = vand.u32 %v185, 4294901760
      %1803 = vmatmul.mubr.f32.gmra.mrb[0].mxu0 %v1802
      %v1804 = vpop.f32.mrb[0].mxu0
      %v1805 = vadd.f32 %v1001, %v1804
      %v1806 = vpop.f32.mrb[0].mxu0
      %v1807 = vand.u32 %v353, 4294901760
      %1808 = vmatprep.mubr.f32.mxu0 %v1807
      %v1809 = vand.u32 %v187, 4294901760
      %1810 = vmatmul.mubr.f32.gmra.mrb[0].mxu0 %v1809
      %v1811 = vpop.f32.mrb[0].mxu0
      %v1812 = vadd.f32 %v1016, %v1811
      %v1813 = vpop.f32.mrb[0].mxu0
      %v1814 = vand.u32 %v356, 4294901760
      %1815 = vmatprep.mubr.f32.mxu0 %v1814
      %v1816 = vand.u32 %v189, 4294901760
      %1817 = vmatmul.mubr.f32.gmra.mrb[0].mxu0 %v1816
      %v1818 = vpop.f32.mrb[0].mxu0
      %v1819 = vadd.f32 %v1031, %v1818
      %v1820 = vpop.f32.mrb[0].mxu0
      %v1821 = vand.u32 %v359, 4294901760
      %1822 = vmatprep.mubr.f32.mxu0 %v1821
      %v1823 = vand.u32 %v191, 4294901760
      %1824 = vmatmul.mubr.f32.gmra.mrb[0].mxu0 %v1823
      %v1825 = vpop.f32.mrb[0].mxu0
      %v1826 = vadd.f32 %v1046, %v1825
      %v1827 = vpop.f32.mrb[0].mxu0
      %v1828 = vand.u32 %v362, 4294901760
      %1829 = vmatprep.mubr.f32.mxu0 %v1828
      %v1830 = vand.u32 %v193, 4294901760
      %1831 = vmatmul.mubr.f32.gmra.mrb[0].mxu0 %v1830
      %v1832 = vpop.f32.mrb[0].mxu0
      %v1833 = vadd.f32 %v1061, %v1832
      %v1834 = vpop.f32.mrb[0].mxu0
      %v1835 = vand.u32 %v365, 4294901760
      %1836 = vmatprep.mubr.f32.mxu0 %v1835
      %v1837 = vand.u32 %v195, 4294901760
      %1838 = vmatmul.mubr.f32.gmra.mrb[0].mxu0 %v1837
      %v1839 = vpop.f32.mrb[0].mxu0
      %v1840 = vadd.f32 %v1076, %v1839
      %v1841 = vpop.f32.mrb[0].mxu0
      %v1842 = vand.u32 %v368, 4294901760
      %1843 = vmatprep.mubr.f32.mxu0 %v1842
      %v1844 = vand.u32 %v197, 4294901760
      %1845 = vmatmul.mubr.f32.gmra.mrb[0].mxu0 %v1844
      %v1846 = vpop.f32.mrb[0].mxu0
      %v1847 = vadd.f32 %v1091, %v1846
      %v1848 = vpop.f32.mrb[0].mxu0
      %v1849 = vand.u32 %v371, 4294901760
      %1850 = vmatprep.mubr.f32.mxu0 %v1849
      %v1851 = vand.u32 %v199, 4294901760
      %1852 = vmatmul.mubr.f32.gmra.mrb[0].mxu0 %v1851
      %v1853 = vpop.f32.mrb[0].mxu0
      %v1854 = vadd.f32 %v1106, %v1853
      %v1855 = vpop.f32.mrb[0].mxu0
      %v1856 = vand.u32 %v374, 4294901760
      %1857 = vmatprep.mubr.f32.mxu0 %v1856
      %v1858 = vand.u32 %v201, 4294901760
      %1859 = vmatmul.mubr.f32.gmra.mrb[0].mxu0 %v1858
      %v1860 = vpop.f32.mrb[0].mxu0
      %v1861 = vadd.f32 %v1121, %v1860
      %v1862 = vpop.f32.mrb[0].mxu0
      %v1863 = vand.u32 %v377, 4294901760
      %1864 = vmatprep.mubr.f32.mxu0 %v1863
      %v1865 = vand.u32 %v203, 4294901760
      %1866 = vmatmul.mubr.f32.gmra.mrb[0].mxu0 %v1865
      %v1867 = vpop.f32.mrb[0].mxu0
      %v1868 = vadd.f32 %v1136, %v1867
      %v1869 = vpop.f32.mrb[0].mxu0
      %v1870 = vand.u32 %v380, 4294901760
      %1871 = vmatprep.mubr.f32.mxu0 %v1870
      %v1872 = vand.u32 %v205, 4294901760
      %1873 = vmatmul.mubr.f32.gmra.mrb[0].mxu0 %v1872
      %v1874 = vpop.f32.mrb[0].mxu0
      %v1875 = vadd.f32 %v1151, %v1874
      %v1876 = vpop.f32.mrb[0].mxu0
      %v1877 = vand.u32 %v383, 4294901760
      %1878 = vmatprep.mubr.f32.mxu0 %v1877
      %v1879 = vand.u32 %v207, 4294901760
      %1880 = vmatmul.mubr.f32.gmra.mrb[0].mxu0 %v1879
      %v1881 = vpop.f32.mrb[0].mxu0
      %v1882 = vadd.f32 %v1166, %v1881
      %v1883 = vpop.f32.mrb[0].mxu0
      %v1884 = vand.u32 %v386, 4294901760
      %1885 = vmatprep.mubr.f32.mxu0 %v1884
      %v1886 = vand.u32 %v209, 4294901760
      %1887 = vmatmul.mubr.f32.gmra.mrb[0].mxu0 %v1886
      %v1888 = vpop.f32.mrb[0].mxu0
      %v1889 = vadd.f32 %v1181, %v1888
      %v1890 = vpop.f32.mrb[0].mxu0
      %v1891 = vand.u32 %v389, 4294901760
      %1892 = vmatprep.mubr.f32.mxu0 %v1891
      %v1893 = vand.u32 %v211, 4294901760
      %1894 = vmatmul.mubr.f32.gmra.mrb[0].mxu0 %v1893
      %v1895 = vpop.f32.mrb[0].mxu0
      %v1896 = vadd.f32 %v1196, %v1895
      %v1897 = vpop.f32.mrb[0].mxu0
      %v1898 = vand.u32 %v392, 4294901760
      %1899 = vmatprep.mubr.f32.mxu0 %v1898
      %v1900 = vand.u32 %v213, 4294901760
      %1901 = vmatmul.mubr.f32.gmra.mrb[0].mxu0 %v1900
      %v1902 = vpop.f32.mrb[0].mxu0
      %v1903 = vadd.f32 %v1211, %v1902
      %v1904 = vpop.f32.mrb[0].mxu0
      %v1905 = vand.u32 %v395, 4294901760
      %1906 = vmatprep.mubr.f32.mxu0 %v1905
      %v1907 = vand.u32 %v215, 4294901760
      %1908 = vmatmul.mubr.f32.gmra.mrb[0].mxu0 %v1907
      %v1909 = vpop.f32.mrb[0].mxu0
      %v1910 = vadd.f32 %v1226, %v1909
      %v1911 = vpop.f32.mrb[0].mxu0
      %v1912 = vand.u32 %v398, 4294901760
      %1913 = vmatprep.mubr.f32.mxu0 %v1912
      %v1914 = vand.u32 %v217, 4294901760
      %1915 = vmatmul.mubr.f32.gmra.mrb[0].mxu0 %v1914
      %v1916 = vpop.f32.mrb[0].mxu0
      %v1917 = vadd.f32 %v1241, %v1916
      %v1918 = vpop.f32.mrb[0].mxu0
      %v1919 = vand.u32 %v401, 4294901760
      %1920 = vmatprep.mubr.f32.mxu0 %v1919
      %v1921 = vand.u32 %v219, 4294901760
      %1922 = vmatmul.mubr.f32.gmra.mrb[0].mxu0 %v1921
      %v1923 = vpop.f32.mrb[0].mxu0
      %v1924 = vadd.f32 %v1256, %v1923
      %v1925 = vpop.f32.mrb[0].mxu0
      %v1926 = vand.u32 %v404, 4294901760
      %1927 = vmatprep.mubr.f32.mxu0 %v1926
      %v1928 = vand.u32 %v221, 4294901760
      %1929 = vmatmul.mubr.f32.gmra.mrb[0].mxu0 %v1928
      %v1930 = vpop.f32.mrb[0].mxu0
      %v1931 = vadd.f32 %v1271, %v1930
      %v1932 = vpop.f32.mrb[0].mxu0
      %v1933 = vand.u32 %v407, 4294901760
      %1934 = vmatprep.mubr.f32.mxu0 %v1933
      %v1935 = vand.u32 %v223, 4294901760
      %1936 = vmatmul.mubr.f32.gmra.mrb[0].mxu0 %v1935
      %v1937 = vpop.f32.mrb[0].mxu0
      %v1938 = vadd.f32 %v1286, %v1937
      %v1939 = vpop.f32.mrb[0].mxu0
      %v1940 = vand.u32 %v410, 4294901760
      %1941 = vmatprep.mubr.f32.mxu0 %v1940
      %v1942 = vand.u32 %v225, 4294901760
      %1943 = vmatmul.mubr.f32.gmra.mrb[0].mxu0 %v1942
      %v1944 = vpop.f32.mrb[0].mxu0
      %v1945 = vadd.f32 %v1301, %v1944
      %v1946 = vpop.f32.mrb[0].mxu0
      %v1947 = vand.u32 %v413, 4294901760
      %1948 = vmatprep.mubr.f32.mxu0 %v1947
      %v1949 = vand.u32 %v227, 4294901760
      %1950 = vmatmul.mubr.f32.gmra.mrb[0].mxu0 %v1949
      %v1951 = vpop.f32.mrb[0].mxu0
      %v1952 = vadd.f32 %v1316, %v1951
      %v1953 = vpop.f32.mrb[0].mxu0
      %v1954 = vand.u32 %v416, 4294901760
      %1955 = vmatprep.mubr.f32.mxu0 %v1954
      %v1956 = vand.u32 %v229, 4294901760
      %1957 = vmatmul.mubr.f32.gmra.mrb[0].mxu0 %v1956
      %v1958 = vpop.f32.mrb[0].mxu0
      %v1959 = vadd.f32 %v1331, %v1958
      %v1960 = vpop.f32.mrb[0].mxu0
      %v1961 = vand.u32 %v419, 4294901760
      %1962 = vmatprep.mubr.f32.mxu0 %v1961
      %v1963 = vand.u32 %v231, 4294901760
      %1964 = vmatmul.mubr.f32.gmra.mrb[0].mxu0 %v1963
      %v1965 = vpop.f32.mrb[0].mxu0
      %v1966 = vadd.f32 %v1346, %v1965
      %v1967 = vpop.f32.mrb[0].mxu0
      %v1968 = vand.u32 %v422, 4294901760
      %1969 = vmatprep.mubr.f32.mxu0 %v1968
      %v1970 = vand.u32 %v233, 4294901760
      %1971 = vmatmul.mubr.f32.gmra.mrb[0].mxu0 %v1970
      %v1972 = vpop.f32.mrb[0].mxu0
      %v1973 = vadd.f32 %v1361, %v1972
      %v1974 = vpop.f32.mrb[0].mxu0
      %v1975 = vand.u32 %v425, 4294901760
      %1976 = vmatprep.mubr.f32.mxu0 %v1975
      %v1977 = vand.u32 %v235, 4294901760
      %1978 = vmatmul.mubr.f32.gmra.mrb[0].mxu0 %v1977
      %v1979 = vpop.f32.mrb[0].mxu0
      %v1980 = vadd.f32 %v1376, %v1979
      %v1981 = vpop.f32.mrb[0].mxu0
      %v1982 = vand.u32 %v428, 4294901760
      %1983 = vmatprep.mubr.f32.mxu0 %v1982
      %v1984 = vand.u32 %v237, 4294901760
      %1985 = vmatmul.mubr.f32.gmra.mrb[0].mxu0 %v1984
      %v1986 = vpop.f32.mrb[0].mxu0
      %v1987 = vadd.f32 %v1391, %v1986
      %v1988 = vpop.f32.mrb[0].mxu0
      %v1989 = vand.u32 %v431, 4294901760
      %1990 = vmatprep.mubr.f32.mxu0 %v1989
      %v1991 = vand.u32 %v239, 4294901760
      %1992 = vmatmul.mubr.f32.gmra.mrb[0].mxu0 %v1991
      %v1993 = vpop.f32.mrb[0].mxu0
      %v1994 = vadd.f32 %v1406, %v1993
      %v1995 = vpop.f32.mrb[0].mxu0
      %v1996 = vand.u32 %v434, 4294901760
      %1997 = vmatprep.mubr.f32.mxu0 %v1996
      %v1998 = vand.u32 %v241, 4294901760
      %1999 = vmatmul.mubr.f32.gmra.mrb[0].mxu0 %v1998
      %v2000 = vpop.f32.mrb[0].mxu0
      %v2001 = vadd.f32 %v1421, %v2000
      %v2002 = vpop.f32.mrb[0].mxu0
      %v2003 = vand.u32 %v437, 4294901760
      %2004 = vmatprep.mubr.f32.mxu0 %v2003
      %v2005 = vand.u32 %v243, 4294901760
      %2006 = vmatmul.mubr.f32.gmra.mrb[0].mxu0 %v2005
      %v2007 = vpop.f32.mrb[0].mxu0
      %v2008 = vadd.f32 %v1436, %v2007
      %v2009 = vpop.f32.mrb[0].mxu0
      %v2010 = vand.u32 %v440, 4294901760
      %2011 = vmatprep.mubr.f32.mxu0 %v2010
      %v2012 = vand.u32 %v245, 4294901760
      %2013 = vmatmul.mubr.f32.gmra.mrb[0].mxu0 %v2012
      %v2014 = vpop.f32.mrb[0].mxu0
      %v2015 = vadd.f32 %v1451, %v2014
      %v2016 = vpop.f32.mrb[0].mxu0
      %v2017 = vand.u32 %v443, 4294901760
      %2018 = vmatprep.mubr.f32.mxu0 %v2017
      %v2019 = vand.u32 %v247, 4294901760
      %2020 = vmatmul.mubr.f32.gmra.mrb[0].mxu0 %v2019
      %v2021 = vpop.f32.mrb[0].mxu0
      %v2022 = vadd.f32 %v1466, %v2021
      %v2023 = vpop.f32.mrb[0].mxu0
      %v2024 = vand.u32 %v446, 4294901760
      %2025 = vmatprep.mubr.f32.mxu0 %v2024
      %v2026 = vand.u32 %v249, 4294901760
      %2027 = vmatmul.mubr.f32.gmra.mrb[0].mxu0 %v2026
      %v2028 = vpop.f32.mrb[0].mxu0
      %v2029 = vadd.f32 %v1481, %v2028
      %v2030 = vpop.f32.mrb[0].mxu0
      %v2031 = vand.u32 %v449, 4294901760
      %2032 = vmatprep.mubr.f32.mxu0 %v2031
      %v2033 = vand.u32 %v251, 4294901760
      %2034 = vmatmul.mubr.f32.gmra.mrb[0].mxu0 %v2033
      %v2035 = vpop.f32.mrb[0].mxu0
      %v2036 = vadd.f32 %v1496, %v2035
      %v2037 = vpop.f32.mrb[0].mxu0
      %v2038 = vand.u32 %v452, 4294901760
      %2039 = vmatprep.mubr.f32.mxu0 %v2038
      %v2040 = vand.u32 %v253, 4294901760
      %2041 = vmatmul.mubr.f32.gmra.mrb[0].mxu0 %v2040
      %v2042 = vpop.f32.mrb[0].mxu0
      %v2043 = vadd.f32 %v1511, %v2042
      %v2044 = vpop.f32.mrb[0].mxu0
      %2045 = vdwg.mxu0
      %2046 = vmatprep.subr.mxu0 0.0
      %2047 = vmatpush1.msra.mxu0 0.0
      %2048 = vmatprep.subr.mxu0 0.0
      %2049 = vmatpush1.msra.mxu0 0.0
      %2050 = vmatprep.subr.mxu0 0.0
      %2051 = vmatpush1.msra.mxu0 0.0
      %2052 = vmatprep.subr.mxu0 0.0
      %2053 = vmatpush1.msra.mxu0 0.0
      %2054 = vmatprep.subr.mxu0 0.0
      %2055 = vmatpush1.msra.mxu0 0.0
      %2056 = vmatprep.subr.mxu0 0.0
      %2057 = vmatpush1.msra.mxu0 0.0
      %2058 = vmatprep.subr.mxu0 0.0
      %2059 = vmatpush1.msra.mxu0 0.0
      %2060 = vmatprep.subr.mxu0 0.0
      %2061 = vmatpush1.msra.mxu0 0.0
      %2062 = vmatprep.subr.mxu0 0.0
      %2063 = vmatpush1.msra.mxu0 0.0
      %2064 = vmatprep.subr.mxu0 0.0
      %2065 = vmatpush1.msra.mxu0 0.0
      %2066 = vmatprep.subr.mxu0 0.0
      %2067 = vmatpush1.msra.mxu0 0.0
      %2068 = vmatprep.subr.mxu0 0.0
      %2069 = vmatpush1.msra.mxu0 0.0
      %2070 = vmatprep.subr.mxu0 0.0
      %2071 = vmatpush1.msra.mxu0 0.0
      %2072 = vmatprep.subr.mxu0 0.0
      %2073 = vmatpush1.msra.mxu0 0.0
      %2074 = vmatprep.subr.mxu0 0.0
      %2075 = vmatpush1.msra.mxu0 0.0
      %2076 = vmatprep.subr.mxu0 0.0
      %2077 = vmatpush1.msra.mxu0 0.0
      %2078 = vmatprep.subr.mxu0 0.0
      %2079 = vmatpush1.msra.mxu0 0.0
      %2080 = vmatprep.subr.mxu0 0.0
      %2081 = vmatpush1.msra.mxu0 0.0
      %2082 = vmatprep.subr.mxu0 0.0
      %2083 = vmatpush1.msra.mxu0 0.0
      %2084 = vmatprep.subr.mxu0 0.0
      %2085 = vmatpush1.msra.mxu0 0.0
      %2086 = vmatprep.subr.mxu0 0.0
      %2087 = vmatpush1.msra.mxu0 0.0
      %2088 = vmatprep.subr.mxu0 0.0
      %2089 = vmatpush1.msra.mxu0 0.0
      %2090 = vmatprep.subr.mxu0 0.0
      %2091 = vmatpush1.msra.mxu0 0.0
      %2092 = vmatprep.subr.mxu0 0.0
      %2093 = vmatpush1.msra.mxu0 0.0
      %2094 = vmatprep.subr.mxu0 0.0
      %v2095 = vand.u32 %v456, 4294901760
      %v2096 = vsub.f32 %v456, %v2095
      %2097 = vmatpush1.msra.mxu0 %v2096
      %2098 = vmatprep.subr.mxu0 0.0
      %2099 = vmatpush1.msra.mxu0 0.0
      %2100 = vmatprep.subr.mxu0 0.0
      %2101 = vmatpush1.msra.mxu0 0.0
      %2102 = vmatprep.subr.mxu0 0.0
      %2103 = vmatpush1.msra.mxu0 0.0
      %2104 = vmatprep.subr.mxu0 0.0
      %2105 = vmatpush1.msra.mxu0 0.0
      %2106 = vmatprep.subr.mxu0 0.0
      %2107 = vmatpush1.msra.mxu0 0.0
      %2108 = vmatprep.subr.mxu0 0.0
      %2109 = vmatpush1.msra.mxu0 0.0
      %2110 = vmatprep.subr.mxu0 0.0
      %2111 = vmatpush1.msra.mxu0 0.0
      %v2112 = vand.u32 %v257, 4294901760
      %v2113 = vsub.f32 %v257, %v2112
      %2114 = vmatprep.mubr.f32.mxu0 %v2113
      %v2115 = vand.u32 %v123, 4294901760
      %v2116 = vsub.f32 %v123, %v2115
      %2117 = vmatmul.mubr.f32.gmra.mrb[0].mxu0 %v2116
      %v2118 = vpop.f32.mrb[0].mxu0
      %v2119 = vadd.f32 %v1588, %v2118
      %v2120 = vpop.f32.mrb[0].mxu0
      %v2121 = vand.u32 %v260, 4294901760
      %v2122 = vsub.f32 %v260, %v2121
      %2123 = vmatprep.mubr.f32.mxu0 %v2122
      %v2124 = vand.u32 %v125, 4294901760
      %v2125 = vsub.f32 %v125, %v2124
      %2126 = vmatmul.mubr.f32.gmra.mrb[0].mxu0 %v2125
      %v2127 = vpop.f32.mrb[0].mxu0
      %v2128 = vadd.f32 %v1595, %v2127
      %v2129 = vpop.f32.mrb[0].mxu0
      %v2130 = vand.u32 %v263, 4294901760
      %v2131 = vsub.f32 %v263, %v2130
      %2132 = vmatprep.mubr.f32.mxu0 %v2131
      %v2133 = vand.u32 %v127, 4294901760
      %v2134 = vsub.f32 %v127, %v2133
      %2135 = vmatmul.mubr.f32.gmra.mrb[0].mxu0 %v2134
      %v2136 = vpop.f32.mrb[0].mxu0
      %v2137 = vadd.f32 %v1602, %v2136
      %v2138 = vpop.f32.mrb[0].mxu0
      %v2139 = vand.u32 %v266, 4294901760
      %v2140 = vsub.f32 %v266, %v2139
      %2141 = vmatprep.mubr.f32.mxu0 %v2140
      %v2142 = vand.u32 %v129, 4294901760
      %v2143 = vsub.f32 %v129, %v2142
      %2144 = vmatmul.mubr.f32.gmra.mrb[0].mxu0 %v2143
      %v2145 = vpop.f32.mrb[0].mxu0
      %v2146 = vadd.f32 %v1609, %v2145
      %v2147 = vpop.f32.mrb[0].mxu0
      %v2148 = vand.u32 %v269, 4294901760
      %v2149 = vsub.f32 %v269, %v2148
      %2150 = vmatprep.mubr.f32.mxu0 %v2149
      %v2151 = vand.u32 %v131, 4294901760
      %v2152 = vsub.f32 %v131, %v2151
      %2153 = vmatmul.mubr.f32.gmra.mrb[0].mxu0 %v2152
      %v2154 = vpop.f32.mrb[0].mxu0
      %v2155 = vadd.f32 %v1616, %v2154
      %v2156 = vpop.f32.mrb[0].mxu0
      %v2157 = vand.u32 %v272, 4294901760
      %v2158 = vsub.f32 %v272, %v2157
      %2159 = vmatprep.mubr.f32.mxu0 %v2158
      %v2160 = vand.u32 %v133, 4294901760
      %v2161 = vsub.f32 %v133, %v2160
      %2162 = vmatmul.mubr.f32.gmra.mrb[0].mxu0 %v2161
      %v2163 = vpop.f32.mrb[0].mxu0
      %v2164 = vadd.f32 %v1623, %v2163
      %v2165 = vpop.f32.mrb[0].mxu0
      %v2166 = vand.u32 %v275, 4294901760
      %v2167 = vsub.f32 %v275, %v2166
      %2168 = vmatprep.mubr.f32.mxu0 %v2167
      %v2169 = vand.u32 %v135, 4294901760
      %v2170 = vsub.f32 %v135, %v2169
      %2171 = vmatmul.mubr.f32.gmra.mrb[0].mxu0 %v2170
      %v2172 = vpop.f32.mrb[0].mxu0
      %v2173 = vadd.f32 %v1630, %v2172
      %v2174 = vpop.f32.mrb[0].mxu0
      %v2175 = vand.u32 %v278, 4294901760
      %v2176 = vsub.f32 %v278, %v2175
      %2177 = vmatprep.mubr.f32.mxu0 %v2176
      %v2178 = vand.u32 %v137, 4294901760
      %v2179 = vsub.f32 %v137, %v2178
      %2180 = vmatmul.mubr.f32.gmra.mrb[0].mxu0 %v2179
      %v2181 = vpop.f32.mrb[0].mxu0
      %v2182 = vadd.f32 %v1637, %v2181
      %v2183 = vpop.f32.mrb[0].mxu0
      %v2184 = vand.u32 %v281, 4294901760
      %v2185 = vsub.f32 %v281, %v2184
      %2186 = vmatprep.mubr.f32.mxu0 %v2185
      %v2187 = vand.u32 %v139, 4294901760
      %v2188 = vsub.f32 %v139, %v2187
      %2189 = vmatmul.mubr.f32.gmra.mrb[0].mxu0 %v2188
      %v2190 = vpop.f32.mrb[0].mxu0
      %v2191 = vadd.f32 %v1644, %v2190
      %v2192 = vpop.f32.mrb[0].mxu0
      %v2193 = vand.u32 %v284, 4294901760
      %v2194 = vsub.f32 %v284, %v2193
      %2195 = vmatprep.mubr.f32.mxu0 %v2194
      %v2196 = vand.u32 %v141, 4294901760
      %v2197 = vsub.f32 %v141, %v2196
      %2198 = vmatmul.mubr.f32.gmra.mrb[0].mxu0 %v2197
      %v2199 = vpop.f32.mrb[0].mxu0
      %v2200 = vadd.f32 %v1651, %v2199
      %v2201 = vpop.f32.mrb[0].mxu0
      %v2202 = vand.u32 %v287, 4294901760
      %v2203 = vsub.f32 %v287, %v2202
      %2204 = vmatprep.mubr.f32.mxu0 %v2203
      %v2205 = vand.u32 %v143, 4294901760
      %v2206 = vsub.f32 %v143, %v2205
      %2207 = vmatmul.mubr.f32.gmra.mrb[0].mxu0 %v2206
      %v2208 = vpop.f32.mrb[0].mxu0
      %v2209 = vadd.f32 %v1658, %v2208
      %v2210 = vpop.f32.mrb[0].mxu0
      %v2211 = vand.u32 %v290, 4294901760
      %v2212 = vsub.f32 %v290, %v2211
      %2213 = vmatprep.mubr.f32.mxu0 %v2212
      %v2214 = vand.u32 %v145, 4294901760
      %v2215 = vsub.f32 %v145, %v2214
      %2216 = vmatmul.mubr.f32.gmra.mrb[0].mxu0 %v2215
      %v2217 = vpop.f32.mrb[0].mxu0
      %v2218 = vadd.f32 %v1665, %v2217
      %v2219 = vpop.f32.mrb[0].mxu0
      %v2220 = vand.u32 %v293, 4294901760
      %v2221 = vsub.f32 %v293, %v2220
      %2222 = vmatprep.mubr.f32.mxu0 %v2221
      %v2223 = vand.u32 %v147, 4294901760
      %v2224 = vsub.f32 %v147, %v2223
      %2225 = vmatmul.mubr.f32.gmra.mrb[0].mxu0 %v2224
      %v2226 = vpop.f32.mrb[0].mxu0
      %v2227 = vadd.f32 %v1672, %v2226
      %v2228 = vpop.f32.mrb[0].mxu0
      %v2229 = vand.u32 %v296, 4294901760
      %v2230 = vsub.f32 %v296, %v2229
      %2231 = vmatprep.mubr.f32.mxu0 %v2230
      %v2232 = vand.u32 %v149, 4294901760
      %v2233 = vsub.f32 %v149, %v2232
      %2234 = vmatmul.mubr.f32.gmra.mrb[0].mxu0 %v2233
      %v2235 = vpop.f32.mrb[0].mxu0
      %v2236 = vadd.f32 %v1679, %v2235
      %v2237 = vpop.f32.mrb[0].mxu0
      %v2238 = vand.u32 %v299, 4294901760
      %v2239 = vsub.f32 %v299, %v2238
      %2240 = vmatprep.mubr.f32.mxu0 %v2239
      %v2241 = vand.u32 %v151, 4294901760
      %v2242 = vsub.f32 %v151, %v2241
      %2243 = vmatmul.mubr.f32.gmra.mrb[0].mxu0 %v2242
      %v2244 = vpop.f32.mrb[0].mxu0
      %v2245 = vadd.f32 %v1686, %v2244
      %v2246 = vpop.f32.mrb[0].mxu0
      %v2247 = vand.u32 %v302, 4294901760
      %v2248 = vsub.f32 %v302, %v2247
      %2249 = vmatprep.mubr.f32.mxu0 %v2248
      %v2250 = vand.u32 %v153, 4294901760
      %v2251 = vsub.f32 %v153, %v2250
      %2252 = vmatmul.mubr.f32.gmra.mrb[0].mxu0 %v2251
      %v2253 = vpop.f32.mrb[0].mxu0
      %v2254 = vadd.f32 %v1693, %v2253
      %v2255 = vpop.f32.mrb[0].mxu0
      %v2256 = vand.u32 %v305, 4294901760
      %v2257 = vsub.f32 %v305, %v2256
      %2258 = vmatprep.mubr.f32.mxu0 %v2257
      %v2259 = vand.u32 %v155, 4294901760
      %v2260 = vsub.f32 %v155, %v2259
      %2261 = vmatmul.mubr.f32.gmra.mrb[0].mxu0 %v2260
      %v2262 = vpop.f32.mrb[0].mxu0
      %v2263 = vadd.f32 %v1700, %v2262
      %v2264 = vpop.f32.mrb[0].mxu0
      %v2265 = vand.u32 %v308, 4294901760
      %v2266 = vsub.f32 %v308, %v2265
      %2267 = vmatprep.mubr.f32.mxu0 %v2266
      %v2268 = vand.u32 %v157, 4294901760
      %v2269 = vsub.f32 %v157, %v2268
      %2270 = vmatmul.mubr.f32.gmra.mrb[0].mxu0 %v2269
      %v2271 = vpop.f32.mrb[0].mxu0
      %v2272 = vadd.f32 %v1707, %v2271
      %v2273 = vpop.f32.mrb[0].mxu0
      %v2274 = vand.u32 %v311, 4294901760
      %v2275 = vsub.f32 %v311, %v2274
      %2276 = vmatprep.mubr.f32.mxu0 %v2275
      %v2277 = vand.u32 %v159, 4294901760
      %v2278 = vsub.f32 %v159, %v2277
      %2279 = vmatmul.mubr.f32.gmra.mrb[0].mxu0 %v2278
      %v2280 = vpop.f32.mrb[0].mxu0
      %v2281 = vadd.f32 %v1714, %v2280
      %v2282 = vpop.f32.mrb[0].mxu0
      %v2283 = vand.u32 %v314, 4294901760
      %v2284 = vsub.f32 %v314, %v2283
      %2285 = vmatprep.mubr.f32.mxu0 %v2284
      %v2286 = vand.u32 %v161, 4294901760
      %v2287 = vsub.f32 %v161, %v2286
      %2288 = vmatmul.mubr.f32.gmra.mrb[0].mxu0 %v2287
      %v2289 = vpop.f32.mrb[0].mxu0
      %v2290 = vadd.f32 %v1721, %v2289
      %v2291 = vpop.f32.mrb[0].mxu0
      %v2292 = vand.u32 %v317, 4294901760
      %v2293 = vsub.f32 %v317, %v2292
      %2294 = vmatprep.mubr.f32.mxu0 %v2293
      %v2295 = vand.u32 %v163, 4294901760
      %v2296 = vsub.f32 %v163, %v2295
      %2297 = vmatmul.mubr.f32.gmra.mrb[0].mxu0 %v2296
      %v2298 = vpop.f32.mrb[0].mxu0
      %v2299 = vadd.f32 %v1728, %v2298
      %v2300 = vpop.f32.mrb[0].mxu0
      %v2301 = vand.u32 %v320, 4294901760
      %v2302 = vsub.f32 %v320, %v2301
      %2303 = vmatprep.mubr.f32.mxu0 %v2302
      %v2304 = vand.u32 %v165, 4294901760
      %v2305 = vsub.f32 %v165, %v2304
      %2306 = vmatmul.mubr.f32.gmra.mrb[0].mxu0 %v2305
      %v2307 = vpop.f32.mrb[0].mxu0
      %v2308 = vadd.f32 %v1735, %v2307
      %v2309 = vpop.f32.mrb[0].mxu0
      %v2310 = vand.u32 %v323, 4294901760
      %v2311 = vsub.f32 %v323, %v2310
      %2312 = vmatprep.mubr.f32.mxu0 %v2311
      %v2313 = vand.u32 %v167, 4294901760
      %v2314 = vsub.f32 %v167, %v2313
      %2315 = vmatmul.mubr.f32.gmra.mrb[0].mxu0 %v2314
      %v2316 = vpop.f32.mrb[0].mxu0
      %v2317 = vadd.f32 %v1742, %v2316
      %v2318 = vpop.f32.mrb[0].mxu0
      %v2319 = vand.u32 %v326, 4294901760
      %v2320 = vsub.f32 %v326, %v2319
      %2321 = vmatprep.mubr.f32.mxu0 %v2320
      %v2322 = vand.u32 %v169, 4294901760
      %v2323 = vsub.f32 %v169, %v2322
      %2324 = vmatmul.mubr.f32.gmra.mrb[0].mxu0 %v2323
      %v2325 = vpop.f32.mrb[0].mxu0
      %v2326 = vadd.f32 %v1749, %v2325
      %v2327 = vpop.f32.mrb[0].mxu0
      %v2328 = vand.u32 %v329, 4294901760
      %v2329 = vsub.f32 %v329, %v2328
      %2330 = vmatprep.mubr.f32.mxu0 %v2329
      %v2331 = vand.u32 %v171, 4294901760
      %v2332 = vsub.f32 %v171, %v2331
      %2333 = vmatmul.mubr.f32.gmra.mrb[0].mxu0 %v2332
      %v2334 = vpop.f32.mrb[0].mxu0
      %v2335 = vadd.f32 %v1756, %v2334
      %v2336 = vpop.f32.mrb[0].mxu0
      %v2337 = vand.u32 %v332, 4294901760
      %v2338 = vsub.f32 %v332, %v2337
      %2339 = vmatprep.mubr.f32.mxu0 %v2338
      %v2340 = vand.u32 %v173, 4294901760
      %v2341 = vsub.f32 %v173, %v2340
      %2342 = vmatmul.mubr.f32.gmra.mrb[0].mxu0 %v2341
      %v2343 = vpop.f32.mrb[0].mxu0
      %v2344 = vadd.f32 %v1763, %v2343
      %v2345 = vpop.f32.mrb[0].mxu0
      %v2346 = vand.u32 %v335, 4294901760
      %v2347 = vsub.f32 %v335, %v2346
      %2348 = vmatprep.mubr.f32.mxu0 %v2347
      %v2349 = vand.u32 %v175, 4294901760
      %v2350 = vsub.f32 %v175, %v2349
      %2351 = vmatmul.mubr.f32.gmra.mrb[0].mxu0 %v2350
      %v2352 = vpop.f32.mrb[0].mxu0
      %v2353 = vadd.f32 %v1770, %v2352
      %v2354 = vpop.f32.mrb[0].mxu0
      %v2355 = vand.u32 %v338, 4294901760
      %v2356 = vsub.f32 %v338, %v2355
      %2357 = vmatprep.mubr.f32.mxu0 %v2356
      %v2358 = vand.u32 %v177, 4294901760
      %v2359 = vsub.f32 %v177, %v2358
      %2360 = vmatmul.mubr.f32.gmra.mrb[0].mxu0 %v2359
      %v2361 = vpop.f32.mrb[0].mxu0
      %v2362 = vadd.f32 %v1777, %v2361
      %v2363 = vpop.f32.mrb[0].mxu0
      %v2364 = vand.u32 %v341, 4294901760
      %v2365 = vsub.f32 %v341, %v2364
      %2366 = vmatprep.mubr.f32.mxu0 %v2365
      %v2367 = vand.u32 %v179, 4294901760
      %v2368 = vsub.f32 %v179, %v2367
      %2369 = vmatmul.mubr.f32.gmra.mrb[0].mxu0 %v2368
      %v2370 = vpop.f32.mrb[0].mxu0
      %v2371 = vadd.f32 %v1784, %v2370
      %v2372 = vpop.f32.mrb[0].mxu0
      %v2373 = vand.u32 %v344, 4294901760
      %v2374 = vsub.f32 %v344, %v2373
      %2375 = vmatprep.mubr.f32.mxu0 %v2374
      %v2376 = vand.u32 %v181, 4294901760
      %v2377 = vsub.f32 %v181, %v2376
      %2378 = vmatmul.mubr.f32.gmra.mrb[0].mxu0 %v2377
      %v2379 = vpop.f32.mrb[0].mxu0
      %v2380 = vadd.f32 %v1791, %v2379
      %v2381 = vpop.f32.mrb[0].mxu0
      %v2382 = vand.u32 %v347, 4294901760
      %v2383 = vsub.f32 %v347, %v2382
      %2384 = vmatprep.mubr.f32.mxu0 %v2383
      %v2385 = vand.u32 %v183, 4294901760
      %v2386 = vsub.f32 %v183, %v2385
      %2387 = vmatmul.mubr.f32.gmra.mrb[0].mxu0 %v2386
      %v2388 = vpop.f32.mrb[0].mxu0
      %v2389 = vadd.f32 %v1798, %v2388
      %v2390 = vpop.f32.mrb[0].mxu0
      %v2391 = vand.u32 %v350, 4294901760
      %v2392 = vsub.f32 %v350, %v2391
      %2393 = vmatprep.mubr.f32.mxu0 %v2392
      %v2394 = vand.u32 %v185, 4294901760
      %v2395 = vsub.f32 %v185, %v2394
      %2396 = vmatmul.mubr.f32.gmra.mrb[0].mxu0 %v2395
      %v2397 = vpop.f32.mrb[0].mxu0
      %v2398 = vadd.f32 %v1805, %v2397
      %v2399 = vpop.f32.mrb[0].mxu0
      %v2400 = vand.u32 %v353, 4294901760
      %v2401 = vsub.f32 %v353, %v2400
      %2402 = vmatprep.mubr.f32.mxu0 %v2401
      %v2403 = vand.u32 %v187, 4294901760
      %v2404 = vsub.f32 %v187, %v2403
      %2405 = vmatmul.mubr.f32.gmra.mrb[0].mxu0 %v2404
      %v2406 = vpop.f32.mrb[0].mxu0
      %v2407 = vadd.f32 %v1812, %v2406
      %v2408 = vpop.f32.mrb[0].mxu0
      %v2409 = vand.u32 %v356, 4294901760
      %v2410 = vsub.f32 %v356, %v2409
      %2411 = vmatprep.mubr.f32.mxu0 %v2410
      %v2412 = vand.u32 %v189, 4294901760
      %v2413 = vsub.f32 %v189, %v2412
      %2414 = vmatmul.mubr.f32.gmra.mrb[0].mxu0 %v2413
      %v2415 = vpop.f32.mrb[0].mxu0
      %v2416 = vadd.f32 %v1819, %v2415
      %v2417 = vpop.f32.mrb[0].mxu0
      %v2418 = vand.u32 %v359, 4294901760
      %v2419 = vsub.f32 %v359, %v2418
      %2420 = vmatprep.mubr.f32.mxu0 %v2419
      %v2421 = vand.u32 %v191, 4294901760
      %v2422 = vsub.f32 %v191, %v2421
      %2423 = vmatmul.mubr.f32.gmra.mrb[0].mxu0 %v2422
      %v2424 = vpop.f32.mrb[0].mxu0
      %v2425 = vadd.f32 %v1826, %v2424
      %v2426 = vpop.f32.mrb[0].mxu0
      %v2427 = vand.u32 %v362, 4294901760
      %v2428 = vsub.f32 %v362, %v2427
      %2429 = vmatprep.mubr.f32.mxu0 %v2428
      %v2430 = vand.u32 %v193, 4294901760
      %v2431 = vsub.f32 %v193, %v2430
      %2432 = vmatmul.mubr.f32.gmra.mrb[0].mxu0 %v2431
      %v2433 = vpop.f32.mrb[0].mxu0
      %v2434 = vadd.f32 %v1833, %v2433
      %v2435 = vpop.f32.mrb[0].mxu0
      %v2436 = vand.u32 %v365, 4294901760
      %v2437 = vsub.f32 %v365, %v2436
      %2438 = vmatprep.mubr.f32.mxu0 %v2437
      %v2439 = vand.u32 %v195, 4294901760
      %v2440 = vsub.f32 %v195, %v2439
      %2441 = vmatmul.mubr.f32.gmra.mrb[0].mxu0 %v2440
      %v2442 = vpop.f32.mrb[0].mxu0
      %v2443 = vadd.f32 %v1840, %v2442
      %v2444 = vpop.f32.mrb[0].mxu0
      %v2445 = vand.u32 %v368, 4294901760
      %v2446 = vsub.f32 %v368, %v2445
      %2447 = vmatprep.mubr.f32.mxu0 %v2446
      %v2448 = vand.u32 %v197, 4294901760
      %v2449 = vsub.f32 %v197, %v2448
      %2450 = vmatmul.mubr.f32.gmra.mrb[0].mxu0 %v2449
      %v2451 = vpop.f32.mrb[0].mxu0
      %v2452 = vadd.f32 %v1847, %v2451
      %v2453 = vpop.f32.mrb[0].mxu0
      %v2454 = vand.u32 %v371, 4294901760
      %v2455 = vsub.f32 %v371, %v2454
      %2456 = vmatprep.mubr.f32.mxu0 %v2455
      %v2457 = vand.u32 %v199, 4294901760
      %v2458 = vsub.f32 %v199, %v2457
      %2459 = vmatmul.mubr.f32.gmra.mrb[0].mxu0 %v2458
      %v2460 = vpop.f32.mrb[0].mxu0
      %v2461 = vadd.f32 %v1854, %v2460
      %v2462 = vpop.f32.mrb[0].mxu0
      %v2463 = vand.u32 %v374, 4294901760
      %v2464 = vsub.f32 %v374, %v2463
      %2465 = vmatprep.mubr.f32.mxu0 %v2464
      %v2466 = vand.u32 %v201, 4294901760
      %v2467 = vsub.f32 %v201, %v2466
      %2468 = vmatmul.mubr.f32.gmra.mrb[0].mxu0 %v2467
      %v2469 = vpop.f32.mrb[0].mxu0
      %v2470 = vadd.f32 %v1861, %v2469
      %v2471 = vpop.f32.mrb[0].mxu0
      %v2472 = vand.u32 %v377, 4294901760
      %v2473 = vsub.f32 %v377, %v2472
      %2474 = vmatprep.mubr.f32.mxu0 %v2473
      %v2475 = vand.u32 %v203, 4294901760
      %v2476 = vsub.f32 %v203, %v2475
      %2477 = vmatmul.mubr.f32.gmra.mrb[0].mxu0 %v2476
      %v2478 = vpop.f32.mrb[0].mxu0
      %v2479 = vadd.f32 %v1868, %v2478
      %v2480 = vpop.f32.mrb[0].mxu0
      %v2481 = vand.u32 %v380, 4294901760
      %v2482 = vsub.f32 %v380, %v2481
      %2483 = vmatprep.mubr.f32.mxu0 %v2482
      %v2484 = vand.u32 %v205, 4294901760
      %v2485 = vsub.f32 %v205, %v2484
      %2486 = vmatmul.mubr.f32.gmra.mrb[0].mxu0 %v2485
      %v2487 = vpop.f32.mrb[0].mxu0
      %v2488 = vadd.f32 %v1875, %v2487
      %v2489 = vpop.f32.mrb[0].mxu0
      %v2490 = vand.u32 %v383, 4294901760
      %v2491 = vsub.f32 %v383, %v2490
      %2492 = vmatprep.mubr.f32.mxu0 %v2491
      %v2493 = vand.u32 %v207, 4294901760
      %v2494 = vsub.f32 %v207, %v2493
      %2495 = vmatmul.mubr.f32.gmra.mrb[0].mxu0 %v2494
      %v2496 = vpop.f32.mrb[0].mxu0
      %v2497 = vadd.f32 %v1882, %v2496
      %v2498 = vpop.f32.mrb[0].mxu0
      %v2499 = vand.u32 %v386, 4294901760
      %v2500 = vsub.f32 %v386, %v2499
      %2501 = vmatprep.mubr.f32.mxu0 %v2500
      %v2502 = vand.u32 %v209, 4294901760
      %v2503 = vsub.f32 %v209, %v2502
      %2504 = vmatmul.mubr.f32.gmra.mrb[0].mxu0 %v2503
      %v2505 = vpop.f32.mrb[0].mxu0
      %v2506 = vadd.f32 %v1889, %v2505
      %v2507 = vpop.f32.mrb[0].mxu0
      %v2508 = vand.u32 %v389, 4294901760
      %v2509 = vsub.f32 %v389, %v2508
      %2510 = vmatprep.mubr.f32.mxu0 %v2509
      %v2511 = vand.u32 %v211, 4294901760
      %v2512 = vsub.f32 %v211, %v2511
      %2513 = vmatmul.mubr.f32.gmra.mrb[0].mxu0 %v2512
      %v2514 = vpop.f32.mrb[0].mxu0
      %v2515 = vadd.f32 %v1896, %v2514
      %v2516 = vpop.f32.mrb[0].mxu0
      %v2517 = vand.u32 %v392, 4294901760
      %v2518 = vsub.f32 %v392, %v2517
      %2519 = vmatprep.mubr.f32.mxu0 %v2518
      %v2520 = vand.u32 %v213, 4294901760
      %v2521 = vsub.f32 %v213, %v2520
      %2522 = vmatmul.mubr.f32.gmra.mrb[0].mxu0 %v2521
      %v2523 = vpop.f32.mrb[0].mxu0
      %v2524 = vadd.f32 %v1903, %v2523
      %v2525 = vpop.f32.mrb[0].mxu0
      %v2526 = vand.u32 %v395, 4294901760
      %v2527 = vsub.f32 %v395, %v2526
      %2528 = vmatprep.mubr.f32.mxu0 %v2527
      %v2529 = vand.u32 %v215, 4294901760
      %v2530 = vsub.f32 %v215, %v2529
      %2531 = vmatmul.mubr.f32.gmra.mrb[0].mxu0 %v2530
      %v2532 = vpop.f32.mrb[0].mxu0
      %v2533 = vadd.f32 %v1910, %v2532
      %v2534 = vpop.f32.mrb[0].mxu0
      %v2535 = vand.u32 %v398, 4294901760
      %v2536 = vsub.f32 %v398, %v2535
      %2537 = vmatprep.mubr.f32.mxu0 %v2536
      %v2538 = vand.u32 %v217, 4294901760
      %v2539 = vsub.f32 %v217, %v2538
      %2540 = vmatmul.mubr.f32.gmra.mrb[0].mxu0 %v2539
      %v2541 = vpop.f32.mrb[0].mxu0
      %v2542 = vadd.f32 %v1917, %v2541
      %v2543 = vpop.f32.mrb[0].mxu0
      %v2544 = vand.u32 %v401, 4294901760
      %v2545 = vsub.f32 %v401, %v2544
      %2546 = vmatprep.mubr.f32.mxu0 %v2545
      %v2547 = vand.u32 %v219, 4294901760
      %v2548 = vsub.f32 %v219, %v2547
      %2549 = vmatmul.mubr.f32.gmra.mrb[0].mxu0 %v2548
      %v2550 = vpop.f32.mrb[0].mxu0
      %v2551 = vadd.f32 %v1924, %v2550
      %v2552 = vpop.f32.mrb[0].mxu0
      %v2553 = vand.u32 %v404, 4294901760
      %v2554 = vsub.f32 %v404, %v2553
      %2555 = vmatprep.mubr.f32.mxu0 %v2554
      %v2556 = vand.u32 %v221, 4294901760
      %v2557 = vsub.f32 %v221, %v2556
      %2558 = vmatmul.mubr.f32.gmra.mrb[0].mxu0 %v2557
      %v2559 = vpop.f32.mrb[0].mxu0
      %v2560 = vadd.f32 %v1931, %v2559
      %v2561 = vpop.f32.mrb[0].mxu0
      %v2562 = vand.u32 %v407, 4294901760
      %v2563 = vsub.f32 %v407, %v2562
      %2564 = vmatprep.mubr.f32.mxu0 %v2563
      %v2565 = vand.u32 %v223, 4294901760
      %v2566 = vsub.f32 %v223, %v2565
      %2567 = vmatmul.mubr.f32.gmra.mrb[0].mxu0 %v2566
      %v2568 = vpop.f32.mrb[0].mxu0
      %v2569 = vadd.f32 %v1938, %v2568
      %v2570 = vpop.f32.mrb[0].mxu0
      %v2571 = vand.u32 %v410, 4294901760
      %v2572 = vsub.f32 %v410, %v2571
      %2573 = vmatprep.mubr.f32.mxu0 %v2572
      %v2574 = vand.u32 %v225, 4294901760
      %v2575 = vsub.f32 %v225, %v2574
      %2576 = vmatmul.mubr.f32.gmra.mrb[0].mxu0 %v2575
      %v2577 = vpop.f32.mrb[0].mxu0
      %v2578 = vadd.f32 %v1945, %v2577
      %v2579 = vpop.f32.mrb[0].mxu0
      %v2580 = vand.u32 %v413, 4294901760
      %v2581 = vsub.f32 %v413, %v2580
      %2582 = vmatprep.mubr.f32.mxu0 %v2581
      %v2583 = vand.u32 %v227, 4294901760
      %v2584 = vsub.f32 %v227, %v2583
      %2585 = vmatmul.mubr.f32.gmra.mrb[0].mxu0 %v2584
      %v2586 = vpop.f32.mrb[0].mxu0
      %v2587 = vadd.f32 %v1952, %v2586
      %v2588 = vpop.f32.mrb[0].mxu0
      %v2589 = vand.u32 %v416, 4294901760
      %v2590 = vsub.f32 %v416, %v2589
      %2591 = vmatprep.mubr.f32.mxu0 %v2590
      %v2592 = vand.u32 %v229, 4294901760
      %v2593 = vsub.f32 %v229, %v2592
      %2594 = vmatmul.mubr.f32.gmra.mrb[0].mxu0 %v2593
      %v2595 = vpop.f32.mrb[0].mxu0
      %v2596 = vadd.f32 %v1959, %v2595
      %v2597 = vpop.f32.mrb[0].mxu0
      %v2598 = vand.u32 %v419, 4294901760
      %v2599 = vsub.f32 %v419, %v2598
      %2600 = vmatprep.mubr.f32.mxu0 %v2599
      %v2601 = vand.u32 %v231, 4294901760
      %v2602 = vsub.f32 %v231, %v2601
      %2603 = vmatmul.mubr.f32.gmra.mrb[0].mxu0 %v2602
      %v2604 = vpop.f32.mrb[0].mxu0
      %v2605 = vadd.f32 %v1966, %v2604
      %v2606 = vpop.f32.mrb[0].mxu0
      %v2607 = vand.u32 %v422, 4294901760
      %v2608 = vsub.f32 %v422, %v2607
      %2609 = vmatprep.mubr.f32.mxu0 %v2608
      %v2610 = vand.u32 %v233, 4294901760
      %v2611 = vsub.f32 %v233, %v2610
      %2612 = vmatmul.mubr.f32.gmra.mrb[0].mxu0 %v2611
      %v2613 = vpop.f32.mrb[0].mxu0
      %v2614 = vadd.f32 %v1973, %v2613
      %v2615 = vpop.f32.mrb[0].mxu0
      %v2616 = vand.u32 %v425, 4294901760
      %v2617 = vsub.f32 %v425, %v2616
      %2618 = vmatprep.mubr.f32.mxu0 %v2617
      %v2619 = vand.u32 %v235, 4294901760
      %v2620 = vsub.f32 %v235, %v2619
      %2621 = vmatmul.mubr.f32.gmra.mrb[0].mxu0 %v2620
      %v2622 = vpop.f32.mrb[0].mxu0
      %v2623 = vadd.f32 %v1980, %v2622
      %v2624 = vpop.f32.mrb[0].mxu0
      %v2625 = vand.u32 %v428, 4294901760
      %v2626 = vsub.f32 %v428, %v2625
      %2627 = vmatprep.mubr.f32.mxu0 %v2626
      %v2628 = vand.u32 %v237, 4294901760
      %v2629 = vsub.f32 %v237, %v2628
      %2630 = vmatmul.mubr.f32.gmra.mrb[0].mxu0 %v2629
      %v2631 = vpop.f32.mrb[0].mxu0
      %v2632 = vadd.f32 %v1987, %v2631
      %v2633 = vpop.f32.mrb[0].mxu0
      %v2634 = vand.u32 %v431, 4294901760
      %v2635 = vsub.f32 %v431, %v2634
      %2636 = vmatprep.mubr.f32.mxu0 %v2635
      %v2637 = vand.u32 %v239, 4294901760
      %v2638 = vsub.f32 %v239, %v2637
      %2639 = vmatmul.mubr.f32.gmra.mrb[0].mxu0 %v2638
      %v2640 = vpop.f32.mrb[0].mxu0
      %v2641 = vadd.f32 %v1994, %v2640
      %v2642 = vpop.f32.mrb[0].mxu0
      %v2643 = vand.u32 %v434, 4294901760
      %v2644 = vsub.f32 %v434, %v2643
      %2645 = vmatprep.mubr.f32.mxu0 %v2644
      %v2646 = vand.u32 %v241, 4294901760
      %v2647 = vsub.f32 %v241, %v2646
      %2648 = vmatmul.mubr.f32.gmra.mrb[0].mxu0 %v2647
      %v2649 = vpop.f32.mrb[0].mxu0
      %v2650 = vadd.f32 %v2001, %v2649
      %v2651 = vpop.f32.mrb[0].mxu0
      %v2652 = vand.u32 %v437, 4294901760
      %v2653 = vsub.f32 %v437, %v2652
      %2654 = vmatprep.mubr.f32.mxu0 %v2653
      %v2655 = vand.u32 %v243, 4294901760
      %v2656 = vsub.f32 %v243, %v2655
      %2657 = vmatmul.mubr.f32.gmra.mrb[0].mxu0 %v2656
      %v2658 = vpop.f32.mrb[0].mxu0
      %v2659 = vadd.f32 %v2008, %v2658
      %v2660 = vpop.f32.mrb[0].mxu0
      %v2661 = vand.u32 %v440, 4294901760
      %v2662 = vsub.f32 %v440, %v2661
      %2663 = vmatprep.mubr.f32.mxu0 %v2662
      %v2664 = vand.u32 %v245, 4294901760
      %v2665 = vsub.f32 %v245, %v2664
      %2666 = vmatmul.mubr.f32.gmra.mrb[0].mxu0 %v2665
      %v2667 = vpop.f32.mrb[0].mxu0
      %v2668 = vadd.f32 %v2015, %v2667
      %v2669 = vpop.f32.mrb[0].mxu0
      %v2670 = vand.u32 %v443, 4294901760
      %v2671 = vsub.f32 %v443, %v2670
      %2672 = vmatprep.mubr.f32.mxu0 %v2671
      %v2673 = vand.u32 %v247, 4294901760
      %v2674 = vsub.f32 %v247, %v2673
      %2675 = vmatmul.mubr.f32.gmra.mrb[0].mxu0 %v2674
      %v2676 = vpop.f32.mrb[0].mxu0
      %v2677 = vadd.f32 %v2022, %v2676
      %v2678 = vpop.f32.mrb[0].mxu0
      %v2679 = vand.u32 %v446, 4294901760
      %v2680 = vsub.f32 %v446, %v2679
      %2681 = vmatprep.mubr.f32.mxu0 %v2680
      %v2682 = vand.u32 %v249, 4294901760
      %v2683 = vsub.f32 %v249, %v2682
      %2684 = vmatmul.mubr.f32.gmra.mrb[0].mxu0 %v2683
      %v2685 = vpop.f32.mrb[0].mxu0
      %v2686 = vadd.f32 %v2029, %v2685
      %v2687 = vpop.f32.mrb[0].mxu0
      %v2688 = vand.u32 %v449, 4294901760
      %v2689 = vsub.f32 %v449, %v2688
      %2690 = vmatprep.mubr.f32.mxu0 %v2689
      %v2691 = vand.u32 %v251, 4294901760
      %v2692 = vsub.f32 %v251, %v2691
      %2693 = vmatmul.mubr.f32.gmra.mrb[0].mxu0 %v2692
      %v2694 = vpop.f32.mrb[0].mxu0
      %v2695 = vadd.f32 %v2036, %v2694
      %v2696 = vpop.f32.mrb[0].mxu0
      %v2697 = vand.u32 %v452, 4294901760
      %v2698 = vsub.f32 %v452, %v2697
      %2699 = vmatprep.mubr.f32.mxu0 %v2698
      %v2700 = vand.u32 %v253, 4294901760
      %v2701 = vsub.f32 %v253, %v2700
      %2702 = vmatmul.mubr.f32.gmra.mrb[0].mxu0 %v2701
      %v2703 = vpop.f32.mrb[0].mxu0
      %v2704 = vadd.f32 %v2043, %v2703
      %v2705 = vpop.f32.mrb[0].mxu0
      %2706 = vdwg.mxu0
      %2707 = vmatprep.subr.mxu0 0.0
      %2708 = vmatpush1.msra.mxu0 1.0
      %2709 = vmatprep.subr.mxu0 0.0
      %2710 = vmatpush1.msra.mxu0 1.0
      %2711 = vmatprep.subr.mxu0 0.0
      %2712 = vmatpush1.msra.mxu0 1.0
      %2713 = vmatprep.subr.mxu0 0.0
      %2714 = vmatpush1.msra.mxu0 1.0
      %2715 = vmatprep.subr.mxu0 0.0
      %2716 = vmatpush1.msra.mxu0 1.0
      %2717 = vmatprep.subr.mxu0 0.0
      %2718 = vmatpush1.msra.mxu0 1.0
      %2719 = vmatprep.subr.mxu0 0.0
      %2720 = vmatpush1.msra.mxu0 1.0
      %2721 = vmatprep.subr.mxu0 0.0
      %2722 = vmatpush1.msra.mxu0 1.0
      %2723 = vmatprep.subr.mxu0 0.0
      %2724 = vmatpush1.msra.mxu0 1.0
      %2725 = vmatprep.subr.mxu0 0.0
      %2726 = vmatpush1.msra.mxu0 1.0
      %2727 = vmatprep.subr.mxu0 0.0
      %2728 = vmatpush1.msra.mxu0 1.0
      %2729 = vmatprep.subr.mxu0 0.0
      %2730 = vmatpush1.msra.mxu0 1.0
      %2731 = vmatprep.subr.mxu0 0.0
      %2732 = vmatpush1.msra.mxu0 1.0
      %2733 = vmatprep.subr.mxu0 0.0
      %2734 = vmatpush1.msra.mxu0 1.0
      %2735 = vmatprep.subr.mxu0 0.0
      %2736 = vmatpush1.msra.mxu0 1.0
      %2737 = vmatprep.subr.mxu0 0.0
      %2738 = vmatpush1.msra.mxu0 1.0
      %2739 = vmatprep.subr.mxu0 0.0
      %2740 = vmatpush1.msra.mxu0 1.0
      %2741 = vmatprep.subr.mxu0 0.0
      %2742 = vmatpush1.msra.mxu0 1.0
      %2743 = vmatprep.subr.mxu0 0.0
      %2744 = vmatpush1.msra.mxu0 1.0
      %2745 = vmatprep.subr.mxu0 0.0
      %2746 = vmatpush1.msra.mxu0 1.0
      %2747 = vmatprep.subr.mxu0 0.0
      %2748 = vmatpush1.msra.mxu0 1.0
      %2749 = vmatprep.subr.mxu0 0.0
      %2750 = vmatpush1.msra.mxu0 1.0
      %2751 = vmatprep.subr.mxu0 0.0
      %2752 = vmatpush1.msra.mxu0 1.0
      %2753 = vmatprep.subr.mxu0 0.0
      %2754 = vmatpush1.msra.mxu0 1.0
      %2755 = vmatprep.subr.mxu0 0.0
      %v2756 = vand.u32 %v456, 4294901760
      %2757 = vmatpush1.msra.mxu0 %v2756
      %2758 = vmatprep.subr.mxu0 0.0
      %2759 = vmatpush1.msra.mxu0 0.0
      %2760 = vmatprep.subr.mxu0 0.0
      %2761 = vmatpush1.msra.mxu0 0.0
      %2762 = vmatprep.subr.mxu0 0.0
      %2763 = vmatpush1.msra.mxu0 0.0
      %2764 = vmatprep.subr.mxu0 0.0
      %2765 = vmatpush1.msra.mxu0 0.0
      %2766 = vmatprep.subr.mxu0 0.0
      %2767 = vmatpush1.msra.mxu0 0.0
      %2768 = vmatprep.subr.mxu0 0.0
      %2769 = vmatpush1.msra.mxu0 0.0
      %2770 = vmatprep.subr.mxu0 0.0
      %2771 = vmatpush1.msra.mxu0 0.0
      %v2772 = vand.u32 %v257, 4294901760
      %v2773 = vsub.f32 %v257, %v2772
      %v2774 = vand.u32 %v2773, 4294901760
      %2775 = vmatprep.mubr.f32.mxu0 %v2774
      %v2776 = vand.u32 %v123, 4294901760
      %v2777 = vsub.f32 %v123, %v2776
      %v2778 = vand.u32 %v2777, 4294901760
      %2779 = vmatmul.mubr.f32.gmra.mrb[0].mxu0 %v2778
      %v2780 = vpop.f32.mrb[0].mxu0
      %v2781 = vadd.f32 %v2119, %v2780
      %v2782 = vpop.f32.mrb[0].mxu0
      %v2783 = vand.u32 %v260, 4294901760
      %v2784 = vsub.f32 %v260, %v2783
      %v2785 = vand.u32 %v2784, 4294901760
      %2786 = vmatprep.mubr.f32.mxu0 %v2785
      %v2787 = vand.u32 %v125, 4294901760
      %v2788 = vsub.f32 %v125, %v2787
      %v2789 = vand.u32 %v2788, 4294901760
      %2790 = vmatmul.mubr.f32.gmra.mrb[0].mxu0 %v2789
      %v2791 = vpop.f32.mrb[0].mxu0
      %v2792 = vadd.f32 %v2128, %v2791
      %v2793 = vpop.f32.mrb[0].mxu0
      %v2794 = vand.u32 %v263, 4294901760
      %v2795 = vsub.f32 %v263, %v2794
      %v2796 = vand.u32 %v2795, 4294901760
      %2797 = vmatprep.mubr.f32.mxu0 %v2796
      %v2798 = vand.u32 %v127, 4294901760
      %v2799 = vsub.f32 %v127, %v2798
      %v2800 = vand.u32 %v2799, 4294901760
      %2801 = vmatmul.mubr.f32.gmra.mrb[0].mxu0 %v2800
      %v2802 = vpop.f32.mrb[0].mxu0
      %v2803 = vadd.f32 %v2137, %v2802
      %v2804 = vpop.f32.mrb[0].mxu0
      %v2805 = vand.u32 %v266, 4294901760
      %v2806 = vsub.f32 %v266, %v2805
      %v2807 = vand.u32 %v2806, 4294901760
      %2808 = vmatprep.mubr.f32.mxu0 %v2807
      %v2809 = vand.u32 %v129, 4294901760
      %v2810 = vsub.f32 %v129, %v2809
      %v2811 = vand.u32 %v2810, 4294901760
      %2812 = vmatmul.mubr.f32.gmra.mrb[0].mxu0 %v2811
      %v2813 = vpop.f32.mrb[0].mxu0
      %v2814 = vadd.f32 %v2146, %v2813
      %v2815 = vpop.f32.mrb[0].mxu0
      %v2816 = vand.u32 %v269, 4294901760
      %v2817 = vsub.f32 %v269, %v2816
      %v2818 = vand.u32 %v2817, 4294901760
      %2819 = vmatprep.mubr.f32.mxu0 %v2818
      %v2820 = vand.u32 %v131, 4294901760
      %v2821 = vsub.f32 %v131, %v2820
      %v2822 = vand.u32 %v2821, 4294901760
      %2823 = vmatmul.mubr.f32.gmra.mrb[0].mxu0 %v2822
      %v2824 = vpop.f32.mrb[0].mxu0
      %v2825 = vadd.f32 %v2155, %v2824
      %v2826 = vpop.f32.mrb[0].mxu0
      %v2827 = vand.u32 %v272, 4294901760
      %v2828 = vsub.f32 %v272, %v2827
      %v2829 = vand.u32 %v2828, 4294901760
      %2830 = vmatprep.mubr.f32.mxu0 %v2829
      %v2831 = vand.u32 %v133, 4294901760
      %v2832 = vsub.f32 %v133, %v2831
      %v2833 = vand.u32 %v2832, 4294901760
      %2834 = vmatmul.mubr.f32.gmra.mrb[0].mxu0 %v2833
      %v2835 = vpop.f32.mrb[0].mxu0
      %v2836 = vadd.f32 %v2164, %v2835
      %v2837 = vpop.f32.mrb[0].mxu0
      %v2838 = vand.u32 %v275, 4294901760
      %v2839 = vsub.f32 %v275, %v2838
      %v2840 = vand.u32 %v2839, 4294901760
      %2841 = vmatprep.mubr.f32.mxu0 %v2840
      %v2842 = vand.u32 %v135, 4294901760
      %v2843 = vsub.f32 %v135, %v2842
      %v2844 = vand.u32 %v2843, 4294901760
      %2845 = vmatmul.mubr.f32.gmra.mrb[0].mxu0 %v2844
      %v2846 = vpop.f32.mrb[0].mxu0
      %v2847 = vadd.f32 %v2173, %v2846
      %v2848 = vpop.f32.mrb[0].mxu0
      %v2849 = vand.u32 %v278, 4294901760
      %v2850 = vsub.f32 %v278, %v2849
      %v2851 = vand.u32 %v2850, 4294901760
      %2852 = vmatprep.mubr.f32.mxu0 %v2851
      %v2853 = vand.u32 %v137, 4294901760
      %v2854 = vsub.f32 %v137, %v2853
      %v2855 = vand.u32 %v2854, 4294901760
      %2856 = vmatmul.mubr.f32.gmra.mrb[0].mxu0 %v2855
      %v2857 = vpop.f32.mrb[0].mxu0
      %v2858 = vadd.f32 %v2182, %v2857
      %v2859 = vpop.f32.mrb[0].mxu0
      %v2860 = vand.u32 %v281, 4294901760
      %v2861 = vsub.f32 %v281, %v2860
      %v2862 = vand.u32 %v2861, 4294901760
      %2863 = vmatprep.mubr.f32.mxu0 %v2862
      %v2864 = vand.u32 %v139, 4294901760
      %v2865 = vsub.f32 %v139, %v2864
      %v2866 = vand.u32 %v2865, 4294901760
      %2867 = vmatmul.mubr.f32.gmra.mrb[0].mxu0 %v2866
      %v2868 = vpop.f32.mrb[0].mxu0
      %v2869 = vadd.f32 %v2191, %v2868
      %v2870 = vpop.f32.mrb[0].mxu0
      %v2871 = vand.u32 %v284, 4294901760
      %v2872 = vsub.f32 %v284, %v2871
      %v2873 = vand.u32 %v2872, 4294901760
      %2874 = vmatprep.mubr.f32.mxu0 %v2873
      %v2875 = vand.u32 %v141, 4294901760
      %v2876 = vsub.f32 %v141, %v2875
      %v2877 = vand.u32 %v2876, 4294901760
      %2878 = vmatmul.mubr.f32.gmra.mrb[0].mxu0 %v2877
      %v2879 = vpop.f32.mrb[0].mxu0
      %v2880 = vadd.f32 %v2200, %v2879
      %v2881 = vpop.f32.mrb[0].mxu0
      %v2882 = vand.u32 %v287, 4294901760
      %v2883 = vsub.f32 %v287, %v2882
      %v2884 = vand.u32 %v2883, 4294901760
      %2885 = vmatprep.mubr.f32.mxu0 %v2884
      %v2886 = vand.u32 %v143, 4294901760
      %v2887 = vsub.f32 %v143, %v2886
      %v2888 = vand.u32 %v2887, 4294901760
      %2889 = vmatmul.mubr.f32.gmra.mrb[0].mxu0 %v2888
      %v2890 = vpop.f32.mrb[0].mxu0
      %v2891 = vadd.f32 %v2209, %v2890
      %v2892 = vpop.f32.mrb[0].mxu0
      %v2893 = vand.u32 %v290, 4294901760
      %v2894 = vsub.f32 %v290, %v2893
      %v2895 = vand.u32 %v2894, 4294901760
      %2896 = vmatprep.mubr.f32.mxu0 %v2895
      %v2897 = vand.u32 %v145, 4294901760
      %v2898 = vsub.f32 %v145, %v2897
      %v2899 = vand.u32 %v2898, 4294901760
      %2900 = vmatmul.mubr.f32.gmra.mrb[0].mxu0 %v2899
      %v2901 = vpop.f32.mrb[0].mxu0
      %v2902 = vadd.f32 %v2218, %v2901
      %v2903 = vpop.f32.mrb[0].mxu0
      %v2904 = vand.u32 %v293, 4294901760
      %v2905 = vsub.f32 %v293, %v2904
      %v2906 = vand.u32 %v2905, 4294901760
      %2907 = vmatprep.mubr.f32.mxu0 %v2906
      %v2908 = vand.u32 %v147, 4294901760
      %v2909 = vsub.f32 %v147, %v2908
      %v2910 = vand.u32 %v2909, 4294901760
      %2911 = vmatmul.mubr.f32.gmra.mrb[0].mxu0 %v2910
      %v2912 = vpop.f32.mrb[0].mxu0
      %v2913 = vadd.f32 %v2227, %v2912
      %v2914 = vpop.f32.mrb[0].mxu0
      %v2915 = vand.u32 %v296, 4294901760
      %v2916 = vsub.f32 %v296, %v2915
      %v2917 = vand.u32 %v2916, 4294901760
      %2918 = vmatprep.mubr.f32.mxu0 %v2917
      %v2919 = vand.u32 %v149, 4294901760
      %v2920 = vsub.f32 %v149, %v2919
      %v2921 = vand.u32 %v2920, 4294901760
      %2922 = vmatmul.mubr.f32.gmra.mrb[0].mxu0 %v2921
      %v2923 = vpop.f32.mrb[0].mxu0
      %v2924 = vadd.f32 %v2236, %v2923
      %v2925 = vpop.f32.mrb[0].mxu0
      %v2926 = vand.u32 %v299, 4294901760
      %v2927 = vsub.f32 %v299, %v2926
      %v2928 = vand.u32 %v2927, 4294901760
      %2929 = vmatprep.mubr.f32.mxu0 %v2928
      %v2930 = vand.u32 %v151, 4294901760
      %v2931 = vsub.f32 %v151, %v2930
      %v2932 = vand.u32 %v2931, 4294901760
      %2933 = vmatmul.mubr.f32.gmra.mrb[0].mxu0 %v2932
      %v2934 = vpop.f32.mrb[0].mxu0
      %v2935 = vadd.f32 %v2245, %v2934
      %v2936 = vpop.f32.mrb[0].mxu0
      %v2937 = vand.u32 %v302, 4294901760
      %v2938 = vsub.f32 %v302, %v2937
      %v2939 = vand.u32 %v2938, 4294901760
      %2940 = vmatprep.mubr.f32.mxu0 %v2939
      %v2941 = vand.u32 %v153, 4294901760
      %v2942 = vsub.f32 %v153, %v2941
      %v2943 = vand.u32 %v2942, 4294901760
      %2944 = vmatmul.mubr.f32.gmra.mrb[0].mxu0 %v2943
      %v2945 = vpop.f32.mrb[0].mxu0
      %v2946 = vadd.f32 %v2254, %v2945
      %v2947 = vpop.f32.mrb[0].mxu0
      %v2948 = vand.u32 %v305, 4294901760
      %v2949 = vsub.f32 %v305, %v2948
      %v2950 = vand.u32 %v2949, 4294901760
      %2951 = vmatprep.mubr.f32.mxu0 %v2950
      %v2952 = vand.u32 %v155, 4294901760
      %v2953 = vsub.f32 %v155, %v2952
      %v2954 = vand.u32 %v2953, 4294901760
      %2955 = vmatmul.mubr.f32.gmra.mrb[0].mxu0 %v2954
      %v2956 = vpop.f32.mrb[0].mxu0
      %v2957 = vadd.f32 %v2263, %v2956
      %v2958 = vpop.f32.mrb[0].mxu0
      %v2959 = vand.u32 %v308, 4294901760
      %v2960 = vsub.f32 %v308, %v2959
      %v2961 = vand.u32 %v2960, 4294901760
      %2962 = vmatprep.mubr.f32.mxu0 %v2961
      %v2963 = vand.u32 %v157, 4294901760
      %v2964 = vsub.f32 %v157, %v2963
      %v2965 = vand.u32 %v2964, 4294901760
      %2966 = vmatmul.mubr.f32.gmra.mrb[0].mxu0 %v2965
      %v2967 = vpop.f32.mrb[0].mxu0
      %v2968 = vadd.f32 %v2272, %v2967
      %v2969 = vpop.f32.mrb[0].mxu0
      %v2970 = vand.u32 %v311, 4294901760
      %v2971 = vsub.f32 %v311, %v2970
      %v2972 = vand.u32 %v2971, 4294901760
      %2973 = vmatprep.mubr.f32.mxu0 %v2972
      %v2974 = vand.u32 %v159, 4294901760
      %v2975 = vsub.f32 %v159, %v2974
      %v2976 = vand.u32 %v2975, 4294901760
      %2977 = vmatmul.mubr.f32.gmra.mrb[0].mxu0 %v2976
      %v2978 = vpop.f32.mrb[0].mxu0
      %v2979 = vadd.f32 %v2281, %v2978
      %v2980 = vpop.f32.mrb[0].mxu0
      %v2981 = vand.u32 %v314, 4294901760
      %v2982 = vsub.f32 %v314, %v2981
      %v2983 = vand.u32 %v2982, 4294901760
      %2984 = vmatprep.mubr.f32.mxu0 %v2983
      %v2985 = vand.u32 %v161, 4294901760
      %v2986 = vsub.f32 %v161, %v2985
      %v2987 = vand.u32 %v2986, 4294901760
      %2988 = vmatmul.mubr.f32.gmra.mrb[0].mxu0 %v2987
      %v2989 = vpop.f32.mrb[0].mxu0
      %v2990 = vadd.f32 %v2290, %v2989
      %v2991 = vpop.f32.mrb[0].mxu0
      %v2992 = vand.u32 %v317, 4294901760
      %v2993 = vsub.f32 %v317, %v2992
      %v2994 = vand.u32 %v2993, 4294901760
      %2995 = vmatprep.mubr.f32.mxu0 %v2994
      %v2996 = vand.u32 %v163, 4294901760
      %v2997 = vsub.f32 %v163, %v2996
      %v2998 = vand.u32 %v2997, 4294901760
      %2999 = vmatmul.mubr.f32.gmra.mrb[0].mxu0 %v2998
      %v3000 = vpop.f32.mrb[0].mxu0
      %v3001 = vadd.f32 %v2299, %v3000
      %v3002 = vpop.f32.mrb[0].mxu0
      %v3003 = vand.u32 %v320, 4294901760
      %v3004 = vsub.f32 %v320, %v3003
      %v3005 = vand.u32 %v3004, 4294901760
      %3006 = vmatprep.mubr.f32.mxu0 %v3005
      %v3007 = vand.u32 %v165, 4294901760
      %v3008 = vsub.f32 %v165, %v3007
      %v3009 = vand.u32 %v3008, 4294901760
      %3010 = vmatmul.mubr.f32.gmra.mrb[0].mxu0 %v3009
      %v3011 = vpop.f32.mrb[0].mxu0
      %v3012 = vadd.f32 %v2308, %v3011
      %v3013 = vpop.f32.mrb[0].mxu0
      %v3014 = vand.u32 %v323, 4294901760
      %v3015 = vsub.f32 %v323, %v3014
      %v3016 = vand.u32 %v3015, 4294901760
      %3017 = vmatprep.mubr.f32.mxu0 %v3016
      %v3018 = vand.u32 %v167, 4294901760
      %v3019 = vsub.f32 %v167, %v3018
      %v3020 = vand.u32 %v3019, 4294901760
      %3021 = vmatmul.mubr.f32.gmra.mrb[0].mxu0 %v3020
      %v3022 = vpop.f32.mrb[0].mxu0
      %v3023 = vadd.f32 %v2317, %v3022
      %v3024 = vpop.f32.mrb[0].mxu0
      %v3025 = vand.u32 %v326, 4294901760
      %v3026 = vsub.f32 %v326, %v3025
      %v3027 = vand.u32 %v3026, 4294901760
      %3028 = vmatprep.mubr.f32.mxu0 %v3027
      %v3029 = vand.u32 %v169, 4294901760
      %v3030 = vsub.f32 %v169, %v3029
      %v3031 = vand.u32 %v3030, 4294901760
      %3032 = vmatmul.mubr.f32.gmra.mrb[0].mxu0 %v3031
      %v3033 = vpop.f32.mrb[0].mxu0
      %v3034 = vadd.f32 %v2326, %v3033
      %v3035 = vpop.f32.mrb[0].mxu0
      %v3036 = vand.u32 %v329, 4294901760
      %v3037 = vsub.f32 %v329, %v3036
      %v3038 = vand.u32 %v3037, 4294901760
      %3039 = vmatprep.mubr.f32.mxu0 %v3038
      %v3040 = vand.u32 %v171, 4294901760
      %v3041 = vsub.f32 %v171, %v3040
      %v3042 = vand.u32 %v3041, 4294901760
      %3043 = vmatmul.mubr.f32.gmra.mrb[0].mxu0 %v3042
      %v3044 = vpop.f32.mrb[0].mxu0
      %v3045 = vadd.f32 %v2335, %v3044
      %v3046 = vpop.f32.mrb[0].mxu0
      %v3047 = vand.u32 %v332, 4294901760
      %v3048 = vsub.f32 %v332, %v3047
      %v3049 = vand.u32 %v3048, 4294901760
      %3050 = vmatprep.mubr.f32.mxu0 %v3049
      %v3051 = vand.u32 %v173, 4294901760
      %v3052 = vsub.f32 %v173, %v3051
      %v3053 = vand.u32 %v3052, 4294901760
      %3054 = vmatmul.mubr.f32.gmra.mrb[0].mxu0 %v3053
      %v3055 = vpop.f32.mrb[0].mxu0
      %v3056 = vadd.f32 %v2344, %v3055
      %v3057 = vpop.f32.mrb[0].mxu0
      %v3058 = vand.u32 %v335, 4294901760
      %v3059 = vsub.f32 %v335, %v3058
      %v3060 = vand.u32 %v3059, 4294901760
      %3061 = vmatprep.mubr.f32.mxu0 %v3060
      %v3062 = vand.u32 %v175, 4294901760
      %v3063 = vsub.f32 %v175, %v3062
      %v3064 = vand.u32 %v3063, 4294901760
      %3065 = vmatmul.mubr.f32.gmra.mrb[0].mxu0 %v3064
      %v3066 = vpop.f32.mrb[0].mxu0
      %v3067 = vadd.f32 %v2353, %v3066
      %v3068 = vpop.f32.mrb[0].mxu0
      %v3069 = vand.u32 %v338, 4294901760
      %v3070 = vsub.f32 %v338, %v3069
      %v3071 = vand.u32 %v3070, 4294901760
      %3072 = vmatprep.mubr.f32.mxu0 %v3071
      %v3073 = vand.u32 %v177, 4294901760
      %v3074 = vsub.f32 %v177, %v3073
      %v3075 = vand.u32 %v3074, 4294901760
      %3076 = vmatmul.mubr.f32.gmra.mrb[0].mxu0 %v3075
      %v3077 = vpop.f32.mrb[0].mxu0
      %v3078 = vadd.f32 %v2362, %v3077
      %v3079 = vpop.f32.mrb[0].mxu0
      %v3080 = vand.u32 %v341, 4294901760
      %v3081 = vsub.f32 %v341, %v3080
      %v3082 = vand.u32 %v3081, 4294901760
      %3083 = vmatprep.mubr.f32.mxu0 %v3082
      %v3084 = vand.u32 %v179, 4294901760
      %v3085 = vsub.f32 %v179, %v3084
      %v3086 = vand.u32 %v3085, 4294901760
      %3087 = vmatmul.mubr.f32.gmra.mrb[0].mxu0 %v3086
      %v3088 = vpop.f32.mrb[0].mxu0
      %v3089 = vadd.f32 %v2371, %v3088
      %v3090 = vpop.f32.mrb[0].mxu0
      %v3091 = vand.u32 %v344, 4294901760
      %v3092 = vsub.f32 %v344, %v3091
      %v3093 = vand.u32 %v3092, 4294901760
      %3094 = vmatprep.mubr.f32.mxu0 %v3093
      %v3095 = vand.u32 %v181, 4294901760
      %v3096 = vsub.f32 %v181, %v3095
      %v3097 = vand.u32 %v3096, 4294901760
      %3098 = vmatmul.mubr.f32.gmra.mrb[0].mxu0 %v3097
      %v3099 = vpop.f32.mrb[0].mxu0
      %v3100 = vadd.f32 %v2380, %v3099
      %v3101 = vpop.f32.mrb[0].mxu0
      %v3102 = vand.u32 %v347, 4294901760
      %v3103 = vsub.f32 %v347, %v3102
      %v3104 = vand.u32 %v3103, 4294901760
      %3105 = vmatprep.mubr.f32.mxu0 %v3104
      %v3106 = vand.u32 %v183, 4294901760
      %v3107 = vsub.f32 %v183, %v3106
      %v3108 = vand.u32 %v3107, 4294901760
      %3109 = vmatmul.mubr.f32.gmra.mrb[0].mxu0 %v3108
      %v3110 = vpop.f32.mrb[0].mxu0
      %v3111 = vadd.f32 %v2389, %v3110
      %v3112 = vpop.f32.mrb[0].mxu0
      %v3113 = vand.u32 %v350, 4294901760
      %v3114 = vsub.f32 %v350, %v3113
      %v3115 = vand.u32 %v3114, 4294901760
      %3116 = vmatprep.mubr.f32.mxu0 %v3115
      %v3117 = vand.u32 %v185, 4294901760
      %v3118 = vsub.f32 %v185, %v3117
      %v3119 = vand.u32 %v3118, 4294901760
      %3120 = vmatmul.mubr.f32.gmra.mrb[0].mxu0 %v3119
      %v3121 = vpop.f32.mrb[0].mxu0
      %v3122 = vadd.f32 %v2398, %v3121
      %v3123 = vpop.f32.mrb[0].mxu0
      %v3124 = vand.u32 %v353, 4294901760
      %v3125 = vsub.f32 %v353, %v3124
      %v3126 = vand.u32 %v3125, 4294901760
      %3127 = vmatprep.mubr.f32.mxu0 %v3126
      %v3128 = vand.u32 %v187, 4294901760
      %v3129 = vsub.f32 %v187, %v3128
      %v3130 = vand.u32 %v3129, 4294901760
      %3131 = vmatmul.mubr.f32.gmra.mrb[0].mxu0 %v3130
      %v3132 = vpop.f32.mrb[0].mxu0
      %v3133 = vadd.f32 %v2407, %v3132
      %v3134 = vpop.f32.mrb[0].mxu0
      %v3135 = vand.u32 %v356, 4294901760
      %v3136 = vsub.f32 %v356, %v3135
      %v3137 = vand.u32 %v3136, 4294901760
      %3138 = vmatprep.mubr.f32.mxu0 %v3137
      %v3139 = vand.u32 %v189, 4294901760
      %v3140 = vsub.f32 %v189, %v3139
      %v3141 = vand.u32 %v3140, 4294901760
      %3142 = vmatmul.mubr.f32.gmra.mrb[0].mxu0 %v3141
      %v3143 = vpop.f32.mrb[0].mxu0
      %v3144 = vadd.f32 %v2416, %v3143
      %v3145 = vpop.f32.mrb[0].mxu0
      %v3146 = vand.u32 %v359, 4294901760
      %v3147 = vsub.f32 %v359, %v3146
      %v3148 = vand.u32 %v3147, 4294901760
      %3149 = vmatprep.mubr.f32.mxu0 %v3148
      %v3150 = vand.u32 %v191, 4294901760
      %v3151 = vsub.f32 %v191, %v3150
      %v3152 = vand.u32 %v3151, 4294901760
      %3153 = vmatmul.mubr.f32.gmra.mrb[0].mxu0 %v3152
      %v3154 = vpop.f32.mrb[0].mxu0
      %v3155 = vadd.f32 %v2425, %v3154
      %v3156 = vpop.f32.mrb[0].mxu0
      %v3157 = vand.u32 %v362, 4294901760
      %v3158 = vsub.f32 %v362, %v3157
      %v3159 = vand.u32 %v3158, 4294901760
      %3160 = vmatprep.mubr.f32.mxu0 %v3159
      %v3161 = vand.u32 %v193, 4294901760
      %v3162 = vsub.f32 %v193, %v3161
      %v3163 = vand.u32 %v3162, 4294901760
      %3164 = vmatmul.mubr.f32.gmra.mrb[0].mxu0 %v3163
      %v3165 = vpop.f32.mrb[0].mxu0
      %v3166 = vadd.f32 %v2434, %v3165
      %v3167 = vpop.f32.mrb[0].mxu0
      %v3168 = vand.u32 %v365, 4294901760
      %v3169 = vsub.f32 %v365, %v3168
      %v3170 = vand.u32 %v3169, 4294901760
      %3171 = vmatprep.mubr.f32.mxu0 %v3170
      %v3172 = vand.u32 %v195, 4294901760
      %v3173 = vsub.f32 %v195, %v3172
      %v3174 = vand.u32 %v3173, 4294901760
      %3175 = vmatmul.mubr.f32.gmra.mrb[0].mxu0 %v3174
      %v3176 = vpop.f32.mrb[0].mxu0
      %v3177 = vadd.f32 %v2443, %v3176
      %v3178 = vpop.f32.mrb[0].mxu0
      %v3179 = vand.u32 %v368, 4294901760
      %v3180 = vsub.f32 %v368, %v3179
      %v3181 = vand.u32 %v3180, 4294901760
      %3182 = vmatprep.mubr.f32.mxu0 %v3181
      %v3183 = vand.u32 %v197, 4294901760
      %v3184 = vsub.f32 %v197, %v3183
      %v3185 = vand.u32 %v3184, 4294901760
      %3186 = vmatmul.mubr.f32.gmra.mrb[0].mxu0 %v3185
      %v3187 = vpop.f32.mrb[0].mxu0
      %v3188 = vadd.f32 %v2452, %v3187
      %v3189 = vpop.f32.mrb[0].mxu0
      %v3190 = vand.u32 %v371, 4294901760
      %v3191 = vsub.f32 %v371, %v3190
      %v3192 = vand.u32 %v3191, 4294901760
      %3193 = vmatprep.mubr.f32.mxu0 %v3192
      %v3194 = vand.u32 %v199, 4294901760
      %v3195 = vsub.f32 %v199, %v3194
      %v3196 = vand.u32 %v3195, 4294901760
      %3197 = vmatmul.mubr.f32.gmra.mrb[0].mxu0 %v3196
      %v3198 = vpop.f32.mrb[0].mxu0
      %v3199 = vadd.f32 %v2461, %v3198
      %v3200 = vpop.f32.mrb[0].mxu0
      %v3201 = vand.u32 %v374, 4294901760
      %v3202 = vsub.f32 %v374, %v3201
      %v3203 = vand.u32 %v3202, 4294901760
      %3204 = vmatprep.mubr.f32.mxu0 %v3203
      %v3205 = vand.u32 %v201, 4294901760
      %v3206 = vsub.f32 %v201, %v3205
      %v3207 = vand.u32 %v3206, 4294901760
      %3208 = vmatmul.mubr.f32.gmra.mrb[0].mxu0 %v3207
      %v3209 = vpop.f32.mrb[0].mxu0
      %v3210 = vadd.f32 %v2470, %v3209
      %v3211 = vpop.f32.mrb[0].mxu0
      %v3212 = vand.u32 %v377, 4294901760
      %v3213 = vsub.f32 %v377, %v3212
      %v3214 = vand.u32 %v3213, 4294901760
      %3215 = vmatprep.mubr.f32.mxu0 %v3214
      %v3216 = vand.u32 %v203, 4294901760
      %v3217 = vsub.f32 %v203, %v3216
      %v3218 = vand.u32 %v3217, 4294901760
      %3219 = vmatmul.mubr.f32.gmra.mrb[0].mxu0 %v3218
      %v3220 = vpop.f32.mrb[0].mxu0
      %v3221 = vadd.f32 %v2479, %v3220
      %v3222 = vpop.f32.mrb[0].mxu0
      %v3223 = vand.u32 %v380, 4294901760
      %v3224 = vsub.f32 %v380, %v3223
      %v3225 = vand.u32 %v3224, 4294901760
      %3226 = vmatprep.mubr.f32.mxu0 %v3225
      %v3227 = vand.u32 %v205, 4294901760
      %v3228 = vsub.f32 %v205, %v3227
      %v3229 = vand.u32 %v3228, 4294901760
      %3230 = vmatmul.mubr.f32.gmra.mrb[0].mxu0 %v3229
      %v3231 = vpop.f32.mrb[0].mxu0
      %v3232 = vadd.f32 %v2488, %v3231
      %v3233 = vpop.f32.mrb[0].mxu0
      %v3234 = vand.u32 %v383, 4294901760
      %v3235 = vsub.f32 %v383, %v3234
      %v3236 = vand.u32 %v3235, 4294901760
      %3237 = vmatprep.mubr.f32.mxu0 %v3236
      %v3238 = vand.u32 %v207, 4294901760
      %v3239 = vsub.f32 %v207, %v3238
      %v3240 = vand.u32 %v3239, 4294901760
      %3241 = vmatmul.mubr.f32.gmra.mrb[0].mxu0 %v3240
      %v3242 = vpop.f32.mrb[0].mxu0
      %v3243 = vadd.f32 %v2497, %v3242
      %v3244 = vpop.f32.mrb[0].mxu0
      %v3245 = vand.u32 %v386, 4294901760
      %v3246 = vsub.f32 %v386, %v3245
      %v3247 = vand.u32 %v3246, 4294901760
      %3248 = vmatprep.mubr.f32.mxu0 %v3247
      %v3249 = vand.u32 %v209, 4294901760
      %v3250 = vsub.f32 %v209, %v3249
      %v3251 = vand.u32 %v3250, 4294901760
      %3252 = vmatmul.mubr.f32.gmra.mrb[0].mxu0 %v3251
      %v3253 = vpop.f32.mrb[0].mxu0
      %v3254 = vadd.f32 %v2506, %v3253
      %v3255 = vpop.f32.mrb[0].mxu0
      %v3256 = vand.u32 %v389, 4294901760
      %v3257 = vsub.f32 %v389, %v3256
      %v3258 = vand.u32 %v3257, 4294901760
      %3259 = vmatprep.mubr.f32.mxu0 %v3258
      %v3260 = vand.u32 %v211, 4294901760
      %v3261 = vsub.f32 %v211, %v3260
      %v3262 = vand.u32 %v3261, 4294901760
      %3263 = vmatmul.mubr.f32.gmra.mrb[0].mxu0 %v3262
      %v3264 = vpop.f32.mrb[0].mxu0
      %v3265 = vadd.f32 %v2515, %v3264
      %v3266 = vpop.f32.mrb[0].mxu0
      %v3267 = vand.u32 %v392, 4294901760
      %v3268 = vsub.f32 %v392, %v3267
      %v3269 = vand.u32 %v3268, 4294901760
      %3270 = vmatprep.mubr.f32.mxu0 %v3269
      %v3271 = vand.u32 %v213, 4294901760
      %v3272 = vsub.f32 %v213, %v3271
      %v3273 = vand.u32 %v3272, 4294901760
      %3274 = vmatmul.mubr.f32.gmra.mrb[0].mxu0 %v3273
      %v3275 = vpop.f32.mrb[0].mxu0
      %v3276 = vadd.f32 %v2524, %v3275
      %v3277 = vpop.f32.mrb[0].mxu0
      %v3278 = vand.u32 %v395, 4294901760
      %v3279 = vsub.f32 %v395, %v3278
      %v3280 = vand.u32 %v3279, 4294901760
      %3281 = vmatprep.mubr.f32.mxu0 %v3280
      %v3282 = vand.u32 %v215, 4294901760
      %v3283 = vsub.f32 %v215, %v3282
      %v3284 = vand.u32 %v3283, 4294901760
      %3285 = vmatmul.mubr.f32.gmra.mrb[0].mxu0 %v3284
      %v3286 = vpop.f32.mrb[0].mxu0
      %v3287 = vadd.f32 %v2533, %v3286
      %v3288 = vpop.f32.mrb[0].mxu0
      %v3289 = vand.u32 %v398, 4294901760
      %v3290 = vsub.f32 %v398, %v3289
      %v3291 = vand.u32 %v3290, 4294901760
      %3292 = vmatprep.mubr.f32.mxu0 %v3291
      %v3293 = vand.u32 %v217, 4294901760
      %v3294 = vsub.f32 %v217, %v3293
      %v3295 = vand.u32 %v3294, 4294901760
      %3296 = vmatmul.mubr.f32.gmra.mrb[0].mxu0 %v3295
      %v3297 = vpop.f32.mrb[0].mxu0
      %v3298 = vadd.f32 %v2542, %v3297
      %v3299 = vpop.f32.mrb[0].mxu0
      %v3300 = vand.u32 %v401, 4294901760
      %v3301 = vsub.f32 %v401, %v3300
      %v3302 = vand.u32 %v3301, 4294901760
      %3303 = vmatprep.mubr.f32.mxu0 %v3302
      %v3304 = vand.u32 %v219, 4294901760
      %v3305 = vsub.f32 %v219, %v3304
      %v3306 = vand.u32 %v3305, 4294901760
      %3307 = vmatmul.mubr.f32.gmra.mrb[0].mxu0 %v3306
      %v3308 = vpop.f32.mrb[0].mxu0
      %v3309 = vadd.f32 %v2551, %v3308
      %v3310 = vpop.f32.mrb[0].mxu0
      %v3311 = vand.u32 %v404, 4294901760
      %v3312 = vsub.f32 %v404, %v3311
      %v3313 = vand.u32 %v3312, 4294901760
      %3314 = vmatprep.mubr.f32.mxu0 %v3313
      %v3315 = vand.u32 %v221, 4294901760
      %v3316 = vsub.f32 %v221, %v3315
      %v3317 = vand.u32 %v3316, 4294901760
      %3318 = vmatmul.mubr.f32.gmra.mrb[0].mxu0 %v3317
      %v3319 = vpop.f32.mrb[0].mxu0
      %v3320 = vadd.f32 %v2560, %v3319
      %v3321 = vpop.f32.mrb[0].mxu0
      %v3322 = vand.u32 %v407, 4294901760
      %v3323 = vsub.f32 %v407, %v3322
      %v3324 = vand.u32 %v3323, 4294901760
      %3325 = vmatprep.mubr.f32.mxu0 %v3324
      %v3326 = vand.u32 %v223, 4294901760
      %v3327 = vsub.f32 %v223, %v3326
      %v3328 = vand.u32 %v3327, 4294901760
      %3329 = vmatmul.mubr.f32.gmra.mrb[0].mxu0 %v3328
      %v3330 = vpop.f32.mrb[0].mxu0
      %v3331 = vadd.f32 %v2569, %v3330
      %v3332 = vpop.f32.mrb[0].mxu0
      %v3333 = vand.u32 %v410, 4294901760
      %v3334 = vsub.f32 %v410, %v3333
      %v3335 = vand.u32 %v3334, 4294901760
      %3336 = vmatprep.mubr.f32.mxu0 %v3335
      %v3337 = vand.u32 %v225, 4294901760
      %v3338 = vsub.f32 %v225, %v3337
      %v3339 = vand.u32 %v3338, 4294901760
      %3340 = vmatmul.mubr.f32.gmra.mrb[0].mxu0 %v3339
      %v3341 = vpop.f32.mrb[0].mxu0
      %v3342 = vadd.f32 %v2578, %v3341
      %v3343 = vpop.f32.mrb[0].mxu0
      %v3344 = vand.u32 %v413, 4294901760
      %v3345 = vsub.f32 %v413, %v3344
      %v3346 = vand.u32 %v3345, 4294901760
      %3347 = vmatprep.mubr.f32.mxu0 %v3346
      %v3348 = vand.u32 %v227, 4294901760
      %v3349 = vsub.f32 %v227, %v3348
      %v3350 = vand.u32 %v3349, 4294901760
      %3351 = vmatmul.mubr.f32.gmra.mrb[0].mxu0 %v3350
      %v3352 = vpop.f32.mrb[0].mxu0
      %v3353 = vadd.f32 %v2587, %v3352
      %v3354 = vpop.f32.mrb[0].mxu0
      %v3355 = vand.u32 %v416, 4294901760
      %v3356 = vsub.f32 %v416, %v3355
      %v3357 = vand.u32 %v3356, 4294901760
      %3358 = vmatprep.mubr.f32.mxu0 %v3357
      %v3359 = vand.u32 %v229, 4294901760
      %v3360 = vsub.f32 %v229, %v3359
      %v3361 = vand.u32 %v3360, 4294901760
      %3362 = vmatmul.mubr.f32.gmra.mrb[0].mxu0 %v3361
      %v3363 = vpop.f32.mrb[0].mxu0
      %v3364 = vadd.f32 %v2596, %v3363
      %v3365 = vpop.f32.mrb[0].mxu0
      %v3366 = vand.u32 %v419, 4294901760
      %v3367 = vsub.f32 %v419, %v3366
      %v3368 = vand.u32 %v3367, 4294901760
      %3369 = vmatprep.mubr.f32.mxu0 %v3368
      %v3370 = vand.u32 %v231, 4294901760
      %v3371 = vsub.f32 %v231, %v3370
      %v3372 = vand.u32 %v3371, 4294901760
      %3373 = vmatmul.mubr.f32.gmra.mrb[0].mxu0 %v3372
      %v3374 = vpop.f32.mrb[0].mxu0
      %v3375 = vadd.f32 %v2605, %v3374
      %v3376 = vpop.f32.mrb[0].mxu0
      %v3377 = vand.u32 %v422, 4294901760
      %v3378 = vsub.f32 %v422, %v3377
      %v3379 = vand.u32 %v3378, 4294901760
      %3380 = vmatprep.mubr.f32.mxu0 %v3379
      %v3381 = vand.u32 %v233, 4294901760
      %v3382 = vsub.f32 %v233, %v3381
      %v3383 = vand.u32 %v3382, 4294901760
      %3384 = vmatmul.mubr.f32.gmra.mrb[0].mxu0 %v3383
      %v3385 = vpop.f32.mrb[0].mxu0
      %v3386 = vadd.f32 %v2614, %v3385
      %v3387 = vpop.f32.mrb[0].mxu0
      %v3388 = vand.u32 %v425, 4294901760
      %v3389 = vsub.f32 %v425, %v3388
      %v3390 = vand.u32 %v3389, 4294901760
      %3391 = vmatprep.mubr.f32.mxu0 %v3390
      %v3392 = vand.u32 %v235, 4294901760
      %v3393 = vsub.f32 %v235, %v3392
      %v3394 = vand.u32 %v3393, 4294901760
      %3395 = vmatmul.mubr.f32.gmra.mrb[0].mxu0 %v3394
      %v3396 = vpop.f32.mrb[0].mxu0
      %v3397 = vadd.f32 %v2623, %v3396
      %v3398 = vpop.f32.mrb[0].mxu0
      %v3399 = vand.u32 %v428, 4294901760
      %v3400 = vsub.f32 %v428, %v3399
      %v3401 = vand.u32 %v3400, 4294901760
      %3402 = vmatprep.mubr.f32.mxu0 %v3401
      %v3403 = vand.u32 %v237, 4294901760
      %v3404 = vsub.f32 %v237, %v3403
      %v3405 = vand.u32 %v3404, 4294901760
      %3406 = vmatmul.mubr.f32.gmra.mrb[0].mxu0 %v3405
      %v3407 = vpop.f32.mrb[0].mxu0
      %v3408 = vadd.f32 %v2632, %v3407
      %v3409 = vpop.f32.mrb[0].mxu0
      %v3410 = vand.u32 %v431, 4294901760
      %v3411 = vsub.f32 %v431, %v3410
      %v3412 = vand.u32 %v3411, 4294901760
      %3413 = vmatprep.mubr.f32.mxu0 %v3412
      %v3414 = vand.u32 %v239, 4294901760
      %v3415 = vsub.f32 %v239, %v3414
      %v3416 = vand.u32 %v3415, 4294901760
      %3417 = vmatmul.mubr.f32.gmra.mrb[0].mxu0 %v3416
      %v3418 = vpop.f32.mrb[0].mxu0
      %v3419 = vadd.f32 %v2641, %v3418
      %v3420 = vpop.f32.mrb[0].mxu0
      %v3421 = vand.u32 %v434, 4294901760
      %v3422 = vsub.f32 %v434, %v3421
      %v3423 = vand.u32 %v3422, 4294901760
      %3424 = vmatprep.mubr.f32.mxu0 %v3423
      %v3425 = vand.u32 %v241, 4294901760
      %v3426 = vsub.f32 %v241, %v3425
      %v3427 = vand.u32 %v3426, 4294901760
      %3428 = vmatmul.mubr.f32.gmra.mrb[0].mxu0 %v3427
      %v3429 = vpop.f32.mrb[0].mxu0
      %v3430 = vadd.f32 %v2650, %v3429
      %v3431 = vpop.f32.mrb[0].mxu0
      %v3432 = vand.u32 %v437, 4294901760
      %v3433 = vsub.f32 %v437, %v3432
      %v3434 = vand.u32 %v3433, 4294901760
      %3435 = vmatprep.mubr.f32.mxu0 %v3434
      %v3436 = vand.u32 %v243, 4294901760
      %v3437 = vsub.f32 %v243, %v3436
      %v3438 = vand.u32 %v3437, 4294901760
      %3439 = vmatmul.mubr.f32.gmra.mrb[0].mxu0 %v3438
      %v3440 = vpop.f32.mrb[0].mxu0
      %v3441 = vadd.f32 %v2659, %v3440
      %v3442 = vpop.f32.mrb[0].mxu0
      %v3443 = vand.u32 %v440, 4294901760
      %v3444 = vsub.f32 %v440, %v3443
      %v3445 = vand.u32 %v3444, 4294901760
      %3446 = vmatprep.mubr.f32.mxu0 %v3445
      %v3447 = vand.u32 %v245, 4294901760
      %v3448 = vsub.f32 %v245, %v3447
      %v3449 = vand.u32 %v3448, 4294901760
      %3450 = vmatmul.mubr.f32.gmra.mrb[0].mxu0 %v3449
      %v3451 = vpop.f32.mrb[0].mxu0
      %v3452 = vadd.f32 %v2668, %v3451
      %v3453 = vpop.f32.mrb[0].mxu0
      %v3454 = vand.u32 %v443, 4294901760
      %v3455 = vsub.f32 %v443, %v3454
      %v3456 = vand.u32 %v3455, 4294901760
      %3457 = vmatprep.mubr.f32.mxu0 %v3456
      %v3458 = vand.u32 %v247, 4294901760
      %v3459 = vsub.f32 %v247, %v3458
      %v3460 = vand.u32 %v3459, 4294901760
      %3461 = vmatmul.mubr.f32.gmra.mrb[0].mxu0 %v3460
      %v3462 = vpop.f32.mrb[0].mxu0
      %v3463 = vadd.f32 %v2677, %v3462
      %v3464 = vpop.f32.mrb[0].mxu0
      %v3465 = vand.u32 %v446, 4294901760
      %v3466 = vsub.f32 %v446, %v3465
      %v3467 = vand.u32 %v3466, 4294901760
      %3468 = vmatprep.mubr.f32.mxu0 %v3467
      %v3469 = vand.u32 %v249, 4294901760
      %v3470 = vsub.f32 %v249, %v3469
      %v3471 = vand.u32 %v3470, 4294901760
      %3472 = vmatmul.mubr.f32.gmra.mrb[0].mxu0 %v3471
      %v3473 = vpop.f32.mrb[0].mxu0
      %v3474 = vadd.f32 %v2686, %v3473
      %v3475 = vpop.f32.mrb[0].mxu0
      %v3476 = vand.u32 %v449, 4294901760
      %v3477 = vsub.f32 %v449, %v3476
      %v3478 = vand.u32 %v3477, 4294901760
      %3479 = vmatprep.mubr.f32.mxu0 %v3478
      %v3480 = vand.u32 %v251, 4294901760
      %v3481 = vsub.f32 %v251, %v3480
      %v3482 = vand.u32 %v3481, 4294901760
      %3483 = vmatmul.mubr.f32.gmra.mrb[0].mxu0 %v3482
      %v3484 = vpop.f32.mrb[0].mxu0
      %v3485 = vadd.f32 %v2695, %v3484
      %v3486 = vpop.f32.mrb[0].mxu0
      %v3487 = vand.u32 %v452, 4294901760
      %v3488 = vsub.f32 %v452, %v3487
      %v3489 = vand.u32 %v3488, 4294901760
      %3490 = vmatprep.mubr.f32.mxu0 %v3489
      %v3491 = vand.u32 %v253, 4294901760
      %v3492 = vsub.f32 %v253, %v3491
      %v3493 = vand.u32 %v3492, 4294901760
      %3494 = vmatmul.mubr.f32.gmra.mrb[0].mxu0 %v3493
      %v3495 = vpop.f32.mrb[0].mxu0
      %v3496 = vadd.f32 %v2704, %v3495
      %v3497 = vpop.f32.mrb[0].mxu0
      %3498 = vdwg.mxu0
      %3499 = vmatprep.subr.mxu0 0.0
      %3500 = vmatpush1.msra.mxu0 0.0
      %3501 = vmatprep.subr.mxu0 0.0
      %3502 = vmatpush1.msra.mxu0 0.0
      %3503 = vmatprep.subr.mxu0 0.0
      %3504 = vmatpush1.msra.mxu0 0.0
      %3505 = vmatprep.subr.mxu0 0.0
      %3506 = vmatpush1.msra.mxu0 0.0
      %3507 = vmatprep.subr.mxu0 0.0
      %3508 = vmatpush1.msra.mxu0 0.0
      %3509 = vmatprep.subr.mxu0 0.0
      %3510 = vmatpush1.msra.mxu0 0.0
      %3511 = vmatprep.subr.mxu0 0.0
      %3512 = vmatpush1.msra.mxu0 0.0
      %3513 = vmatprep.subr.mxu0 0.0
      %3514 = vmatpush1.msra.mxu0 0.0
      %3515 = vmatprep.subr.mxu0 0.0
      %3516 = vmatpush1.msra.mxu0 0.0
      %3517 = vmatprep.subr.mxu0 0.0
      %3518 = vmatpush1.msra.mxu0 0.0
      %3519 = vmatprep.subr.mxu0 0.0
      %3520 = vmatpush1.msra.mxu0 0.0
      %3521 = vmatprep.subr.mxu0 0.0
      %3522 = vmatpush1.msra.mxu0 0.0
      %3523 = vmatprep.subr.mxu0 0.0
      %3524 = vmatpush1.msra.mxu0 0.0
      %3525 = vmatprep.subr.mxu0 0.0
      %3526 = vmatpush1.msra.mxu0 0.0
      %3527 = vmatprep.subr.mxu0 0.0
      %3528 = vmatpush1.msra.mxu0 0.0
      %3529 = vmatprep.subr.mxu0 0.0
      %3530 = vmatpush1.msra.mxu0 0.0
      %3531 = vmatprep.subr.mxu0 0.0
      %3532 = vmatpush1.msra.mxu0 0.0
      %3533 = vmatprep.subr.mxu0 0.0
      %3534 = vmatpush1.msra.mxu0 0.0
      %3535 = vmatprep.subr.mxu0 0.0
      %3536 = vmatpush1.msra.mxu0 0.0
      %3537 = vmatprep.subr.mxu0 0.0
      %3538 = vmatpush1.msra.mxu0 0.0
      %3539 = vmatprep.subr.mxu0 0.0
      %3540 = vmatpush1.msra.mxu0 0.0
      %3541 = vmatprep.subr.mxu0 0.0
      %3542 = vmatpush1.msra.mxu0 0.0
      %3543 = vmatprep.subr.mxu0 0.0
      %3544 = vmatpush1.msra.mxu0 0.0
      %3545 = vmatprep.subr.mxu0 0.0
      %3546 = vmatpush1.msra.mxu0 0.0
      %3547 = vmatprep.subr.mxu0 0.0
      %v3548 = vand.u32 %v456, 4294901760
      %v3549 = vsub.f32 %v456, %v3548
      %v3550 = vand.u32 %v3549, 4294901760
      %3551 = vmatpush1.msra.mxu0 %v3550
      %3552 = vmatprep.subr.mxu0 0.0
      %3553 = vmatpush1.msra.mxu0 0.0
      %3554 = vmatprep.subr.mxu0 0.0
      %3555 = vmatpush1.msra.mxu0 0.0
      %3556 = vmatprep.subr.mxu0 0.0
      %3557 = vmatpush1.msra.mxu0 0.0
      %3558 = vmatprep.subr.mxu0 0.0
      %3559 = vmatpush1.msra.mxu0 0.0
      %3560 = vmatprep.subr.mxu0 0.0
      %3561 = vmatpush1.msra.mxu0 0.0
      %3562 = vmatprep.subr.mxu0 0.0
      %3563 = vmatpush1.msra.mxu0 0.0
      %3564 = vmatprep.subr.mxu0 0.0
      %3565 = vmatpush1.msra.mxu0 0.0
      %v3566 = vand.u32 %v257, 4294901760
      %3567 = vmatprep.mubr.f32.mxu0 %v3566
      %v3568 = vand.u32 %v123, 4294901760
      %3569 = vmatmul.mubr.f32.gmra.mrb[0].mxu0 %v3568
      %v3570 = vpop.f32.mrb[0].mxu0
      %v3571 = vadd.f32 %v2781, %v3570
      %v3572 = vpop.f32.mrb[0].mxu0
      %v3573 = vand.u32 %v260, 4294901760
      %3574 = vmatprep.mubr.f32.mxu0 %v3573
      %v3575 = vand.u32 %v125, 4294901760
      %3576 = vmatmul.mubr.f32.gmra.mrb[0].mxu0 %v3575
      %v3577 = vpop.f32.mrb[0].mxu0
      %v3578 = vadd.f32 %v2792, %v3577
      %v3579 = vpop.f32.mrb[0].mxu0
      %v3580 = vand.u32 %v263, 4294901760
      %3581 = vmatprep.mubr.f32.mxu0 %v3580
      %v3582 = vand.u32 %v127, 4294901760
      %3583 = vmatmul.mubr.f32.gmra.mrb[0].mxu0 %v3582
      %v3584 = vpop.f32.mrb[0].mxu0
      %v3585 = vadd.f32 %v2803, %v3584
      %v3586 = vpop.f32.mrb[0].mxu0
      %v3587 = vand.u32 %v266, 4294901760
      %3588 = vmatprep.mubr.f32.mxu0 %v3587
      %v3589 = vand.u32 %v129, 4294901760
      %3590 = vmatmul.mubr.f32.gmra.mrb[0].mxu0 %v3589
      %v3591 = vpop.f32.mrb[0].mxu0
      %v3592 = vadd.f32 %v2814, %v3591
      %v3593 = vpop.f32.mrb[0].mxu0
      %v3594 = vand.u32 %v269, 4294901760
      %3595 = vmatprep.mubr.f32.mxu0 %v3594
      %v3596 = vand.u32 %v131, 4294901760
      %3597 = vmatmul.mubr.f32.gmra.mrb[0].mxu0 %v3596
      %v3598 = vpop.f32.mrb[0].mxu0
      %v3599 = vadd.f32 %v2825, %v3598
      %v3600 = vpop.f32.mrb[0].mxu0
      %v3601 = vand.u32 %v272, 4294901760
      %3602 = vmatprep.mubr.f32.mxu0 %v3601
      %v3603 = vand.u32 %v133, 4294901760
      %3604 = vmatmul.mubr.f32.gmra.mrb[0].mxu0 %v3603
      %v3605 = vpop.f32.mrb[0].mxu0
      %v3606 = vadd.f32 %v2836, %v3605
      %v3607 = vpop.f32.mrb[0].mxu0
      %v3608 = vand.u32 %v275, 4294901760
      %3609 = vmatprep.mubr.f32.mxu0 %v3608
      %v3610 = vand.u32 %v135, 4294901760
      %3611 = vmatmul.mubr.f32.gmra.mrb[0].mxu0 %v3610
      %v3612 = vpop.f32.mrb[0].mxu0
      %v3613 = vadd.f32 %v2847, %v3612
      %v3614 = vpop.f32.mrb[0].mxu0
      %v3615 = vand.u32 %v278, 4294901760
      %3616 = vmatprep.mubr.f32.mxu0 %v3615
      %v3617 = vand.u32 %v137, 4294901760
      %3618 = vmatmul.mubr.f32.gmra.mrb[0].mxu0 %v3617
      %v3619 = vpop.f32.mrb[0].mxu0
      %v3620 = vadd.f32 %v2858, %v3619
      %v3621 = vpop.f32.mrb[0].mxu0
      %v3622 = vand.u32 %v281, 4294901760
      %3623 = vmatprep.mubr.f32.mxu0 %v3622
      %v3624 = vand.u32 %v139, 4294901760
      %3625 = vmatmul.mubr.f32.gmra.mrb[0].mxu0 %v3624
      %v3626 = vpop.f32.mrb[0].mxu0
      %v3627 = vadd.f32 %v2869, %v3626
      %v3628 = vpop.f32.mrb[0].mxu0
      %v3629 = vand.u32 %v284, 4294901760
      %3630 = vmatprep.mubr.f32.mxu0 %v3629
      %v3631 = vand.u32 %v141, 4294901760
      %3632 = vmatmul.mubr.f32.gmra.mrb[0].mxu0 %v3631
      %v3633 = vpop.f32.mrb[0].mxu0
      %v3634 = vadd.f32 %v2880, %v3633
      %v3635 = vpop.f32.mrb[0].mxu0
      %v3636 = vand.u32 %v287, 4294901760
      %3637 = vmatprep.mubr.f32.mxu0 %v3636
      %v3638 = vand.u32 %v143, 4294901760
      %3639 = vmatmul.mubr.f32.gmra.mrb[0].mxu0 %v3638
      %v3640 = vpop.f32.mrb[0].mxu0
      %v3641 = vadd.f32 %v2891, %v3640
      %v3642 = vpop.f32.mrb[0].mxu0
      %v3643 = vand.u32 %v290, 4294901760
      %3644 = vmatprep.mubr.f32.mxu0 %v3643
      %v3645 = vand.u32 %v145, 4294901760
      %3646 = vmatmul.mubr.f32.gmra.mrb[0].mxu0 %v3645
      %v3647 = vpop.f32.mrb[0].mxu0
      %v3648 = vadd.f32 %v2902, %v3647
      %v3649 = vpop.f32.mrb[0].mxu0
      %v3650 = vand.u32 %v293, 4294901760
      %3651 = vmatprep.mubr.f32.mxu0 %v3650
      %v3652 = vand.u32 %v147, 4294901760
      %3653 = vmatmul.mubr.f32.gmra.mrb[0].mxu0 %v3652
      %v3654 = vpop.f32.mrb[0].mxu0
      %v3655 = vadd.f32 %v2913, %v3654
      %v3656 = vpop.f32.mrb[0].mxu0
      %v3657 = vand.u32 %v296, 4294901760
      %3658 = vmatprep.mubr.f32.mxu0 %v3657
      %v3659 = vand.u32 %v149, 4294901760
      %3660 = vmatmul.mubr.f32.gmra.mrb[0].mxu0 %v3659
      %v3661 = vpop.f32.mrb[0].mxu0
      %v3662 = vadd.f32 %v2924, %v3661
      %v3663 = vpop.f32.mrb[0].mxu0
      %v3664 = vand.u32 %v299, 4294901760
      %3665 = vmatprep.mubr.f32.mxu0 %v3664
      %v3666 = vand.u32 %v151, 4294901760
      %3667 = vmatmul.mubr.f32.gmra.mrb[0].mxu0 %v3666
      %v3668 = vpop.f32.mrb[0].mxu0
      %v3669 = vadd.f32 %v2935, %v3668
      %v3670 = vpop.f32.mrb[0].mxu0
      %v3671 = vand.u32 %v302, 4294901760
      %3672 = vmatprep.mubr.f32.mxu0 %v3671
      %v3673 = vand.u32 %v153, 4294901760
      %3674 = vmatmul.mubr.f32.gmra.mrb[0].mxu0 %v3673
      %v3675 = vpop.f32.mrb[0].mxu0
      %v3676 = vadd.f32 %v2946, %v3675
      %v3677 = vpop.f32.mrb[0].mxu0
      %v3678 = vand.u32 %v305, 4294901760
      %3679 = vmatprep.mubr.f32.mxu0 %v3678
      %v3680 = vand.u32 %v155, 4294901760
      %3681 = vmatmul.mubr.f32.gmra.mrb[0].mxu0 %v3680
      %v3682 = vpop.f32.mrb[0].mxu0
      %v3683 = vadd.f32 %v2957, %v3682
      %v3684 = vpop.f32.mrb[0].mxu0
      %v3685 = vand.u32 %v308, 4294901760
      %3686 = vmatprep.mubr.f32.mxu0 %v3685
      %v3687 = vand.u32 %v157, 4294901760
      %3688 = vmatmul.mubr.f32.gmra.mrb[0].mxu0 %v3687
      %v3689 = vpop.f32.mrb[0].mxu0
      %v3690 = vadd.f32 %v2968, %v3689
      %v3691 = vpop.f32.mrb[0].mxu0
      %v3692 = vand.u32 %v311, 4294901760
      %3693 = vmatprep.mubr.f32.mxu0 %v3692
      %v3694 = vand.u32 %v159, 4294901760
      %3695 = vmatmul.mubr.f32.gmra.mrb[0].mxu0 %v3694
      %v3696 = vpop.f32.mrb[0].mxu0
      %v3697 = vadd.f32 %v2979, %v3696
      %v3698 = vpop.f32.mrb[0].mxu0
      %v3699 = vand.u32 %v314, 4294901760
      %3700 = vmatprep.mubr.f32.mxu0 %v3699
      %v3701 = vand.u32 %v161, 4294901760
      %3702 = vmatmul.mubr.f32.gmra.mrb[0].mxu0 %v3701
      %v3703 = vpop.f32.mrb[0].mxu0
      %v3704 = vadd.f32 %v2990, %v3703
      %v3705 = vpop.f32.mrb[0].mxu0
      %v3706 = vand.u32 %v317, 4294901760
      %3707 = vmatprep.mubr.f32.mxu0 %v3706
      %v3708 = vand.u32 %v163, 4294901760
      %3709 = vmatmul.mubr.f32.gmra.mrb[0].mxu0 %v3708
      %v3710 = vpop.f32.mrb[0].mxu0
      %v3711 = vadd.f32 %v3001, %v3710
      %v3712 = vpop.f32.mrb[0].mxu0
      %v3713 = vand.u32 %v320, 4294901760
      %3714 = vmatprep.mubr.f32.mxu0 %v3713
      %v3715 = vand.u32 %v165, 4294901760
      %3716 = vmatmul.mubr.f32.gmra.mrb[0].mxu0 %v3715
      %v3717 = vpop.f32.mrb[0].mxu0
      %v3718 = vadd.f32 %v3012, %v3717
      %v3719 = vpop.f32.mrb[0].mxu0
      %v3720 = vand.u32 %v323, 4294901760
      %3721 = vmatprep.mubr.f32.mxu0 %v3720
      %v3722 = vand.u32 %v167, 4294901760
      %3723 = vmatmul.mubr.f32.gmra.mrb[0].mxu0 %v3722
      %v3724 = vpop.f32.mrb[0].mxu0
      %v3725 = vadd.f32 %v3023, %v3724
      %v3726 = vpop.f32.mrb[0].mxu0
      %v3727 = vand.u32 %v326, 4294901760
      %3728 = vmatprep.mubr.f32.mxu0 %v3727
      %v3729 = vand.u32 %v169, 4294901760
      %3730 = vmatmul.mubr.f32.gmra.mrb[0].mxu0 %v3729
      %v3731 = vpop.f32.mrb[0].mxu0
      %v3732 = vadd.f32 %v3034, %v3731
      %v3733 = vpop.f32.mrb[0].mxu0
      %v3734 = vand.u32 %v329, 4294901760
      %3735 = vmatprep.mubr.f32.mxu0 %v3734
      %v3736 = vand.u32 %v171, 4294901760
      %3737 = vmatmul.mubr.f32.gmra.mrb[0].mxu0 %v3736
      %v3738 = vpop.f32.mrb[0].mxu0
      %v3739 = vadd.f32 %v3045, %v3738
      %v3740 = vpop.f32.mrb[0].mxu0
      %v3741 = vand.u32 %v332, 4294901760
      %3742 = vmatprep.mubr.f32.mxu0 %v3741
      %v3743 = vand.u32 %v173, 4294901760
      %3744 = vmatmul.mubr.f32.gmra.mrb[0].mxu0 %v3743
      %v3745 = vpop.f32.mrb[0].mxu0
      %v3746 = vadd.f32 %v3056, %v3745
      %v3747 = vpop.f32.mrb[0].mxu0
      %v3748 = vand.u32 %v335, 4294901760
      %3749 = vmatprep.mubr.f32.mxu0 %v3748
      %v3750 = vand.u32 %v175, 4294901760
      %3751 = vmatmul.mubr.f32.gmra.mrb[0].mxu0 %v3750
      %v3752 = vpop.f32.mrb[0].mxu0
      %v3753 = vadd.f32 %v3067, %v3752
      %v3754 = vpop.f32.mrb[0].mxu0
      %v3755 = vand.u32 %v338, 4294901760
      %3756 = vmatprep.mubr.f32.mxu0 %v3755
      %v3757 = vand.u32 %v177, 4294901760
      %3758 = vmatmul.mubr.f32.gmra.mrb[0].mxu0 %v3757
      %v3759 = vpop.f32.mrb[0].mxu0
      %v3760 = vadd.f32 %v3078, %v3759
      %v3761 = vpop.f32.mrb[0].mxu0
      %v3762 = vand.u32 %v341, 4294901760
      %3763 = vmatprep.mubr.f32.mxu0 %v3762
      %v3764 = vand.u32 %v179, 4294901760
      %3765 = vmatmul.mubr.f32.gmra.mrb[0].mxu0 %v3764
      %v3766 = vpop.f32.mrb[0].mxu0
      %v3767 = vadd.f32 %v3089, %v3766
      %v3768 = vpop.f32.mrb[0].mxu0
      %v3769 = vand.u32 %v344, 4294901760
      %3770 = vmatprep.mubr.f32.mxu0 %v3769
      %v3771 = vand.u32 %v181, 4294901760
      %3772 = vmatmul.mubr.f32.gmra.mrb[0].mxu0 %v3771
      %v3773 = vpop.f32.mrb[0].mxu0
      %v3774 = vadd.f32 %v3100, %v3773
      %v3775 = vpop.f32.mrb[0].mxu0
      %v3776 = vand.u32 %v347, 4294901760
      %3777 = vmatprep.mubr.f32.mxu0 %v3776
      %v3778 = vand.u32 %v183, 4294901760
      %3779 = vmatmul.mubr.f32.gmra.mrb[0].mxu0 %v3778
      %v3780 = vpop.f32.mrb[0].mxu0
      %v3781 = vadd.f32 %v3111, %v3780
      %v3782 = vpop.f32.mrb[0].mxu0
      %v3783 = vand.u32 %v350, 4294901760
      %3784 = vmatprep.mubr.f32.mxu0 %v3783
      %v3785 = vand.u32 %v185, 4294901760
      %3786 = vmatmul.mubr.f32.gmra.mrb[0].mxu0 %v3785
      %v3787 = vpop.f32.mrb[0].mxu0
      %v3788 = vadd.f32 %v3122, %v3787
      %v3789 = vpop.f32.mrb[0].mxu0
      %v3790 = vand.u32 %v353, 4294901760
      %3791 = vmatprep.mubr.f32.mxu0 %v3790
      %v3792 = vand.u32 %v187, 4294901760
      %3793 = vmatmul.mubr.f32.gmra.mrb[0].mxu0 %v3792
      %v3794 = vpop.f32.mrb[0].mxu0
      %v3795 = vadd.f32 %v3133, %v3794
      %v3796 = vpop.f32.mrb[0].mxu0
      %v3797 = vand.u32 %v356, 4294901760
      %3798 = vmatprep.mubr.f32.mxu0 %v3797
      %v3799 = vand.u32 %v189, 4294901760
      %3800 = vmatmul.mubr.f32.gmra.mrb[0].mxu0 %v3799
      %v3801 = vpop.f32.mrb[0].mxu0
      %v3802 = vadd.f32 %v3144, %v3801
      %v3803 = vpop.f32.mrb[0].mxu0
      %v3804 = vand.u32 %v359, 4294901760
      %3805 = vmatprep.mubr.f32.mxu0 %v3804
      %v3806 = vand.u32 %v191, 4294901760
      %3807 = vmatmul.mubr.f32.gmra.mrb[0].mxu0 %v3806
      %v3808 = vpop.f32.mrb[0].mxu0
      %v3809 = vadd.f32 %v3155, %v3808
      %v3810 = vpop.f32.mrb[0].mxu0
      %v3811 = vand.u32 %v362, 4294901760
      %3812 = vmatprep.mubr.f32.mxu0 %v3811
      %v3813 = vand.u32 %v193, 4294901760
      %3814 = vmatmul.mubr.f32.gmra.mrb[0].mxu0 %v3813
      %v3815 = vpop.f32.mrb[0].mxu0
      %v3816 = vadd.f32 %v3166, %v3815
      %v3817 = vpop.f32.mrb[0].mxu0
      %v3818 = vand.u32 %v365, 4294901760
      %3819 = vmatprep.mubr.f32.mxu0 %v3818
      %v3820 = vand.u32 %v195, 4294901760
      %3821 = vmatmul.mubr.f32.gmra.mrb[0].mxu0 %v3820
      %v3822 = vpop.f32.mrb[0].mxu0
      %v3823 = vadd.f32 %v3177, %v3822
      %v3824 = vpop.f32.mrb[0].mxu0
      %v3825 = vand.u32 %v368, 4294901760
      %3826 = vmatprep.mubr.f32.mxu0 %v3825
      %v3827 = vand.u32 %v197, 4294901760
      %3828 = vmatmul.mubr.f32.gmra.mrb[0].mxu0 %v3827
      %v3829 = vpop.f32.mrb[0].mxu0
      %v3830 = vadd.f32 %v3188, %v3829
      %v3831 = vpop.f32.mrb[0].mxu0
      %v3832 = vand.u32 %v371, 4294901760
      %3833 = vmatprep.mubr.f32.mxu0 %v3832
      %v3834 = vand.u32 %v199, 4294901760
      %3835 = vmatmul.mubr.f32.gmra.mrb[0].mxu0 %v3834
      %v3836 = vpop.f32.mrb[0].mxu0
      %v3837 = vadd.f32 %v3199, %v3836
      %v3838 = vpop.f32.mrb[0].mxu0
      %v3839 = vand.u32 %v374, 4294901760
      %3840 = vmatprep.mubr.f32.mxu0 %v3839
      %v3841 = vand.u32 %v201, 4294901760
      %3842 = vmatmul.mubr.f32.gmra.mrb[0].mxu0 %v3841
      %v3843 = vpop.f32.mrb[0].mxu0
      %v3844 = vadd.f32 %v3210, %v3843
      %v3845 = vpop.f32.mrb[0].mxu0
      %v3846 = vand.u32 %v377, 4294901760
      %3847 = vmatprep.mubr.f32.mxu0 %v3846
      %v3848 = vand.u32 %v203, 4294901760
      %3849 = vmatmul.mubr.f32.gmra.mrb[0].mxu0 %v3848
      %v3850 = vpop.f32.mrb[0].mxu0
      %v3851 = vadd.f32 %v3221, %v3850
      %v3852 = vpop.f32.mrb[0].mxu0
      %v3853 = vand.u32 %v380, 4294901760
      %3854 = vmatprep.mubr.f32.mxu0 %v3853
      %v3855 = vand.u32 %v205, 4294901760
      %3856 = vmatmul.mubr.f32.gmra.mrb[0].mxu0 %v3855
      %v3857 = vpop.f32.mrb[0].mxu0
      %v3858 = vadd.f32 %v3232, %v3857
      %v3859 = vpop.f32.mrb[0].mxu0
      %v3860 = vand.u32 %v383, 4294901760
      %3861 = vmatprep.mubr.f32.mxu0 %v3860
      %v3862 = vand.u32 %v207, 4294901760
      %3863 = vmatmul.mubr.f32.gmra.mrb[0].mxu0 %v3862
      %v3864 = vpop.f32.mrb[0].mxu0
      %v3865 = vadd.f32 %v3243, %v3864
      %v3866 = vpop.f32.mrb[0].mxu0
      %v3867 = vand.u32 %v386, 4294901760
      %3868 = vmatprep.mubr.f32.mxu0 %v3867
      %v3869 = vand.u32 %v209, 4294901760
      %3870 = vmatmul.mubr.f32.gmra.mrb[0].mxu0 %v3869
      %v3871 = vpop.f32.mrb[0].mxu0
      %v3872 = vadd.f32 %v3254, %v3871
      %v3873 = vpop.f32.mrb[0].mxu0
      %v3874 = vand.u32 %v389, 4294901760
      %3875 = vmatprep.mubr.f32.mxu0 %v3874
      %v3876 = vand.u32 %v211, 4294901760
      %3877 = vmatmul.mubr.f32.gmra.mrb[0].mxu0 %v3876
      %v3878 = vpop.f32.mrb[0].mxu0
      %v3879 = vadd.f32 %v3265, %v3878
      %v3880 = vpop.f32.mrb[0].mxu0
      %v3881 = vand.u32 %v392, 4294901760
      %3882 = vmatprep.mubr.f32.mxu0 %v3881
      %v3883 = vand.u32 %v213, 4294901760
      %3884 = vmatmul.mubr.f32.gmra.mrb[0].mxu0 %v3883
      %v3885 = vpop.f32.mrb[0].mxu0
      %v3886 = vadd.f32 %v3276, %v3885
      %v3887 = vpop.f32.mrb[0].mxu0
      %v3888 = vand.u32 %v395, 4294901760
      %3889 = vmatprep.mubr.f32.mxu0 %v3888
      %v3890 = vand.u32 %v215, 4294901760
      %3891 = vmatmul.mubr.f32.gmra.mrb[0].mxu0 %v3890
      %v3892 = vpop.f32.mrb[0].mxu0
      %v3893 = vadd.f32 %v3287, %v3892
      %v3894 = vpop.f32.mrb[0].mxu0
      %v3895 = vand.u32 %v398, 4294901760
      %3896 = vmatprep.mubr.f32.mxu0 %v3895
      %v3897 = vand.u32 %v217, 4294901760
      %3898 = vmatmul.mubr.f32.gmra.mrb[0].mxu0 %v3897
      %v3899 = vpop.f32.mrb[0].mxu0
      %v3900 = vadd.f32 %v3298, %v3899
      %v3901 = vpop.f32.mrb[0].mxu0
      %v3902 = vand.u32 %v401, 4294901760
      %3903 = vmatprep.mubr.f32.mxu0 %v3902
      %v3904 = vand.u32 %v219, 4294901760
      %3905 = vmatmul.mubr.f32.gmra.mrb[0].mxu0 %v3904
      %v3906 = vpop.f32.mrb[0].mxu0
      %v3907 = vadd.f32 %v3309, %v3906
      %v3908 = vpop.f32.mrb[0].mxu0
      %v3909 = vand.u32 %v404, 4294901760
      %3910 = vmatprep.mubr.f32.mxu0 %v3909
      %v3911 = vand.u32 %v221, 4294901760
      %3912 = vmatmul.mubr.f32.gmra.mrb[0].mxu0 %v3911
      %v3913 = vpop.f32.mrb[0].mxu0
      %v3914 = vadd.f32 %v3320, %v3913
      %v3915 = vpop.f32.mrb[0].mxu0
      %v3916 = vand.u32 %v407, 4294901760
      %3917 = vmatprep.mubr.f32.mxu0 %v3916
      %v3918 = vand.u32 %v223, 4294901760
      %3919 = vmatmul.mubr.f32.gmra.mrb[0].mxu0 %v3918
      %v3920 = vpop.f32.mrb[0].mxu0
      %v3921 = vadd.f32 %v3331, %v3920
      %v3922 = vpop.f32.mrb[0].mxu0
      %v3923 = vand.u32 %v410, 4294901760
      %3924 = vmatprep.mubr.f32.mxu0 %v3923
      %v3925 = vand.u32 %v225, 4294901760
      %3926 = vmatmul.mubr.f32.gmra.mrb[0].mxu0 %v3925
      %v3927 = vpop.f32.mrb[0].mxu0
      %v3928 = vadd.f32 %v3342, %v3927
      %v3929 = vpop.f32.mrb[0].mxu0
      %v3930 = vand.u32 %v413, 4294901760
      %3931 = vmatprep.mubr.f32.mxu0 %v3930
      %v3932 = vand.u32 %v227, 4294901760
      %3933 = vmatmul.mubr.f32.gmra.mrb[0].mxu0 %v3932
      %v3934 = vpop.f32.mrb[0].mxu0
      %v3935 = vadd.f32 %v3353, %v3934
      %v3936 = vpop.f32.mrb[0].mxu0
      %v3937 = vand.u32 %v416, 4294901760
      %3938 = vmatprep.mubr.f32.mxu0 %v3937
      %v3939 = vand.u32 %v229, 4294901760
      %3940 = vmatmul.mubr.f32.gmra.mrb[0].mxu0 %v3939
      %v3941 = vpop.f32.mrb[0].mxu0
      %v3942 = vadd.f32 %v3364, %v3941
      %v3943 = vpop.f32.mrb[0].mxu0
      %v3944 = vand.u32 %v419, 4294901760
      %3945 = vmatprep.mubr.f32.mxu0 %v3944
      %v3946 = vand.u32 %v231, 4294901760
      %3947 = vmatmul.mubr.f32.gmra.mrb[0].mxu0 %v3946
      %v3948 = vpop.f32.mrb[0].mxu0
      %v3949 = vadd.f32 %v3375, %v3948
      %v3950 = vpop.f32.mrb[0].mxu0
      %v3951 = vand.u32 %v422, 4294901760
      %3952 = vmatprep.mubr.f32.mxu0 %v3951
      %v3953 = vand.u32 %v233, 4294901760
      %3954 = vmatmul.mubr.f32.gmra.mrb[0].mxu0 %v3953
      %v3955 = vpop.f32.mrb[0].mxu0
      %v3956 = vadd.f32 %v3386, %v3955
      %v3957 = vpop.f32.mrb[0].mxu0
      %v3958 = vand.u32 %v425, 4294901760
      %3959 = vmatprep.mubr.f32.mxu0 %v3958
      %v3960 = vand.u32 %v235, 4294901760
      %3961 = vmatmul.mubr.f32.gmra.mrb[0].mxu0 %v3960
      %v3962 = vpop.f32.mrb[0].mxu0
      %v3963 = vadd.f32 %v3397, %v3962
      %v3964 = vpop.f32.mrb[0].mxu0
      %v3965 = vand.u32 %v428, 4294901760
      %3966 = vmatprep.mubr.f32.mxu0 %v3965
      %v3967 = vand.u32 %v237, 4294901760
      %3968 = vmatmul.mubr.f32.gmra.mrb[0].mxu0 %v3967
      %v3969 = vpop.f32.mrb[0].mxu0
      %v3970 = vadd.f32 %v3408, %v3969
      %v3971 = vpop.f32.mrb[0].mxu0
      %v3972 = vand.u32 %v431, 4294901760
      %3973 = vmatprep.mubr.f32.mxu0 %v3972
      %v3974 = vand.u32 %v239, 4294901760
      %3975 = vmatmul.mubr.f32.gmra.mrb[0].mxu0 %v3974
      %v3976 = vpop.f32.mrb[0].mxu0
      %v3977 = vadd.f32 %v3419, %v3976
      %v3978 = vpop.f32.mrb[0].mxu0
      %v3979 = vand.u32 %v434, 4294901760
      %3980 = vmatprep.mubr.f32.mxu0 %v3979
      %v3981 = vand.u32 %v241, 4294901760
      %3982 = vmatmul.mubr.f32.gmra.mrb[0].mxu0 %v3981
      %v3983 = vpop.f32.mrb[0].mxu0
      %v3984 = vadd.f32 %v3430, %v3983
      %v3985 = vpop.f32.mrb[0].mxu0
      %v3986 = vand.u32 %v437, 4294901760
      %3987 = vmatprep.mubr.f32.mxu0 %v3986
      %v3988 = vand.u32 %v243, 4294901760
      %3989 = vmatmul.mubr.f32.gmra.mrb[0].mxu0 %v3988
      %v3990 = vpop.f32.mrb[0].mxu0
      %v3991 = vadd.f32 %v3441, %v3990
      %v3992 = vpop.f32.mrb[0].mxu0
      %v3993 = vand.u32 %v440, 4294901760
      %3994 = vmatprep.mubr.f32.mxu0 %v3993
      %v3995 = vand.u32 %v245, 4294901760
      %3996 = vmatmul.mubr.f32.gmra.mrb[0].mxu0 %v3995
      %v3997 = vpop.f32.mrb[0].mxu0
      %v3998 = vadd.f32 %v3452, %v3997
      %v3999 = vpop.f32.mrb[0].mxu0
      %v4000 = vand.u32 %v443, 4294901760
      %4001 = vmatprep.mubr.f32.mxu0 %v4000
      %v4002 = vand.u32 %v247, 4294901760
      %4003 = vmatmul.mubr.f32.gmra.mrb[0].mxu0 %v4002
      %v4004 = vpop.f32.mrb[0].mxu0
      %v4005 = vadd.f32 %v3463, %v4004
      %v4006 = vpop.f32.mrb[0].mxu0
      %v4007 = vand.u32 %v446, 4294901760
      %4008 = vmatprep.mubr.f32.mxu0 %v4007
      %v4009 = vand.u32 %v249, 4294901760
      %4010 = vmatmul.mubr.f32.gmra.mrb[0].mxu0 %v4009
      %v4011 = vpop.f32.mrb[0].mxu0
      %v4012 = vadd.f32 %v3474, %v4011
      %v4013 = vpop.f32.mrb[0].mxu0
      %v4014 = vand.u32 %v449, 4294901760
      %4015 = vmatprep.mubr.f32.mxu0 %v4014
      %v4016 = vand.u32 %v251, 4294901760
      %4017 = vmatmul.mubr.f32.gmra.mrb[0].mxu0 %v4016
      %v4018 = vpop.f32.mrb[0].mxu0
      %v4019 = vadd.f32 %v3485, %v4018
      %v4020 = vpop.f32.mrb[0].mxu0
      %v4021 = vand.u32 %v452, 4294901760
      %4022 = vmatprep.mubr.f32.mxu0 %v4021
      %v4023 = vand.u32 %v253, 4294901760
      %4024 = vmatmul.mubr.f32.gmra.mrb[0].mxu0 %v4023
      %v4025 = vpop.f32.mrb[0].mxu0
      %v4026 = vadd.f32 %v3496, %v4025
      %v4027 = vpop.f32.mrb[0].mxu0
      %4028 = vdwg.mxu0
      %4029 = vmatprep.subr.mxu0 0.0
      %4030 = vmatpush1.msra.mxu0 1.0
      %4031 = vmatprep.subr.mxu0 0.0
      %4032 = vmatpush1.msra.mxu0 1.0
      %4033 = vmatprep.subr.mxu0 0.0
      %4034 = vmatpush1.msra.mxu0 1.0
      %4035 = vmatprep.subr.mxu0 0.0
      %4036 = vmatpush1.msra.mxu0 1.0
      %4037 = vmatprep.subr.mxu0 0.0
      %4038 = vmatpush1.msra.mxu0 1.0
      %4039 = vmatprep.subr.mxu0 0.0
      %4040 = vmatpush1.msra.mxu0 1.0
      %4041 = vmatprep.subr.mxu0 0.0
      %4042 = vmatpush1.msra.mxu0 1.0
      %4043 = vmatprep.subr.mxu0 0.0
      %4044 = vmatpush1.msra.mxu0 1.0
      %4045 = vmatprep.subr.mxu0 0.0
      %4046 = vmatpush1.msra.mxu0 1.0
      %4047 = vmatprep.subr.mxu0 0.0
      %4048 = vmatpush1.msra.mxu0 1.0
      %4049 = vmatprep.subr.mxu0 0.0
      %4050 = vmatpush1.msra.mxu0 1.0
      %4051 = vmatprep.subr.mxu0 0.0
      %4052 = vmatpush1.msra.mxu0 1.0
      %4053 = vmatprep.subr.mxu0 0.0
      %4054 = vmatpush1.msra.mxu0 1.0
      %4055 = vmatprep.subr.mxu0 0.0
      %4056 = vmatpush1.msra.mxu0 1.0
      %4057 = vmatprep.subr.mxu0 0.0
      %4058 = vmatpush1.msra.mxu0 1.0
      %4059 = vmatprep.subr.mxu0 0.0
      %4060 = vmatpush1.msra.mxu0 1.0
      %4061 = vmatprep.subr.mxu0 0.0
      %4062 = vmatpush1.msra.mxu0 1.0
      %4063 = vmatprep.subr.mxu0 0.0
      %4064 = vmatpush1.msra.mxu0 1.0
      %4065 = vmatprep.subr.mxu0 0.0
      %4066 = vmatpush1.msra.mxu0 1.0
      %4067 = vmatprep.subr.mxu0 0.0
      %4068 = vmatpush1.msra.mxu0 1.0
      %4069 = vmatprep.subr.mxu0 0.0
      %4070 = vmatpush1.msra.mxu0 1.0
      %4071 = vmatprep.subr.mxu0 0.0
      %4072 = vmatpush1.msra.mxu0 1.0
      %4073 = vmatprep.subr.mxu0 0.0
      %4074 = vmatpush1.msra.mxu0 1.0
      %4075 = vmatprep.subr.mxu0 0.0
      %4076 = vmatpush1.msra.mxu0 1.0
      %4077 = vmatprep.subr.mxu0 0.0
      %v4078 = vand.u32 %v456, 4294901760
      %4079 = vmatpush1.msra.mxu0 %v4078
      %4080 = vmatprep.subr.mxu0 0.0
      %4081 = vmatpush1.msra.mxu0 0.0
      %4082 = vmatprep.subr.mxu0 0.0
      %4083 = vmatpush1.msra.mxu0 0.0
      %4084 = vmatprep.subr.mxu0 0.0
      %4085 = vmatpush1.msra.mxu0 0.0
      %4086 = vmatprep.subr.mxu0 0.0
      %4087 = vmatpush1.msra.mxu0 0.0
      %4088 = vmatprep.subr.mxu0 0.0
      %4089 = vmatpush1.msra.mxu0 0.0
      %4090 = vmatprep.subr.mxu0 0.0
      %4091 = vmatpush1.msra.mxu0 0.0
      %4092 = vmatprep.subr.mxu0 0.0
      %4093 = vmatpush1.msra.mxu0 0.0
      %v4094 = vand.u32 %v257, 4294901760
      %4095 = vmatprep.mubr.f32.mxu0 %v4094
      %v4096 = vand.u32 %v123, 4294901760
      %4097 = vmatmul.mubr.f32.gmra.mrb[0].mxu0 %v4096
      %v4098 = vpop.f32.mrb[0].mxu0
      %v4099 = vadd.f32 %v3571, %v4098
      %v4100 = vpop.f32.mrb[0].mxu0
      %v4101 = vand.u32 %v260, 4294901760
      %4102 = vmatprep.mubr.f32.mxu0 %v4101
      %v4103 = vand.u32 %v125, 4294901760
      %4104 = vmatmul.mubr.f32.gmra.mrb[0].mxu0 %v4103
      %v4105 = vpop.f32.mrb[0].mxu0
      %v4106 = vadd.f32 %v3578, %v4105
      %v4107 = vpop.f32.mrb[0].mxu0
      %v4108 = vand.u32 %v263, 4294901760
      %4109 = vmatprep.mubr.f32.mxu0 %v4108
      %v4110 = vand.u32 %v127, 4294901760
      %4111 = vmatmul.mubr.f32.gmra.mrb[0].mxu0 %v4110
      %v4112 = vpop.f32.mrb[0].mxu0
      %v4113 = vadd.f32 %v3585, %v4112
      %v4114 = vpop.f32.mrb[0].mxu0
      %v4115 = vand.u32 %v266, 4294901760
      %4116 = vmatprep.mubr.f32.mxu0 %v4115
      %v4117 = vand.u32 %v129, 4294901760
      %4118 = vmatmul.mubr.f32.gmra.mrb[0].mxu0 %v4117
      %v4119 = vpop.f32.mrb[0].mxu0
      %v4120 = vadd.f32 %v3592, %v4119
      %v4121 = vpop.f32.mrb[0].mxu0
      %v4122 = vand.u32 %v269, 4294901760
      %4123 = vmatprep.mubr.f32.mxu0 %v4122
      %v4124 = vand.u32 %v131, 4294901760
      %4125 = vmatmul.mubr.f32.gmra.mrb[0].mxu0 %v4124
      %v4126 = vpop.f32.mrb[0].mxu0
      %v4127 = vadd.f32 %v3599, %v4126
      %v4128 = vpop.f32.mrb[0].mxu0
      %v4129 = vand.u32 %v272, 4294901760
      %4130 = vmatprep.mubr.f32.mxu0 %v4129
      %v4131 = vand.u32 %v133, 4294901760
      %4132 = vmatmul.mubr.f32.gmra.mrb[0].mxu0 %v4131
      %v4133 = vpop.f32.mrb[0].mxu0
      %v4134 = vadd.f32 %v3606, %v4133
      %v4135 = vpop.f32.mrb[0].mxu0
      %v4136 = vand.u32 %v275, 4294901760
      %4137 = vmatprep.mubr.f32.mxu0 %v4136
      %v4138 = vand.u32 %v135, 4294901760
      %4139 = vmatmul.mubr.f32.gmra.mrb[0].mxu0 %v4138
      %v4140 = vpop.f32.mrb[0].mxu0
      %v4141 = vadd.f32 %v3613, %v4140
      %v4142 = vpop.f32.mrb[0].mxu0
      %v4143 = vand.u32 %v278, 4294901760
      %4144 = vmatprep.mubr.f32.mxu0 %v4143
      %v4145 = vand.u32 %v137, 4294901760
      %4146 = vmatmul.mubr.f32.gmra.mrb[0].mxu0 %v4145
      %v4147 = vpop.f32.mrb[0].mxu0
      %v4148 = vadd.f32 %v3620, %v4147
      %v4149 = vpop.f32.mrb[0].mxu0
      %v4150 = vand.u32 %v281, 4294901760
      %4151 = vmatprep.mubr.f32.mxu0 %v4150
      %v4152 = vand.u32 %v139, 4294901760
      %4153 = vmatmul.mubr.f32.gmra.mrb[0].mxu0 %v4152
      %v4154 = vpop.f32.mrb[0].mxu0
      %v4155 = vadd.f32 %v3627, %v4154
      %v4156 = vpop.f32.mrb[0].mxu0
      %v4157 = vand.u32 %v284, 4294901760
      %4158 = vmatprep.mubr.f32.mxu0 %v4157
      %v4159 = vand.u32 %v141, 4294901760
      %4160 = vmatmul.mubr.f32.gmra.mrb[0].mxu0 %v4159
      %v4161 = vpop.f32.mrb[0].mxu0
      %v4162 = vadd.f32 %v3634, %v4161
      %v4163 = vpop.f32.mrb[0].mxu0
      %v4164 = vand.u32 %v287, 4294901760
      %4165 = vmatprep.mubr.f32.mxu0 %v4164
      %v4166 = vand.u32 %v143, 4294901760
      %4167 = vmatmul.mubr.f32.gmra.mrb[0].mxu0 %v4166
      %v4168 = vpop.f32.mrb[0].mxu0
      %v4169 = vadd.f32 %v3641, %v4168
      %v4170 = vpop.f32.mrb[0].mxu0
      %v4171 = vand.u32 %v290, 4294901760
      %4172 = vmatprep.mubr.f32.mxu0 %v4171
      %v4173 = vand.u32 %v145, 4294901760
      %4174 = vmatmul.mubr.f32.gmra.mrb[0].mxu0 %v4173
      %v4175 = vpop.f32.mrb[0].mxu0
      %v4176 = vadd.f32 %v3648, %v4175
      %v4177 = vpop.f32.mrb[0].mxu0
      %v4178 = vand.u32 %v293, 4294901760
      %4179 = vmatprep.mubr.f32.mxu0 %v4178
      %v4180 = vand.u32 %v147, 4294901760
      %4181 = vmatmul.mubr.f32.gmra.mrb[0].mxu0 %v4180
      %v4182 = vpop.f32.mrb[0].mxu0
      %v4183 = vadd.f32 %v3655, %v4182
      %v4184 = vpop.f32.mrb[0].mxu0
      %v4185 = vand.u32 %v296, 4294901760
      %4186 = vmatprep.mubr.f32.mxu0 %v4185
      %v4187 = vand.u32 %v149, 4294901760
      %4188 = vmatmul.mubr.f32.gmra.mrb[0].mxu0 %v4187
      %v4189 = vpop.f32.mrb[0].mxu0
      %v4190 = vadd.f32 %v3662, %v4189
      %v4191 = vpop.f32.mrb[0].mxu0
      %v4192 = vand.u32 %v299, 4294901760
      %4193 = vmatprep.mubr.f32.mxu0 %v4192
      %v4194 = vand.u32 %v151, 4294901760
      %4195 = vmatmul.mubr.f32.gmra.mrb[0].mxu0 %v4194
      %v4196 = vpop.f32.mrb[0].mxu0
      %v4197 = vadd.f32 %v3669, %v4196
      %v4198 = vpop.f32.mrb[0].mxu0
      %v4199 = vand.u32 %v302, 4294901760
      %4200 = vmatprep.mubr.f32.mxu0 %v4199
      %v4201 = vand.u32 %v153, 4294901760
      %4202 = vmatmul.mubr.f32.gmra.mrb[0].mxu0 %v4201
      %v4203 = vpop.f32.mrb[0].mxu0
      %v4204 = vadd.f32 %v3676, %v4203
      %v4205 = vpop.f32.mrb[0].mxu0
      %v4206 = vand.u32 %v305, 4294901760
      %4207 = vmatprep.mubr.f32.mxu0 %v4206
      %v4208 = vand.u32 %v155, 4294901760
      %4209 = vmatmul.mubr.f32.gmra.mrb[0].mxu0 %v4208
      %v4210 = vpop.f32.mrb[0].mxu0
      %v4211 = vadd.f32 %v3683, %v4210
      %v4212 = vpop.f32.mrb[0].mxu0
      %v4213 = vand.u32 %v308, 4294901760
      %4214 = vmatprep.mubr.f32.mxu0 %v4213
      %v4215 = vand.u32 %v157, 4294901760
      %4216 = vmatmul.mubr.f32.gmra.mrb[0].mxu0 %v4215
      %v4217 = vpop.f32.mrb[0].mxu0
      %v4218 = vadd.f32 %v3690, %v4217
      %v4219 = vpop.f32.mrb[0].mxu0
      %v4220 = vand.u32 %v311, 4294901760
      %4221 = vmatprep.mubr.f32.mxu0 %v4220
      %v4222 = vand.u32 %v159, 4294901760
      %4223 = vmatmul.mubr.f32.gmra.mrb[0].mxu0 %v4222
      %v4224 = vpop.f32.mrb[0].mxu0
      %v4225 = vadd.f32 %v3697, %v4224
      %v4226 = vpop.f32.mrb[0].mxu0
      %v4227 = vand.u32 %v314, 4294901760
      %4228 = vmatprep.mubr.f32.mxu0 %v4227
      %v4229 = vand.u32 %v161, 4294901760
      %4230 = vmatmul.mubr.f32.gmra.mrb[0].mxu0 %v4229
      %v4231 = vpop.f32.mrb[0].mxu0
      %v4232 = vadd.f32 %v3704, %v4231
      %v4233 = vpop.f32.mrb[0].mxu0
      %v4234 = vand.u32 %v317, 4294901760
      %4235 = vmatprep.mubr.f32.mxu0 %v4234
      %v4236 = vand.u32 %v163, 4294901760
      %4237 = vmatmul.mubr.f32.gmra.mrb[0].mxu0 %v4236
      %v4238 = vpop.f32.mrb[0].mxu0
      %v4239 = vadd.f32 %v3711, %v4238
      %v4240 = vpop.f32.mrb[0].mxu0
      %v4241 = vand.u32 %v320, 4294901760
      %4242 = vmatprep.mubr.f32.mxu0 %v4241
      %v4243 = vand.u32 %v165, 4294901760
      %4244 = vmatmul.mubr.f32.gmra.mrb[0].mxu0 %v4243
      %v4245 = vpop.f32.mrb[0].mxu0
      %v4246 = vadd.f32 %v3718, %v4245
      %v4247 = vpop.f32.mrb[0].mxu0
      %v4248 = vand.u32 %v323, 4294901760
      %4249 = vmatprep.mubr.f32.mxu0 %v4248
      %v4250 = vand.u32 %v167, 4294901760
      %4251 = vmatmul.mubr.f32.gmra.mrb[0].mxu0 %v4250
      %v4252 = vpop.f32.mrb[0].mxu0
      %v4253 = vadd.f32 %v3725, %v4252
      %v4254 = vpop.f32.mrb[0].mxu0
      %v4255 = vand.u32 %v326, 4294901760
      %4256 = vmatprep.mubr.f32.mxu0 %v4255
      %v4257 = vand.u32 %v169, 4294901760
      %4258 = vmatmul.mubr.f32.gmra.mrb[0].mxu0 %v4257
      %v4259 = vpop.f32.mrb[0].mxu0
      %v4260 = vadd.f32 %v3732, %v4259
      %v4261 = vpop.f32.mrb[0].mxu0
      %v4262 = vand.u32 %v329, 4294901760
      %4263 = vmatprep.mubr.f32.mxu0 %v4262
      %v4264 = vand.u32 %v171, 4294901760
      %4265 = vmatmul.mubr.f32.gmra.mrb[0].mxu0 %v4264
      %v4266 = vpop.f32.mrb[0].mxu0
      %v4267 = vadd.f32 %v3739, %v4266
      %v4268 = vpop.f32.mrb[0].mxu0
      %v4269 = vand.u32 %v332, 4294901760
      %4270 = vmatprep.mubr.f32.mxu0 %v4269
      %v4271 = vand.u32 %v173, 4294901760
      %4272 = vmatmul.mubr.f32.gmra.mrb[0].mxu0 %v4271
      %v4273 = vpop.f32.mrb[0].mxu0
      %v4274 = vadd.f32 %v3746, %v4273
      %v4275 = vpop.f32.mrb[0].mxu0
      %v4276 = vand.u32 %v335, 4294901760
      %4277 = vmatprep.mubr.f32.mxu0 %v4276
      %v4278 = vand.u32 %v175, 4294901760
      %4279 = vmatmul.mubr.f32.gmra.mrb[0].mxu0 %v4278
      %v4280 = vpop.f32.mrb[0].mxu0
      %v4281 = vadd.f32 %v3753, %v4280
      %v4282 = vpop.f32.mrb[0].mxu0
      %v4283 = vand.u32 %v338, 4294901760
      %4284 = vmatprep.mubr.f32.mxu0 %v4283
      %v4285 = vand.u32 %v177, 4294901760
      %4286 = vmatmul.mubr.f32.gmra.mrb[0].mxu0 %v4285
      %v4287 = vpop.f32.mrb[0].mxu0
      %v4288 = vadd.f32 %v3760, %v4287
      %v4289 = vpop.f32.mrb[0].mxu0
      %v4290 = vand.u32 %v341, 4294901760
      %4291 = vmatprep.mubr.f32.mxu0 %v4290
      %v4292 = vand.u32 %v179, 4294901760
      %4293 = vmatmul.mubr.f32.gmra.mrb[0].mxu0 %v4292
      %v4294 = vpop.f32.mrb[0].mxu0
      %v4295 = vadd.f32 %v3767, %v4294
      %v4296 = vpop.f32.mrb[0].mxu0
      %v4297 = vand.u32 %v344, 4294901760
      %4298 = vmatprep.mubr.f32.mxu0 %v4297
      %v4299 = vand.u32 %v181, 4294901760
      %4300 = vmatmul.mubr.f32.gmra.mrb[0].mxu0 %v4299
      %v4301 = vpop.f32.mrb[0].mxu0
      %v4302 = vadd.f32 %v3774, %v4301
      %v4303 = vpop.f32.mrb[0].mxu0
      %v4304 = vand.u32 %v347, 4294901760
      %4305 = vmatprep.mubr.f32.mxu0 %v4304
      %v4306 = vand.u32 %v183, 4294901760
      %4307 = vmatmul.mubr.f32.gmra.mrb[0].mxu0 %v4306
      %v4308 = vpop.f32.mrb[0].mxu0
      %v4309 = vadd.f32 %v3781, %v4308
      %v4310 = vpop.f32.mrb[0].mxu0
      %v4311 = vand.u32 %v350, 4294901760
      %4312 = vmatprep.mubr.f32.mxu0 %v4311
      %v4313 = vand.u32 %v185, 4294901760
      %4314 = vmatmul.mubr.f32.gmra.mrb[0].mxu0 %v4313
      %v4315 = vpop.f32.mrb[0].mxu0
      %v4316 = vadd.f32 %v3788, %v4315
      %v4317 = vpop.f32.mrb[0].mxu0
      %v4318 = vand.u32 %v353, 4294901760
      %4319 = vmatprep.mubr.f32.mxu0 %v4318
      %v4320 = vand.u32 %v187, 4294901760
      %4321 = vmatmul.mubr.f32.gmra.mrb[0].mxu0 %v4320
      %v4322 = vpop.f32.mrb[0].mxu0
      %v4323 = vadd.f32 %v3795, %v4322
      %v4324 = vpop.f32.mrb[0].mxu0
      %v4325 = vand.u32 %v356, 4294901760
      %4326 = vmatprep.mubr.f32.mxu0 %v4325
      %v4327 = vand.u32 %v189, 4294901760
      %4328 = vmatmul.mubr.f32.gmra.mrb[0].mxu0 %v4327
      %v4329 = vpop.f32.mrb[0].mxu0
      %v4330 = vadd.f32 %v3802, %v4329
      %v4331 = vpop.f32.mrb[0].mxu0
      %v4332 = vand.u32 %v359, 4294901760
      %4333 = vmatprep.mubr.f32.mxu0 %v4332
      %v4334 = vand.u32 %v191, 4294901760
      %4335 = vmatmul.mubr.f32.gmra.mrb[0].mxu0 %v4334
      %v4336 = vpop.f32.mrb[0].mxu0
      %v4337 = vadd.f32 %v3809, %v4336
      %v4338 = vpop.f32.mrb[0].mxu0
      %v4339 = vand.u32 %v362, 4294901760
      %4340 = vmatprep.mubr.f32.mxu0 %v4339
      %v4341 = vand.u32 %v193, 4294901760
      %4342 = vmatmul.mubr.f32.gmra.mrb[0].mxu0 %v4341
      %v4343 = vpop.f32.mrb[0].mxu0
      %v4344 = vadd.f32 %v3816, %v4343
      %v4345 = vpop.f32.mrb[0].mxu0
      %v4346 = vand.u32 %v365, 4294901760
      %4347 = vmatprep.mubr.f32.mxu0 %v4346
      %v4348 = vand.u32 %v195, 4294901760
      %4349 = vmatmul.mubr.f32.gmra.mrb[0].mxu0 %v4348
      %v4350 = vpop.f32.mrb[0].mxu0
      %v4351 = vadd.f32 %v3823, %v4350
      %v4352 = vpop.f32.mrb[0].mxu0
      %v4353 = vand.u32 %v368, 4294901760
      %4354 = vmatprep.mubr.f32.mxu0 %v4353
      %v4355 = vand.u32 %v197, 4294901760
      %4356 = vmatmul.mubr.f32.gmra.mrb[0].mxu0 %v4355
      %v4357 = vpop.f32.mrb[0].mxu0
      %v4358 = vadd.f32 %v3830, %v4357
      %v4359 = vpop.f32.mrb[0].mxu0
      %v4360 = vand.u32 %v371, 4294901760
      %4361 = vmatprep.mubr.f32.mxu0 %v4360
      %v4362 = vand.u32 %v199, 4294901760
      %4363 = vmatmul.mubr.f32.gmra.mrb[0].mxu0 %v4362
      %v4364 = vpop.f32.mrb[0].mxu0
      %v4365 = vadd.f32 %v3837, %v4364
      %v4366 = vpop.f32.mrb[0].mxu0
      %v4367 = vand.u32 %v374, 4294901760
      %4368 = vmatprep.mubr.f32.mxu0 %v4367
      %v4369 = vand.u32 %v201, 4294901760
      %4370 = vmatmul.mubr.f32.gmra.mrb[0].mxu0 %v4369
      %v4371 = vpop.f32.mrb[0].mxu0
      %v4372 = vadd.f32 %v3844, %v4371
      %v4373 = vpop.f32.mrb[0].mxu0
      %v4374 = vand.u32 %v377, 4294901760
      %4375 = vmatprep.mubr.f32.mxu0 %v4374
      %v4376 = vand.u32 %v203, 4294901760
      %4377 = vmatmul.mubr.f32.gmra.mrb[0].mxu0 %v4376
      %v4378 = vpop.f32.mrb[0].mxu0
      %v4379 = vadd.f32 %v3851, %v4378
      %v4380 = vpop.f32.mrb[0].mxu0
      %v4381 = vand.u32 %v380, 4294901760
      %4382 = vmatprep.mubr.f32.mxu0 %v4381
      %v4383 = vand.u32 %v205, 4294901760
      %4384 = vmatmul.mubr.f32.gmra.mrb[0].mxu0 %v4383
      %v4385 = vpop.f32.mrb[0].mxu0
      %v4386 = vadd.f32 %v3858, %v4385
      %v4387 = vpop.f32.mrb[0].mxu0
      %v4388 = vand.u32 %v383, 4294901760
      %4389 = vmatprep.mubr.f32.mxu0 %v4388
      %v4390 = vand.u32 %v207, 4294901760
      %4391 = vmatmul.mubr.f32.gmra.mrb[0].mxu0 %v4390
      %v4392 = vpop.f32.mrb[0].mxu0
      %v4393 = vadd.f32 %v3865, %v4392
      %v4394 = vpop.f32.mrb[0].mxu0
      %v4395 = vand.u32 %v386, 4294901760
      %4396 = vmatprep.mubr.f32.mxu0 %v4395
      %v4397 = vand.u32 %v209, 4294901760
      %4398 = vmatmul.mubr.f32.gmra.mrb[0].mxu0 %v4397
      %v4399 = vpop.f32.mrb[0].mxu0
      %v4400 = vadd.f32 %v3872, %v4399
      %v4401 = vpop.f32.mrb[0].mxu0
      %v4402 = vand.u32 %v389, 4294901760
      %4403 = vmatprep.mubr.f32.mxu0 %v4402
      %v4404 = vand.u32 %v211, 4294901760
      %4405 = vmatmul.mubr.f32.gmra.mrb[0].mxu0 %v4404
      %v4406 = vpop.f32.mrb[0].mxu0
      %v4407 = vadd.f32 %v3879, %v4406
      %v4408 = vpop.f32.mrb[0].mxu0
      %v4409 = vand.u32 %v392, 4294901760
      %4410 = vmatprep.mubr.f32.mxu0 %v4409
      %v4411 = vand.u32 %v213, 4294901760
      %4412 = vmatmul.mubr.f32.gmra.mrb[0].mxu0 %v4411
      %v4413 = vpop.f32.mrb[0].mxu0
      %v4414 = vadd.f32 %v3886, %v4413
      %v4415 = vpop.f32.mrb[0].mxu0
      %v4416 = vand.u32 %v395, 4294901760
      %4417 = vmatprep.mubr.f32.mxu0 %v4416
      %v4418 = vand.u32 %v215, 4294901760
      %4419 = vmatmul.mubr.f32.gmra.mrb[0].mxu0 %v4418
      %v4420 = vpop.f32.mrb[0].mxu0
      %v4421 = vadd.f32 %v3893, %v4420
      %v4422 = vpop.f32.mrb[0].mxu0
      %v4423 = vand.u32 %v398, 4294901760
      %4424 = vmatprep.mubr.f32.mxu0 %v4423
      %v4425 = vand.u32 %v217, 4294901760
      %4426 = vmatmul.mubr.f32.gmra.mrb[0].mxu0 %v4425
      %v4427 = vpop.f32.mrb[0].mxu0
      %v4428 = vadd.f32 %v3900, %v4427
      %v4429 = vpop.f32.mrb[0].mxu0
      %v4430 = vand.u32 %v401, 4294901760
      %4431 = vmatprep.mubr.f32.mxu0 %v4430
      %v4432 = vand.u32 %v219, 4294901760
      %4433 = vmatmul.mubr.f32.gmra.mrb[0].mxu0 %v4432
      %v4434 = vpop.f32.mrb[0].mxu0
      %v4435 = vadd.f32 %v3907, %v4434
      %v4436 = vpop.f32.mrb[0].mxu0
      %v4437 = vand.u32 %v404, 4294901760
      %4438 = vmatprep.mubr.f32.mxu0 %v4437
      %v4439 = vand.u32 %v221, 4294901760
      %4440 = vmatmul.mubr.f32.gmra.mrb[0].mxu0 %v4439
      %v4441 = vpop.f32.mrb[0].mxu0
      %v4442 = vadd.f32 %v3914, %v4441
      %v4443 = vpop.f32.mrb[0].mxu0
      %v4444 = vand.u32 %v407, 4294901760
      %4445 = vmatprep.mubr.f32.mxu0 %v4444
      %v4446 = vand.u32 %v223, 4294901760
      %4447 = vmatmul.mubr.f32.gmra.mrb[0].mxu0 %v4446
      %v4448 = vpop.f32.mrb[0].mxu0
      %v4449 = vadd.f32 %v3921, %v4448
      %v4450 = vpop.f32.mrb[0].mxu0
      %v4451 = vand.u32 %v410, 4294901760
      %4452 = vmatprep.mubr.f32.mxu0 %v4451
      %v4453 = vand.u32 %v225, 4294901760
      %4454 = vmatmul.mubr.f32.gmra.mrb[0].mxu0 %v4453
      %v4455 = vpop.f32.mrb[0].mxu0
      %v4456 = vadd.f32 %v3928, %v4455
      %v4457 = vpop.f32.mrb[0].mxu0
      %v4458 = vand.u32 %v413, 4294901760
      %4459 = vmatprep.mubr.f32.mxu0 %v4458
      %v4460 = vand.u32 %v227, 4294901760
      %4461 = vmatmul.mubr.f32.gmra.mrb[0].mxu0 %v4460
      %v4462 = vpop.f32.mrb[0].mxu0
      %v4463 = vadd.f32 %v3935, %v4462
      %v4464 = vpop.f32.mrb[0].mxu0
      %v4465 = vand.u32 %v416, 4294901760
      %4466 = vmatprep.mubr.f32.mxu0 %v4465
      %v4467 = vand.u32 %v229, 4294901760
      %4468 = vmatmul.mubr.f32.gmra.mrb[0].mxu0 %v4467
      %v4469 = vpop.f32.mrb[0].mxu0
      %v4470 = vadd.f32 %v3942, %v4469
      %v4471 = vpop.f32.mrb[0].mxu0
      %v4472 = vand.u32 %v419, 4294901760
      %4473 = vmatprep.mubr.f32.mxu0 %v4472
      %v4474 = vand.u32 %v231, 4294901760
      %4475 = vmatmul.mubr.f32.gmra.mrb[0].mxu0 %v4474
      %v4476 = vpop.f32.mrb[0].mxu0
      %v4477 = vadd.f32 %v3949, %v4476
      %v4478 = vpop.f32.mrb[0].mxu0
      %v4479 = vand.u32 %v422, 4294901760
      %4480 = vmatprep.mubr.f32.mxu0 %v4479
      %v4481 = vand.u32 %v233, 4294901760
      %4482 = vmatmul.mubr.f32.gmra.mrb[0].mxu0 %v4481
      %v4483 = vpop.f32.mrb[0].mxu0
      %v4484 = vadd.f32 %v3956, %v4483
      %v4485 = vpop.f32.mrb[0].mxu0
      %v4486 = vand.u32 %v425, 4294901760
      %4487 = vmatprep.mubr.f32.mxu0 %v4486
      %v4488 = vand.u32 %v235, 4294901760
      %4489 = vmatmul.mubr.f32.gmra.mrb[0].mxu0 %v4488
      %v4490 = vpop.f32.mrb[0].mxu0
      %v4491 = vadd.f32 %v3963, %v4490
      %v4492 = vpop.f32.mrb[0].mxu0
      %v4493 = vand.u32 %v428, 4294901760
      %4494 = vmatprep.mubr.f32.mxu0 %v4493
      %v4495 = vand.u32 %v237, 4294901760
      %4496 = vmatmul.mubr.f32.gmra.mrb[0].mxu0 %v4495
      %v4497 = vpop.f32.mrb[0].mxu0
      %v4498 = vadd.f32 %v3970, %v4497
      %v4499 = vpop.f32.mrb[0].mxu0
      %v4500 = vand.u32 %v431, 4294901760
      %4501 = vmatprep.mubr.f32.mxu0 %v4500
      %v4502 = vand.u32 %v239, 4294901760
      %4503 = vmatmul.mubr.f32.gmra.mrb[0].mxu0 %v4502
      %v4504 = vpop.f32.mrb[0].mxu0
      %v4505 = vadd.f32 %v3977, %v4504
      %v4506 = vpop.f32.mrb[0].mxu0
      %v4507 = vand.u32 %v434, 4294901760
      %4508 = vmatprep.mubr.f32.mxu0 %v4507
      %v4509 = vand.u32 %v241, 4294901760
      %4510 = vmatmul.mubr.f32.gmra.mrb[0].mxu0 %v4509
      %v4511 = vpop.f32.mrb[0].mxu0
      %v4512 = vadd.f32 %v3984, %v4511
      %v4513 = vpop.f32.mrb[0].mxu0
      %v4514 = vand.u32 %v437, 4294901760
      %4515 = vmatprep.mubr.f32.mxu0 %v4514
      %v4516 = vand.u32 %v243, 4294901760
      %4517 = vmatmul.mubr.f32.gmra.mrb[0].mxu0 %v4516
      %v4518 = vpop.f32.mrb[0].mxu0
      %v4519 = vadd.f32 %v3991, %v4518
      %v4520 = vpop.f32.mrb[0].mxu0
      %v4521 = vand.u32 %v440, 4294901760
      %4522 = vmatprep.mubr.f32.mxu0 %v4521
      %v4523 = vand.u32 %v245, 4294901760
      %4524 = vmatmul.mubr.f32.gmra.mrb[0].mxu0 %v4523
      %v4525 = vpop.f32.mrb[0].mxu0
      %v4526 = vadd.f32 %v3998, %v4525
      %v4527 = vpop.f32.mrb[0].mxu0
      %v4528 = vand.u32 %v443, 4294901760
      %4529 = vmatprep.mubr.f32.mxu0 %v4528
      %v4530 = vand.u32 %v247, 4294901760
      %4531 = vmatmul.mubr.f32.gmra.mrb[0].mxu0 %v4530
      %v4532 = vpop.f32.mrb[0].mxu0
      %v4533 = vadd.f32 %v4005, %v4532
      %v4534 = vpop.f32.mrb[0].mxu0
      %v4535 = vand.u32 %v446, 4294901760
      %4536 = vmatprep.mubr.f32.mxu0 %v4535
      %v4537 = vand.u32 %v249, 4294901760
      %4538 = vmatmul.mubr.f32.gmra.mrb[0].mxu0 %v4537
      %v4539 = vpop.f32.mrb[0].mxu0
      %v4540 = vadd.f32 %v4012, %v4539
      %v4541 = vpop.f32.mrb[0].mxu0
      %v4542 = vand.u32 %v449, 4294901760
      %4543 = vmatprep.mubr.f32.mxu0 %v4542
      %v4544 = vand.u32 %v251, 4294901760
      %4545 = vmatmul.mubr.f32.gmra.mrb[0].mxu0 %v4544
      %v4546 = vpop.f32.mrb[0].mxu0
      %v4547 = vadd.f32 %v4019, %v4546
      %v4548 = vpop.f32.mrb[0].mxu0
      %v4549 = vand.u32 %v452, 4294901760
      %4550 = vmatprep.mubr.f32.mxu0 %v4549
      %v4551 = vand.u32 %v253, 4294901760
      %4552 = vmatmul.mubr.f32.gmra.mrb[0].mxu0 %v4551
      %v4553 = vpop.f32.mrb[0].mxu0
      %v4554 = vadd.f32 %v4026, %v4553
      %v4555 = vpop.f32.mrb[0].mxu0
      %4556 = vdwg.mxu0
      %v4557 = vmul.f32 %v4099, 0.0051020407
      %v4558 = vmul.f32 %v4106, 0.0051020407
      %v4559 = vmul.f32 %v4113, 0.0051020407
      %v4560 = vmul.f32 %v4120, 0.0051020407
      %v4561 = vmul.f32 %v4127, 0.0051020407
      %v4562 = vmul.f32 %v4134, 0.0051020407
      %v4563 = vmul.f32 %v4141, 0.0051020407
      %v4564 = vmul.f32 %v4148, 0.0051020407
      %v4565 = vmul.f32 %v4155, 0.0051020407
      %v4566 = vmul.f32 %v4162, 0.0051020407
      %v4567 = vmul.f32 %v4169, 0.0051020407
      %v4568 = vmul.f32 %v4176, 0.0051020407
      %v4569 = vmul.f32 %v4183, 0.0051020407
      %v4570 = vmul.f32 %v4190, 0.0051020407
      %v4571 = vmul.f32 %v4197, 0.0051020407
      %v4572 = vmul.f32 %v4204, 0.0051020407
      %v4573 = vmul.f32 %v4211, 0.0051020407
      %v4574 = vmul.f32 %v4218, 0.0051020407
      %v4575 = vmul.f32 %v4225, 0.0051020407
      %v4576 = vmul.f32 %v4232, 0.0051020407
      %v4577 = vmul.f32 %v4239, 0.0051020407
      %v4578 = vmul.f32 %v4246, 0.0051020407
      %v4579 = vmul.f32 %v4253, 0.0051020407
      %v4580 = vmul.f32 %v4260, 0.0051020407
      %v4581 = vmul.f32 %v4267, 0.0051020407
      %v4582 = vmul.f32 %v4274, 0.0051020407
      %v4583 = vmul.f32 %v4281, 0.0051020407
      %v4584 = vmul.f32 %v4288, 0.0051020407
      %v4585 = vmul.f32 %v4295, 0.0051020407
      %v4586 = vmul.f32 %v4302, 0.0051020407
      %v4587 = vmul.f32 %v4309, 0.0051020407
      %v4588 = vmul.f32 %v4316, 0.0051020407
      %v4589 = vmul.f32 %v4323, 0.0051020407
      %v4590 = vmul.f32 %v4330, 0.0051020407
      %v4591 = vmul.f32 %v4337, 0.0051020407
      %v4592 = vmul.f32 %v4344, 0.0051020407
      %v4593 = vmul.f32 %v4351, 0.0051020407
      %v4594 = vmul.f32 %v4358, 0.0051020407
      %v4595 = vmul.f32 %v4365, 0.0051020407
      %v4596 = vmul.f32 %v4372, 0.0051020407
      %v4597 = vmul.f32 %v4379, 0.0051020407
      %v4598 = vmul.f32 %v4386, 0.0051020407
      %v4599 = vmul.f32 %v4393, 0.0051020407
      %v4600 = vmul.f32 %v4400, 0.0051020407
      %v4601 = vmul.f32 %v4407, 0.0051020407
      %v4602 = vmul.f32 %v4414, 0.0051020407
      %v4603 = vmul.f32 %v4421, 0.0051020407
      %v4604 = vmul.f32 %v4428, 0.0051020407
      %v4605 = vmul.f32 %v4435, 0.0051020407
      %v4606 = vmul.f32 %v4442, 0.0051020407
      %v4607 = vmul.f32 %v4449, 0.0051020407
      %v4608 = vmul.f32 %v4456, 0.0051020407
      %v4609 = vmul.f32 %v4463, 0.0051020407
      %v4610 = vmul.f32 %v4470, 0.0051020407
      %v4611 = vmul.f32 %v4477, 0.0051020407
      %v4612 = vmul.f32 %v4484, 0.0051020407
      %v4613 = vmul.f32 %v4491, 0.0051020407
      %v4614 = vmul.f32 %v4498, 0.0051020407
      %v4615 = vmul.f32 %v4505, 0.0051020407
      %v4616 = vmul.f32 %v4512, 0.0051020407
      %v4617 = vmul.f32 %v4519, 0.0051020407
      %v4618 = vmul.f32 %v4526, 0.0051020407
      %v4619 = vmul.f32 %v4533, 0.0051020407
      %v4620 = vmul.f32 %v4540, 0.0051020407
      %v4621 = vmul.f32 %v4547, 0.0051020407
      %v4622 = vmul.f32 %v4554, 0.0051020407
      %vm4623 = vcmask 7168
      %4624 = vst.msk [vmem:[%s121] sm:$0xff] %vm4623, %v4557
      %4625 = vst.msk [vmem:[%s121 + $0x8] sm:$0xff] %vm4623, %v4558
      %4626 = vst.msk [vmem:[%s121 + $0x10] sm:$0xff] %vm4623, %v4559
      %4627 = vst.msk [vmem:[%s121 + $0x18] sm:$0xff] %vm4623, %v4560
      %4628 = vst.msk [vmem:[%s121 + $0x20] sm:$0xff] %vm4623, %v4561
      %4629 = vst.msk [vmem:[%s121 + $0x28] sm:$0xff] %vm4623, %v4562
      %4630 = vst.msk [vmem:[%s121 + $0x30] sm:$0xff] %vm4623, %v4563
      %4631 = vst.msk [vmem:[%s121 + $0x38] sm:$0xff] %vm4623, %v4564
      %4632 = vst.msk [vmem:[%s121 + $0x40] sm:$0xff] %vm4623, %v4565
      %4633 = vst.msk [vmem:[%s121 + $0x48] sm:$0xff] %vm4623, %v4566
      %4634 = vst.msk [vmem:[%s121 + $0x50] sm:$0xff] %vm4623, %v4567
      %4635 = vst.msk [vmem:[%s121 + $0x58] sm:$0xff] %vm4623, %v4568
      %4636 = vst.msk [vmem:[%s121 + $0x60] sm:$0xff] %vm4623, %v4569
      %4637 = vst.msk [vmem:[%s121 + $0x68] sm:$0xff] %vm4623, %v4570
      %4638 = vst.msk [vmem:[%s121 + $0x70] sm:$0xff] %vm4623, %v4571
      %4639 = vst.msk [vmem:[%s121 + $0x78] sm:$0xff] %vm4623, %v4572
      %4640 = vst.msk [vmem:[%s121 + $0x80] sm:$0xff] %vm4623, %v4573
      %4641 = vst.msk [vmem:[%s121 + $0x88] sm:$0xff] %vm4623, %v4574
      %4642 = vst.msk [vmem:[%s121 + $0x90] sm:$0xff] %vm4623, %v4575
      %4643 = vst.msk [vmem:[%s121 + $0x98] sm:$0xff] %vm4623, %v4576
      %4644 = vst.msk [vmem:[%s121 + $0xa0] sm:$0xff] %vm4623, %v4577
      %4645 = vst.msk [vmem:[%s121 + $0xa8] sm:$0xff] %vm4623, %v4578
      %4646 = vst.msk [vmem:[%s121 + $0xb0] sm:$0xff] %vm4623, %v4579
      %4647 = vst.msk [vmem:[%s121 + $0xb8] sm:$0xff] %vm4623, %v4580
      %4648 = vst.msk [vmem:[%s121 + $0xc0] sm:$0xff] %vm4623, %v4581
      %4649 = vst.msk [vmem:[%s121 + $0xc8] sm:$0xff] %vm4623, %v4582
      %4650 = vst.msk [vmem:[%s121 + $0xd0] sm:$0xff] %vm4623, %v4583
      %4651 = vst.msk [vmem:[%s121 + $0xd8] sm:$0xff] %vm4623, %v4584
      %4652 = vst.msk [vmem:[%s121 + $0xe0] sm:$0xff] %vm4623, %v4585
      %4653 = vst.msk [vmem:[%s121 + $0xe8] sm:$0xff] %vm4623, %v4586
      %4654 = vst.msk [vmem:[%s121 + $0xf0] sm:$0xff] %vm4623, %v4587
      %4655 = vst.msk [vmem:[%s121 + $0xf8] sm:$0xff] %vm4623, %v4588
      %4656 = vst.msk [vmem:[%s121 + $0x100] sm:$0xff] %vm4623, %v4589
      %4657 = vst.msk [vmem:[%s121 + $0x108] sm:$0xff] %vm4623, %v4590
      %4658 = vst.msk [vmem:[%s121 + $0x110] sm:$0xff] %vm4623, %v4591
      %4659 = vst.msk [vmem:[%s121 + $0x118] sm:$0xff] %vm4623, %v4592
      %4660 = vst.msk [vmem:[%s121 + $0x120] sm:$0xff] %vm4623, %v4593
      %4661 = vst.msk [vmem:[%s121 + $0x128] sm:$0xff] %vm4623, %v4594
      %4662 = vst.msk [vmem:[%s121 + $0x130] sm:$0xff] %vm4623, %v4595
      %4663 = vst.msk [vmem:[%s121 + $0x138] sm:$0xff] %vm4623, %v4596
      %4664 = vst.msk [vmem:[%s121 + $0x140] sm:$0xff] %vm4623, %v4597
      %4665 = vst.msk [vmem:[%s121 + $0x148] sm:$0xff] %vm4623, %v4598
      %4666 = vst.msk [vmem:[%s121 + $0x150] sm:$0xff] %vm4623, %v4599
      %4667 = vst.msk [vmem:[%s121 + $0x158] sm:$0xff] %vm4623, %v4600
      %4668 = vst.msk [vmem:[%s121 + $0x160] sm:$0xff] %vm4623, %v4601
      %4669 = vst.msk [vmem:[%s121 + $0x168] sm:$0xff] %vm4623, %v4602
      %4670 = vst.msk [vmem:[%s121 + $0x170] sm:$0xff] %vm4623, %v4603
      %4671 = vst.msk [vmem:[%s121 + $0x178] sm:$0xff] %vm4623, %v4604
      %4672 = vst.msk [vmem:[%s121 + $0x180] sm:$0xff] %vm4623, %v4605
      %4673 = vst.msk [vmem:[%s121 + $0x188] sm:$0xff] %vm4623, %v4606
      %4674 = vst.msk [vmem:[%s121 + $0x190] sm:$0xff] %vm4623, %v4607
      %4675 = vst.msk [vmem:[%s121 + $0x198] sm:$0xff] %vm4623, %v4608
      %4676 = vst.msk [vmem:[%s121 + $0x1a0] sm:$0xff] %vm4623, %v4609
      %4677 = vst.msk [vmem:[%s121 + $0x1a8] sm:$0xff] %vm4623, %v4610
      %4678 = vst.msk [vmem:[%s121 + $0x1b0] sm:$0xff] %vm4623, %v4611
      %4679 = vst.msk [vmem:[%s121 + $0x1b8] sm:$0xff] %vm4623, %v4612
      %4680 = vst.msk [vmem:[%s121 + $0x1c0] sm:$0xff] %vm4623, %v4613
      %4681 = vst.msk [vmem:[%s121 + $0x1c8] sm:$0xff] %vm4623, %v4614
      %4682 = vst.msk [vmem:[%s121 + $0x1d0] sm:$0xff] %vm4623, %v4615
      %4683 = vst.msk [vmem:[%s121 + $0x1d8] sm:$0xff] %vm4623, %v4616
      %4684 = vst.msk [vmem:[%s121 + $0x1e0] sm:$0xff] %vm4623, %v4617
      %4685 = vst.msk [vmem:[%s121 + $0x1e8] sm:$0xff] %vm4623, %v4618
      %4686 = vst.msk [vmem:[%s121 + $0x1f0] sm:$0xff] %vm4623, %v4619
      %4687 = vst.msk [vmem:[%s121 + $0x1f8] sm:$0xff] %vm4623, %v4620
      %4688 = vst.msk [vmem:[%s121 + $0x200] sm:$0xff] %vm4623, %v4621
      %4689 = vst.msk [vmem:[%s121 + $0x208] sm:$0xff] %vm4623, %v4622
      %s4690 = smul.u32 66, %s12
      %p4691 = scmp.lt.s32.totalorder %s4690, 131
      %s4692 = scalar_select %p4691, %s4690, 131
      %s4693 = smul.addr %s4692, 8
      %s4694 = scalar_lea.vmem %s1, %s4693
      // Predicated region
      $region25: #{tpu_custom_call.1} parent=23 // pred_check
        %p4695 = pneg %p56
      $region26: #{tpu_custom_call.1} parent=23 // pred_check_branch
        %4697 = sbr.rel (%p4695) target = $region28
      $region27: #{tpu_custom_call.1} parent=23 // pred_region
        %s4698 = smul.u32 66, %s12
      $region28: #{tpu_custom_call.1} parent=23 // pred_fallthru
        _
    $region24: #{tpu_custom_call.1} parent=5 // pred_fallthru
      _
    %p4699 = scmp.le.s32.totalorder 2, %s7
    // Predicated region
    $region29: #{tpu_custom_call.1} parent=5 // pred_check
      %p4700 = pneg %p4699
    $region30: #{tpu_custom_call.1} parent=5 // pred_check_branch
      %4702 = sbr.rel (%p4700) target = $region32
    $region31: #{tpu_custom_call.1} parent=5 // pred_region
      %s4703 = ssub.s32 %s7, 2
      // Predicated region
      $region33: #{tpu_custom_call.1} parent=31 // pred_check
        %p4704 = pneg %p62
      $region34: #{tpu_custom_call.1} parent=31 // pred_check_branch
        %4706 = sbr.rel (%p4704) target = $region36
      $region35: #{tpu_custom_call.1} parent=31 // pred_region
        %s4707 = smul.u32 66, %s13
        %p4708 = scmp.lt.s32.totalorder %s4707, 131
        %s4709 = scalar_select %p4708, %s4707, 131
        %s4710 = smul.addr %s4709, 8
        %s4711 = scalar_lea.vmem %s1, %s4710
      $region36: #{tpu_custom_call.1} parent=31 // pred_fallthru
        _
    $region32: #{tpu_custom_call.1} parent=5 // pred_fallthru
      _
  $region6: #{tpu_custom_call.1} parent=0 // loop_footer
    %s11 = sadd.s32 1, %s7
  $region7: #{tpu_custom_call.1} parent=0 // loop_footer_branch
    %6 = sbr.rel target = $region3
  $region8: #{tpu_custom_call.1} parent=0 // loop_exit
    _

</llo_original>
